<compile_context>
chip_gen: v7x
topology: tpu7x:2x2x1
jax: 0.10.0
libtpu: 0.0.40
codegen_flags: <defaults>
</compile_context>

<pallas_src>
import jax
import jax.numpy as jnp
from jax.experimental import pallas as pl
from jax.experimental.pallas import tpu as pltpu


def _zero_index_map(ndim):
    return lambda: (0,) * ndim


# ----------------------------------------------------------------------------
# Fused kernel: all LSTM layers + time loop + output projection, grid=().
# Gate order matches PyTorch: i, f, g, o.
# ----------------------------------------------------------------------------
def _make_fused_lstm_kernel(num_layers, seq_len, batch, hidden):
    L, T, B, H = num_layers, seq_len, batch, hidden

    def kernel(*refs):
        # ---- unpack refs: inputs, outputs, scratch ----
        x_ref = refs[0]                                   # (T*B, I)
        w_ih = [refs[1 + 3 * l + 0] for l in range(L)]    # (in_dim, 4H)
        w_hh = [refs[1 + 3 * l + 1] for l in range(L)]    # (H, 4H)
        bias = [refs[1 + 3 * l + 2] for l in range(L)]    # (1, 4H)  (b_ih+b_hh)
        base = 1 + 3 * L
        h0_ref, c0_ref, wlin_ref, blin_ref = refs[base:base + 4]
        out_ref, hN_ref, cN_ref = refs[base + 4:base + 7]
        y_s, xg_s, h_s, c_s = refs[base + 7:base + 11]

        def _recurrent_body(l):
            def body(t):
                h_prev = h_s[...]                          # (B, H) f32
                c_prev = c_s[...]                          # (B, H) f32
                gates = (
                    xg_s[pl.ds(t * B, B), :]
                    + jnp.dot(h_prev.astype(w_hh[l].dtype), w_hh[l][...],
                              preferred_element_type=jnp.float32))
                # Nonlinearities on the full (B, 4H) vreg, slice afterwards
                # (avoids 4 narrow EUP invocations + sub-vreg relayouts).
                sig = jax.nn.sigmoid(gates)
                tnh = jnp.tanh(gates)
                i_g = sig[:, 0 * H:1 * H]
                f_g = sig[:, 1 * H:2 * H]
                g_g = tnh[:, 2 * H:3 * H]
                o_g = sig[:, 3 * H:4 * H]
                c_new = f_g * c_prev + i_g * g_g
                h_new = o_g * jnp.tanh(c_new)
                h_s[...] = h_new
                c_s[...] = c_new
                y_s[pl.ds(t * B, B), :] = h_new
            return body

        for l in range(L):
            # (1) batched input projection for all timesteps, bias folded in.
            seq_in = x_ref[...] if l == 0 else y_s[...]
            xg_s[...] = (
                jnp.dot(seq_in.astype(w_ih[l].dtype), w_ih[l][...],
                        preferred_element_type=jnp.float32)
                + bias[l][...])

            # (2) recurrent scan; h/c carried in VMEM scratch (f32).
            h_s[...] = h0_ref[l]
            c_s[...] = c0_ref[l]
            pl.loop(0, T, unroll=True)(_recurrent_body(l))

            hN_ref[l] = h_s[...]
            cN_ref[l] = c_s[...]

        # (3) epilogue: lane-dense padded output projection, one matmul + one
        #     unmasked (T*B, 128)-wide store.
        out_ref[...] = (
            jnp.dot(y_s[...].astype(wlin_ref.dtype), wlin_ref[...],
                    preferred_element_type=jnp.float32)
            + blin_ref[...])

    return kernel


# ----------------------------------------------------------------------------
# Module wrapper (parameter setup in plain JAX)
# ----------------------------------------------------------------------------
class LSTMPallas:
    """Pallas TPU port of the PyTorch `LSTM` module (num_layers LSTM + Linear)."""

    def __init__(self, batch_size, input_size, output_size, dropout,
                 lstm_num_hidden=32, lstm_num_layers=2, key=None,
                 mxu_dtype=jnp.float32):
        # TODO(synk): inter-layer dropout not applied (eval / dropout=0.0 only).
        del batch_size, dropout
        self.input_size = input_size
        self.output_size = output_size
        self.hidden = lstm_num_hidden
        self.num_layers = lstm_num_layers
        self.mxu_dtype = mxu_dtype

        if key is None:
            key = jax.random.PRNGKey(0)
        H = lstm_num_hidden
        stdv = 1.0 / (H ** 0.5)

        def unif(k, shape):
            return jax.random.uniform(k, shape, jnp.float32, -stdv, stdv)

        # f32 master parameters (PyTorch layout, pre-transposed for x @ W^T).
        self.layers = []
        for layer in range(lstm_num_layers):
            in_dim = input_size if layer == 0 else H
            key, k1, k2, k3, k4 = jax.random.split(key, 5)
            w_ih = unif(k1, (4 * H, in_dim))    # PyTorch weight_ih_l{layer}
            w_hh = unif(k2, (4 * H, H))         # PyTorch weight_hh_l{layer}
            b_ih = unif(k3, (4 * H,))
            b_hh = unif(k4, (4 * H,))
            self.layers.append(dict(
                w_ih_t=w_ih.T,                           # (in_dim, 4H)
                w_hh_t=w_hh.T,                           # (H, 4H)
                bias=(b_ih + b_hh).reshape(1, 4 * H)))   # (1, 4H)

        key, k1, k2 = jax.random.split(key, 3)
        self.lin_w = unif(k1, (output_size, H))
        self.lin_b = unif(k2, (output_size,))

        # Kernel operands: MXU weights optionally bf16; linear weight/bias
        # padded to a lane-dense (multiple of 128) output width.
        O = output_size
        self.o_pad = max(128, ((O + 127) // 128) * 128)
        lin_w_pad = jnp.zeros((H, self.o_pad), jnp.float32)
        lin_w_pad = lin_w_pad.at[:, :O].set(self.lin_w.T)
        lin_b_pad = jnp.zeros((1, self.o_pad), jnp.float32)
        lin_b_pad = lin_b_pad.at[:, :O].set(self.lin_b.reshape(1, O))

        self._packed = []
        for p in self.layers:
            self._packed += [p["w_ih_t"].astype(mxu_dtype),
                             p["w_hh_t"].astype(mxu_dtype),
                             p["bias"]]
        self._lin_w_pad = lin_w_pad.astype(mxu_dtype)
        self._lin_b_pad = lin_b_pad

    def __call__(self, x, hc=None):
        """x: (T, B, input_size) f32; hc optional (h0, c0) each (L, B, H).
        Returns (out (T, B, output_size), (h, c)) like the PyTorch module."""
        T, B, I = x.shape
        H, L, O = self.hidden, self.num_layers, self.output_size
        if hc is None:
            h0 = jnp.zeros((L, B, H), jnp.float32)
            c0 = jnp.zeros((L, B, H), jnp.float32)
        else:
            h0, c0 = hc
        x2d = x.reshape(T * B, I)   # whole sequence loaded in one DMA

        in_arrays = [x2d] + self._packed + [h0, c0,
                                            self._lin_w_pad, self._lin_b_pad]
        in_specs = [pl.BlockSpec(a.shape, _zero_index_map(a.ndim))
                    for a in in_arrays]
        out_shape = (jax.ShapeDtypeStruct((T * B, self.o_pad), jnp.float32),
                     jax.ShapeDtypeStruct((L, B, H), jnp.float32),
                     jax.ShapeDtypeStruct((L, B, H), jnp.float32))
        out_specs = (pl.BlockSpec((T * B, self.o_pad), _zero_index_map(2)),
                     pl.BlockSpec((L, B, H), _zero_index_map(3)),
                     pl.BlockSpec((L, B, H), _zero_index_map(3)))
        scratch_shapes = [
            pltpu.VMEM((T * B, H), jnp.float32),       # y_s: per-layer hidden seq
            pltpu.VMEM((T * B, 4 * H), jnp.float32),   # xg_s: batched input proj
            pltpu.VMEM((B, H), jnp.float32),           # h_s
            pltpu.VMEM((B, H), jnp.float32),           # c_s
        ]

        out_pad, hN, cN = pl.pallas_call(
            _make_fused_lstm_kernel(L, T, B, H),
            out_shape=out_shape,
            in_specs=in_specs,
            out_specs=out_specs,
            scratch_shapes=scratch_shapes,
        )(*in_arrays)

        out = out_pad[:, :O].reshape(T, B, O)
        return out, (hN, cN)


# ----------------------------------------------------------------------------
# Pure-JAX reference (for correctness check)
# ----------------------------------------------------------------------------
def _ref_forward(model, x, hc=None):
    T, B, _ = x.shape
    H, L = model.hidden, model.num_layers
    if hc is None:
        h0 = jnp.zeros((L, B, H), jnp.float32)
        c0 = jnp.zeros((L, B, H), jnp.float32)
    else:
        h0, c0 = hc
    layer_in = x
    h_finals, c_finals = [], []
    for l, p in enumerate(model.layers):
        h = h0[l]
        c = c0[l]
        ys = []
        for t in range(T):
            gates = layer_in[t] @ p["w_ih_t"] + h @ p["w_hh_t"] + p["bias"]
            i_g = jax.nn.sigmoid(gates[:, 0 * H:1 * H])
            f_g = jax.nn.sigmoid(gates[:, 1 * H:2 * H])
            g_g = jnp.tanh(gates[:, 2 * H:3 * H])
            o_g = jax.nn.sigmoid(gates[:, 3 * H:4 * H])
            c = f_g * c + i_g * g_g
            h = o_g * jnp.tanh(c)
            ys.append(h)
        layer_in = jnp.stack(ys, axis=0)
        h_finals.append(h)
        c_finals.append(c)
    out = layer_in @ model.lin_w.T + model.lin_b
    return out, (jnp.stack(h_finals, 0), jnp.stack(c_finals, 0))


if __name__ == "__main__":
    # Small shapes: seq=8, batch=2, input=16, hidden=32, output=10, 2 layers.
    T, B, I, H, O = 8, 2, 16, 32, 10

    key = jax.random.PRNGKey(0)
    k_x, k_params = jax.random.split(key)
    x = jax.random.normal(k_x, (T, B, I), dtype=jnp.float32)

    model = LSTMPallas(batch_size=B, input_size=I, output_size=O,
                       dropout=0.0, lstm_num_hidden=H, lstm_num_layers=2,
                       key=k_params)

    # --- f32 MXU path: tight check against pure-JAX reference --------------
    out, (h, c) = model(x)
    out, h, c = jax.block_until_ready((out, h, c))
    assert out.shape == (T, B, O)
    assert h.shape == (2, B, H) and c.shape == (2, B, H)

    ref_out, (ref_h, ref_c) = _ref_forward(model, x)
    assert jnp.allclose(out, ref_out, atol=1e-5, rtol=1e-5)
    assert jnp.allclose(h, ref_h, atol=1e-5, rtol=1e-5)
    assert jnp.allclose(c, ref_c, atol=1e-5, rtol=1e-5)

    # --- nonzero initial (h0, c0) path --------------------------------------
    k_h, k_c = jax.random.split(jax.random.PRNGKey(1))
    h0 = 0.1 * jax.random.normal(k_h, (2, B, H), dtype=jnp.float32)
    c0 = 0.1 * jax.random.normal(k_c, (2, B, H), dtype=jnp.float32)
    out2, (h2, c2) = model(x, (h0, c0))
    out2, h2, c2 = jax.block_until_ready((out2, h2, c2))
    ref_out2, (ref_h2, ref_c2) = _ref_forward(model, x, (h0, c0))
    assert jnp.allclose(out2, ref_out2, atol=1e-5, rtol=1e-5)
    assert jnp.allclose(h2, ref_h2, atol=1e-5, rtol=1e-5)
    assert jnp.allclose(c2, ref_c2, atol=1e-5, rtol=1e-5)

    # --- bf16 MXU-input path (v6e/v7x feedback): looser tolerance -----------
    model_bf16 = LSTMPallas(batch_size=B, input_size=I, output_size=O,
                            dropout=0.0, lstm_num_hidden=H, lstm_num_layers=2,
                            key=k_params, mxu_dtype=jnp.bfloat16)
    out_bf, (h_bf, c_bf) = model_bf16(x)
    out_bf, h_bf, c_bf = jax.block_until_ready((out_bf, h_bf, c_bf))
    assert out_bf.shape == (T, B, O)
    assert jnp.allclose(out_bf, ref_out, atol=1e-1, rtol=1e-1)
    assert jnp.allclose(h_bf, ref_h, atol=1e-1, rtol=1e-1)
    assert jnp.allclose(c_bf, ref_c, atol=1e-1, rtol=1e-1)

    print("KERNEL_OK")
</pallas_src>

<mosaic_0001>
module attributes {stable_mosaic.version = 11 : i64} {
  func.func @kernel(%arg0: memref<16x16xf32, #tpu.memory_space<vmem>>, %arg1: memref<16x128xf32, #tpu.memory_space<vmem>>, %arg2: memref<32x128xf32, #tpu.memory_space<vmem>>, %arg3: memref<1x128xf32, #tpu.memory_space<vmem>>, %arg4: memref<32x128xf32, #tpu.memory_space<vmem>>, %arg5: memref<32x128xf32, #tpu.memory_space<vmem>>, %arg6: memref<1x128xf32, #tpu.memory_space<vmem>>, %arg7: memref<2x2x32xf32, #tpu.memory_space<vmem>>, %arg8: memref<2x2x32xf32, #tpu.memory_space<vmem>>, %arg9: memref<32x128xf32, #tpu.memory_space<vmem>>, %arg10: memref<1x128xf32, #tpu.memory_space<vmem>>, %arg11: memref<16x128xf32, #tpu.memory_space<vmem>>, %arg12: memref<2x2x32xf32, #tpu.memory_space<vmem>>, %arg13: memref<2x2x32xf32, #tpu.memory_space<vmem>>, %arg14: memref<16x32xf32, #tpu.memory_space<vmem>>, %arg15: memref<16x128xf32, #tpu.memory_space<vmem>>, %arg16: memref<2x32xf32, #tpu.memory_space<vmem>>, %arg17: memref<2x32xf32, #tpu.memory_space<vmem>>) attributes {dimension_semantics = [], scalar_prefetch = 0 : i64, scratch_operands = 4 : i64, tpu.core_type = #tpu.core_type<tc>} {
    %c0 = arith.constant 0 : index
    %c0_0 = arith.constant 0 : index
    %0 = vector.load %arg0[%c0, %c0_0] : memref<16x16xf32, #tpu.memory_space<vmem>>, vector<16x16xf32>
    %c0_1 = arith.constant 0 : index
    %c0_2 = arith.constant 0 : index
    %1 = vector.load %arg1[%c0_1, %c0_2] : memref<16x128xf32, #tpu.memory_space<vmem>>, vector<16x128xf32>
    %cst = arith.constant dense<0.000000e+00> : vector<16x128xf32>
    %2 = tpu.matmul %0, %1, %cst {dimension_numbers = #tpu.dot_dimension_numbers<[1], [0], [0], [1], [0, 0, 1, 1], [], []>} : vector<16x16xf32>, vector<16x128xf32>, vector<16x128xf32> -> vector<16x128xf32>
    %c0_3 = arith.constant 0 : index
    %c0_4 = arith.constant 0 : index
    %3 = vector.load %arg3[%c0_3, %c0_4] : memref<1x128xf32, #tpu.memory_space<vmem>>, vector<1x128xf32>
    %4 = vector.broadcast %3 : vector<1x128xf32> to vector<16x128xf32>
    %5 = arith.addf %2, %4 : vector<16x128xf32>
    %c0_5 = arith.constant 0 : index
    %c0_6 = arith.constant 0 : index
    %6 = vector.load %arg15[%c0_5, %c0_6] : memref<16x128xf32, #tpu.memory_space<vmem>>, vector<16x128xf32>
    tpu.vector_store %arg15[%c0_5, %c0_6], %5 {strides = array<i32>} : memref<16x128xf32, #tpu.memory_space<vmem>>, vector<16x128xf32>,
    %c0_7 = arith.constant 0 : index
    %c0_8 = arith.constant 0 : index
    %c0_9 = arith.constant 0 : index
    %7 = vector.load %arg7[%c0_7, %c0_8, %c0_9] : memref<2x2x32xf32, #tpu.memory_space<vmem>>, vector<1x2x32xf32>
    %8 = vector.shape_cast %7 : vector<1x2x32xf32> to vector<2x32xf32>
    %c0_10 = arith.constant 0 : index
    %c0_11 = arith.constant 0 : index
    %9 = vector.load %arg16[%c0_10, %c0_11] : memref<2x32xf32, #tpu.memory_space<vmem>>, vector<2x32xf32>
    tpu.vector_store %arg16[%c0_10, %c0_11], %8 {strides = array<i32>} : memref<2x32xf32, #tpu.memory_space<vmem>>, vector<2x32xf32>,
    %c0_12 = arith.constant 0 : index
    %c0_13 = arith.constant 0 : index
    %c0_14 = arith.constant 0 : index
    %10 = vector.load %arg8[%c0_12, %c0_13, %c0_14] : memref<2x2x32xf32, #tpu.memory_space<vmem>>, vector<1x2x32xf32>
    %11 = vector.shape_cast %10 : vector<1x2x32xf32> to vector<2x32xf32>
    %c0_15 = arith.constant 0 : index
    %c0_16 = arith.constant 0 : index
    %12 = vector.load %arg17[%c0_15, %c0_16] : memref<2x32xf32, #tpu.memory_space<vmem>>, vector<2x32xf32>
    tpu.vector_store %arg17[%c0_15, %c0_16], %11 {strides = array<i32>} : memref<2x32xf32, #tpu.memory_space<vmem>>, vector<2x32xf32>,
    %c0_i32 = arith.constant 0 : i32
    %c1_i32 = arith.constant 1 : i32
    %13 = arith.muli %c0_i32, %c1_i32 : i32
    %c0_i32_17 = arith.constant 0 : i32
    %14 = arith.addi %c0_i32_17, %13 : i32
    %c0_18 = arith.constant 0 : index
    %c0_19 = arith.constant 0 : index
    %15 = vector.load %arg16[%c0_18, %c0_19] : memref<2x32xf32, #tpu.memory_space<vmem>>, vector<2x32xf32>
    %c0_20 = arith.constant 0 : index
    %c0_21 = arith.constant 0 : index
    %16 = vector.load %arg17[%c0_20, %c0_21] : memref<2x32xf32, #tpu.memory_space<vmem>>, vector<2x32xf32>
    %c2_i32 = arith.constant 2 : i32
    %17 = arith.muli %14, %c2_i32 : i32
    %18 = arith.index_cast %17 : i32 to index
    %c0_22 = arith.constant 0 : index
    %19 = vector.load %arg15[%18, %c0_22] : memref<16x128xf32, #tpu.memory_space<vmem>>, vector<2x128xf32>
    %c0_23 = arith.constant 0 : index
    %c0_24 = arith.constant 0 : index
    %20 = vector.load %arg2[%c0_23, %c0_24] : memref<32x128xf32, #tpu.memory_space<vmem>>, vector<32x128xf32>
    %cst_25 = arith.constant dense<0.000000e+00> : vector<2x128xf32>
    %21 = tpu.matmul %15, %20, %cst_25 {dimension_numbers = #tpu.dot_dimension_numbers<[1], [0], [0], [1], [0, 0, 1, 1], [], []>} : vector<2x32xf32>, vector<32x128xf32>, vector<2x128xf32> -> vector<2x128xf32>
    %22 = arith.addf %19, %21 : vector<2x128xf32>
    %23 = arith.negf %22 : vector<2x128xf32>
    %24 = math.exp %23 : vector<2x128xf32>
    %cst_26 = arith.constant 1.000000e+00 : f32
    %25 = vector.broadcast %cst_26 : f32 to vector<2x128xf32>
    %26 = arith.addf %25, %24 : vector<2x128xf32>
    %27 = arith.divf %25, %26 : vector<2x128xf32>
    %28 = math.tanh %22 : vector<2x128xf32>
    %29 = vector.extract_strided_slice %27 {offsets = [0, 0], sizes = [2, 32], strides = [1, 1]} : vector<2x128xf32> to vector<2x32xf32>
    %30 = vector.extract_strided_slice %27 {offsets = [0, 32], sizes = [2, 32], strides = [1, 1]} : vector<2x128xf32> to vector<2x32xf32>
    %31 = vector.extract_strided_slice %28 {offsets = [0, 64], sizes = [2, 32], strides = [1, 1]} : vector<2x128xf32> to vector<2x32xf32>
    %32 = vector.extract_strided_slice %27 {offsets = [0, 96], sizes = [2, 32], strides = [1, 1]} : vector<2x128xf32> to vector<2x32xf32>
    %33 = arith.mulf %30, %16 : vector<2x32xf32>
    %34 = arith.mulf %29, %31 : vector<2x32xf32>
    %35 = arith.addf %33, %34 : vector<2x32xf32>
    %36 = math.tanh %35 : vector<2x32xf32>
    %37 = arith.mulf %32, %36 : vector<2x32xf32>
    %c0_27 = arith.constant 0 : index
    %c0_28 = arith.constant 0 : index
    %38 = vector.load %arg16[%c0_27, %c0_28] : memref<2x32xf32, #tpu.memory_space<vmem>>, vector<2x32xf32>
    tpu.vector_store %arg16[%c0_27, %c0_28], %37 {strides = array<i32>} : memref<2x32xf32, #tpu.memory_space<vmem>>, vector<2x32xf32>,
    %c0_29 = arith.constant 0 : index
    %c0_30 = arith.constant 0 : index
    %39 = vector.load %arg17[%c0_29, %c0_30] : memref<2x32xf32, #tpu.memory_space<vmem>>, vector<2x32xf32>
    tpu.vector_store %arg17[%c0_29, %c0_30], %35 {strides = array<i32>} : memref<2x32xf32, #tpu.memory_space<vmem>>, vector<2x32xf32>,
    %c2_i32_31 = arith.constant 2 : i32
    %40 = arith.muli %14, %c2_i32_31 : i32
    %41 = arith.index_cast %40 : i32 to index
    %c0_32 = arith.constant 0 : index
    %42 = vector.load %arg14[%41, %c0_32] : memref<16x32xf32, #tpu.memory_space<vmem>>, vector<2x32xf32>
    tpu.vector_store %arg14[%41, %c0_32], %37 {strides = array<i32>} : memref<16x32xf32, #tpu.memory_space<vmem>>, vector<2x32xf32>,
    %c1_i32_33 = arith.constant 1 : i32
    %c1_i32_34 = arith.constant 1 : i32
    %43 = arith.muli %c1_i32_33, %c1_i32_34 : i32
    %c0_i32_35 = arith.constant 0 : i32
    %44 = arith.addi %c0_i32_35, %43 : i32
    %c0_36 = arith.constant 0 : index
    %c0_37 = arith.constant 0 : index
    %45 = vector.load %arg16[%c0_36, %c0_37] : memref<2x32xf32, #tpu.memory_space<vmem>>, vector<2x32xf32>
    %c0_38 = arith.constant 0 : index
    %c0_39 = arith.constant 0 : index
    %46 = vector.load %arg17[%c0_38, %c0_39] : memref<2x32xf32, #tpu.memory_space<vmem>>, vector<2x32xf32>
    %c2_i32_40 = arith.constant 2 : i32
    %47 = arith.muli %44, %c2_i32_40 : i32
    %48 = arith.index_cast %47 : i32 to index
    %c0_41 = arith.constant 0 : index
    %49 = vector.load %arg15[%48, %c0_41] : memref<16x128xf32, #tpu.memory_space<vmem>>, vector<2x128xf32>
    %c0_42 = arith.constant 0 : index
    %c0_43 = arith.constant 0 : index
    %50 = vector.load %arg2[%c0_42, %c0_43] : memref<32x128xf32, #tpu.memory_space<vmem>>, vector<32x128xf32>
    %cst_44 = arith.constant dense<0.000000e+00> : vector<2x128xf32>
    %51 = tpu.matmul %45, %50, %cst_44 {dimension_numbers = #tpu.dot_dimension_numbers<[1], [0], [0], [1], [0, 0, 1, 1], [], []>} : vector<2x32xf32>, vector<32x128xf32>, vector<2x128xf32> -> vector<2x128xf32>
    %52 = arith.addf %49, %51 : vector<2x128xf32>
    %53 = arith.negf %52 : vector<2x128xf32>
    %54 = math.exp %53 : vector<2x128xf32>
    %cst_45 = arith.constant 1.000000e+00 : f32
    %55 = vector.broadcast %cst_45 : f32 to vector<2x128xf32>
    %56 = arith.addf %55, %54 : vector<2x128xf32>
    %57 = arith.divf %55, %56 : vector<2x128xf32>
    %58 = math.tanh %52 : vector<2x128xf32>
    %59 = vector.extract_strided_slice %57 {offsets = [0, 0], sizes = [2, 32], strides = [1, 1]} : vector<2x128xf32> to vector<2x32xf32>
    %60 = vector.extract_strided_slice %57 {offsets = [0, 32], sizes = [2, 32], strides = [1, 1]} : vector<2x128xf32> to vector<2x32xf32>
    %61 = vector.extract_strided_slice %58 {offsets = [0, 64], sizes = [2, 32], strides = [1, 1]} : vector<2x128xf32> to vector<2x32xf32>
    %62 = vector.extract_strided_slice %57 {offsets = [0, 96], sizes = [2, 32], strides = [1, 1]} : vector<2x128xf32> to vector<2x32xf32>
    %63 = arith.mulf %60, %46 : vector<2x32xf32>
    %64 = arith.mulf %59, %61 : vector<2x32xf32>
    %65 = arith.addf %63, %64 : vector<2x32xf32>
    %66 = math.tanh %65 : vector<2x32xf32>
    %67 = arith.mulf %62, %66 : vector<2x32xf32>
    %c0_46 = arith.constant 0 : index
    %c0_47 = arith.constant 0 : index
    %68 = vector.load %arg16[%c0_46, %c0_47] : memref<2x32xf32, #tpu.memory_space<vmem>>, vector<2x32xf32>
    tpu.vector_store %arg16[%c0_46, %c0_47], %67 {strides = array<i32>} : memref<2x32xf32, #tpu.memory_space<vmem>>, vector<2x32xf32>,
    %c0_48 = arith.constant 0 : index
    %c0_49 = arith.constant 0 : index
    %69 = vector.load %arg17[%c0_48, %c0_49] : memref<2x32xf32, #tpu.memory_space<vmem>>, vector<2x32xf32>
    tpu.vector_store %arg17[%c0_48, %c0_49], %65 {strides = array<i32>} : memref<2x32xf32, #tpu.memory_space<vmem>>, vector<2x32xf32>,
    %c2_i32_50 = arith.constant 2 : i32
    %70 = arith.muli %44, %c2_i32_50 : i32
    %71 = arith.index_cast %70 : i32 to index
    %c0_51 = arith.constant 0 : index
    %72 = vector.load %arg14[%71, %c0_51] : memref<16x32xf32, #tpu.memory_space<vmem>>, vector<2x32xf32>
    tpu.vector_store %arg14[%71, %c0_51], %67 {strides = array<i32>} : memref<16x32xf32, #tpu.memory_space<vmem>>, vector<2x32xf32>,
    %c2_i32_52 = arith.constant 2 : i32
    %c1_i32_53 = arith.constant 1 : i32
    %73 = arith.muli %c2_i32_52, %c1_i32_53 : i32
    %c0_i32_54 = arith.constant 0 : i32
    %74 = arith.addi %c0_i32_54, %73 : i32
    %c0_55 = arith.constant 0 : index
    %c0_56 = arith.constant 0 : index
    %75 = vector.load %arg16[%c0_55, %c0_56] : memref<2x32xf32, #tpu.memory_space<vmem>>, vector<2x32xf32>
    %c0_57 = arith.constant 0 : index
    %c0_58 = arith.constant 0 : index
    %76 = vector.load %arg17[%c0_57, %c0_58] : memref<2x32xf32, #tpu.memory_space<vmem>>, vector<2x32xf32>
    %c2_i32_59 = arith.constant 2 : i32
    %77 = arith.muli %74, %c2_i32_59 : i32
    %78 = arith.index_cast %77 : i32 to index
    %c0_60 = arith.constant 0 : index
    %79 = vector.load %arg15[%78, %c0_60] : memref<16x128xf32, #tpu.memory_space<vmem>>, vector<2x128xf32>
    %c0_61 = arith.constant 0 : index
    %c0_62 = arith.constant 0 : index
    %80 = vector.load %arg2[%c0_61, %c0_62] : memref<32x128xf32, #tpu.memory_space<vmem>>, vector<32x128xf32>
    %cst_63 = arith.constant dense<0.000000e+00> : vector<2x128xf32>
    %81 = tpu.matmul %75, %80, %cst_63 {dimension_numbers = #tpu.dot_dimension_numbers<[1], [0], [0], [1], [0, 0, 1, 1], [], []>} : vector<2x32xf32>, vector<32x128xf32>, vector<2x128xf32> -> vector<2x128xf32>
    %82 = arith.addf %79, %81 : vector<2x128xf32>
    %83 = arith.negf %82 : vector<2x128xf32>
    %84 = math.exp %83 : vector<2x128xf32>
    %cst_64 = arith.constant 1.000000e+00 : f32
    %85 = vector.broadcast %cst_64 : f32 to vector<2x128xf32>
    %86 = arith.addf %85, %84 : vector<2x128xf32>
    %87 = arith.divf %85, %86 : vector<2x128xf32>
    %88 = math.tanh %82 : vector<2x128xf32>
    %89 = vector.extract_strided_slice %87 {offsets = [0, 0], sizes = [2, 32], strides = [1, 1]} : vector<2x128xf32> to vector<2x32xf32>
    %90 = vector.extract_strided_slice %87 {offsets = [0, 32], sizes = [2, 32], strides = [1, 1]} : vector<2x128xf32> to vector<2x32xf32>
    %91 = vector.extract_strided_slice %88 {offsets = [0, 64], sizes = [2, 32], strides = [1, 1]} : vector<2x128xf32> to vector<2x32xf32>
    %92 = vector.extract_strided_slice %87 {offsets = [0, 96], sizes = [2, 32], strides = [1, 1]} : vector<2x128xf32> to vector<2x32xf32>
    %93 = arith.mulf %90, %76 : vector<2x32xf32>
    %94 = arith.mulf %89, %91 : vector<2x32xf32>
    %95 = arith.addf %93, %94 : vector<2x32xf32>
    %96 = math.tanh %95 : vector<2x32xf32>
    %97 = arith.mulf %92, %96 : vector<2x32xf32>
    %c0_65 = arith.constant 0 : index
    %c0_66 = arith.constant 0 : index
    %98 = vector.load %arg16[%c0_65, %c0_66] : memref<2x32xf32, #tpu.memory_space<vmem>>, vector<2x32xf32>
    tpu.vector_store %arg16[%c0_65, %c0_66], %97 {strides = array<i32>} : memref<2x32xf32, #tpu.memory_space<vmem>>, vector<2x32xf32>,
    %c0_67 = arith.constant 0 : index
    %c0_68 = arith.constant 0 : index
    %99 = vector.load %arg17[%c0_67, %c0_68] : memref<2x32xf32, #tpu.memory_space<vmem>>, vector<2x32xf32>
    tpu.vector_store %arg17[%c0_67, %c0_68], %95 {strides = array<i32>} : memref<2x32xf32, #tpu.memory_space<vmem>>, vector<2x32xf32>,
    %c2_i32_69 = arith.constant 2 : i32
    %100 = arith.muli %74, %c2_i32_69 : i32
    %101 = arith.index_cast %100 : i32 to index
    %c0_70 = arith.constant 0 : index
    %102 = vector.load %arg14[%101, %c0_70] : memref<16x32xf32, #tpu.memory_space<vmem>>, vector<2x32xf32>
    tpu.vector_store %arg14[%101, %c0_70], %97 {strides = array<i32>} : memref<16x32xf32, #tpu.memory_space<vmem>>, vector<2x32xf32>,
    %c3_i32 = arith.constant 3 : i32
    %c1_i32_71 = arith.constant 1 : i32
    %103 = arith.muli %c3_i32, %c1_i32_71 : i32
    %c0_i32_72 = arith.constant 0 : i32
    %104 = arith.addi %c0_i32_72, %103 : i32
    %c0_73 = arith.constant 0 : index
    %c0_74 = arith.constant 0 : index
    %105 = vector.load %arg16[%c0_73, %c0_74] : memref<2x32xf32, #tpu.memory_space<vmem>>, vector<2x32xf32>
    %c0_75 = arith.constant 0 : index
    %c0_76 = arith.constant 0 : index
    %106 = vector.load %arg17[%c0_75, %c0_76] : memref<2x32xf32, #tpu.memory_space<vmem>>, vector<2x32xf32>
    %c2_i32_77 = arith.constant 2 : i32
    %107 = arith.muli %104, %c2_i32_77 : i32
    %108 = arith.index_cast %107 : i32 to index
    %c0_78 = arith.constant 0 : index
    %109 = vector.load %arg15[%108, %c0_78] : memref<16x128xf32, #tpu.memory_space<vmem>>, vector<2x128xf32>
    %c0_79 = arith.constant 0 : index
    %c0_80 = arith.constant 0 : index
    %110 = vector.load %arg2[%c0_79, %c0_80] : memref<32x128xf32, #tpu.memory_space<vmem>>, vector<32x128xf32>
    %cst_81 = arith.constant dense<0.000000e+00> : vector<2x128xf32>
    %111 = tpu.matmul %105, %110, %cst_81 {dimension_numbers = #tpu.dot_dimension_numbers<[1], [0], [0], [1], [0, 0, 1, 1], [], []>} : vector<2x32xf32>, vector<32x128xf32>, vector<2x128xf32> -> vector<2x128xf32>
    %112 = arith.addf %109, %111 : vector<2x128xf32>
    %113 = arith.negf %112 : vector<2x128xf32>
    %114 = math.exp %113 : vector<2x128xf32>
    %cst_82 = arith.constant 1.000000e+00 : f32
    %115 = vector.broadcast %cst_82 : f32 to vector<2x128xf32>
    %116 = arith.addf %115, %114 : vector<2x128xf32>
    %117 = arith.divf %115, %116 : vector<2x128xf32>
    %118 = math.tanh %112 : vector<2x128xf32>
    %119 = vector.extract_strided_slice %117 {offsets = [0, 0], sizes = [2, 32], strides = [1, 1]} : vector<2x128xf32> to vector<2x32xf32>
    %120 = vector.extract_strided_slice %117 {offsets = [0, 32], sizes = [2, 32], strides = [1, 1]} : vector<2x128xf32> to vector<2x32xf32>
    %121 = vector.extract_strided_slice %118 {offsets = [0, 64], sizes = [2, 32], strides = [1, 1]} : vector<2x128xf32> to vector<2x32xf32>
    %122 = vector.extract_strided_slice %117 {offsets = [0, 96], sizes = [2, 32], strides = [1, 1]} : vector<2x128xf32> to vector<2x32xf32>
    %123 = arith.mulf %120, %106 : vector<2x32xf32>
    %124 = arith.mulf %119, %121 : vector<2x32xf32>
    %125 = arith.addf %123, %124 : vector<2x32xf32>
    %126 = math.tanh %125 : vector<2x32xf32>
    %127 = arith.mulf %122, %126 : vector<2x32xf32>
    %c0_83 = arith.constant 0 : index
    %c0_84 = arith.constant 0 : index
    %128 = vector.load %arg16[%c0_83, %c0_84] : memref<2x32xf32, #tpu.memory_space<vmem>>, vector<2x32xf32>
    tpu.vector_store %arg16[%c0_83, %c0_84], %127 {strides = array<i32>} : memref<2x32xf32, #tpu.memory_space<vmem>>, vector<2x32xf32>,
    %c0_85 = arith.constant 0 : index
    %c0_86 = arith.constant 0 : index
    %129 = vector.load %arg17[%c0_85, %c0_86] : memref<2x32xf32, #tpu.memory_space<vmem>>, vector<2x32xf32>
    tpu.vector_store %arg17[%c0_85, %c0_86], %125 {strides = array<i32>} : memref<2x32xf32, #tpu.memory_space<vmem>>, vector<2x32xf32>,
    %c2_i32_87 = arith.constant 2 : i32
    %130 = arith.muli %104, %c2_i32_87 : i32
    %131 = arith.index_cast %130 : i32 to index
    %c0_88 = arith.constant 0 : index
    %132 = vector.load %arg14[%131, %c0_88] : memref<16x32xf32, #tpu.memory_space<vmem>>, vector<2x32xf32>
    tpu.vector_store %arg14[%131, %c0_88], %127 {strides = array<i32>} : memref<16x32xf32, #tpu.memory_space<vmem>>, vector<2x32xf32>,
    %c4_i32 = arith.constant 4 : i32
    %c1_i32_89 = arith.constant 1 : i32
    %133 = arith.muli %c4_i32, %c1_i32_89 : i32
    %c0_i32_90 = arith.constant 0 : i32
    %134 = arith.addi %c0_i32_90, %133 : i32
    %c0_91 = arith.constant 0 : index
    %c0_92 = arith.constant 0 : index
    %135 = vector.load %arg16[%c0_91, %c0_92] : memref<2x32xf32, #tpu.memory_space<vmem>>, vector<2x32xf32>
    %c0_93 = arith.constant 0 : index
    %c0_94 = arith.constant 0 : index
    %136 = vector.load %arg17[%c0_93, %c0_94] : memref<2x32xf32, #tpu.memory_space<vmem>>, vector<2x32xf32>
    %c2_i32_95 = arith.constant 2 : i32
    %137 = arith.muli %134, %c2_i32_95 : i32
    %138 = arith.index_cast %137 : i32 to index
    %c0_96 = arith.constant 0 : index
    %139 = vector.load %arg15[%138, %c0_96] : memref<16x128xf32, #tpu.memory_space<vmem>>, vector<2x128xf32>
    %c0_97 = arith.constant 0 : index
    %c0_98 = arith.constant 0 : index
    %140 = vector.load %arg2[%c0_97, %c0_98] : memref<32x128xf32, #tpu.memory_space<vmem>>, vector<32x128xf32>
    %cst_99 = arith.constant dense<0.000000e+00> : vector<2x128xf32>
    %141 = tpu.matmul %135, %140, %cst_99 {dimension_numbers = #tpu.dot_dimension_numbers<[1], [0], [0], [1], [0, 0, 1, 1], [], []>} : vector<2x32xf32>, vector<32x128xf32>, vector<2x128xf32> -> vector<2x128xf32>
    %142 = arith.addf %139, %141 : vector<2x128xf32>
    %143 = arith.negf %142 : vector<2x128xf32>
    %144 = math.exp %143 : vector<2x128xf32>
    %cst_100 = arith.constant 1.000000e+00 : f32
    %145 = vector.broadcast %cst_100 : f32 to vector<2x128xf32>
    %146 = arith.addf %145, %144 : vector<2x128xf32>
    %147 = arith.divf %145, %146 : vector<2x128xf32>
    %148 = math.tanh %142 : vector<2x128xf32>
    %149 = vector.extract_strided_slice %147 {offsets = [0, 0], sizes = [2, 32], strides = [1, 1]} : vector<2x128xf32> to vector<2x32xf32>
    %150 = vector.extract_strided_slice %147 {offsets = [0, 32], sizes = [2, 32], strides = [1, 1]} : vector<2x128xf32> to vector<2x32xf32>
    %151 = vector.extract_strided_slice %148 {offsets = [0, 64], sizes = [2, 32], strides = [1, 1]} : vector<2x128xf32> to vector<2x32xf32>
    %152 = vector.extract_strided_slice %147 {offsets = [0, 96], sizes = [2, 32], strides = [1, 1]} : vector<2x128xf32> to vector<2x32xf32>
    %153 = arith.mulf %150, %136 : vector<2x32xf32>
    %154 = arith.mulf %149, %151 : vector<2x32xf32>
    %155 = arith.addf %153, %154 : vector<2x32xf32>
    %156 = math.tanh %155 : vector<2x32xf32>
    %157 = arith.mulf %152, %156 : vector<2x32xf32>
    %c0_101 = arith.constant 0 : index
    %c0_102 = arith.constant 0 : index
    %158 = vector.load %arg16[%c0_101, %c0_102] : memref<2x32xf32, #tpu.memory_space<vmem>>, vector<2x32xf32>
    tpu.vector_store %arg16[%c0_101, %c0_102], %157 {strides = array<i32>} : memref<2x32xf32, #tpu.memory_space<vmem>>, vector<2x32xf32>,
    %c0_103 = arith.constant 0 : index
    %c0_104 = arith.constant 0 : index
    %159 = vector.load %arg17[%c0_103, %c0_104] : memref<2x32xf32, #tpu.memory_space<vmem>>, vector<2x32xf32>
    tpu.vector_store %arg17[%c0_103, %c0_104], %155 {strides = array<i32>} : memref<2x32xf32, #tpu.memory_space<vmem>>, vector<2x32xf32>,
    %c2_i32_105 = arith.constant 2 : i32
    %160 = arith.muli %134, %c2_i32_105 : i32
    %161 = arith.index_cast %160 : i32 to index
    %c0_106 = arith.constant 0 : index
    %162 = vector.load %arg14[%161, %c0_106] : memref<16x32xf32, #tpu.memory_space<vmem>>, vector<2x32xf32>
    tpu.vector_store %arg14[%161, %c0_106], %157 {strides = array<i32>} : memref<16x32xf32, #tpu.memory_space<vmem>>, vector<2x32xf32>,
    %c5_i32 = arith.constant 5 : i32
    %c1_i32_107 = arith.constant 1 : i32
    %163 = arith.muli %c5_i32, %c1_i32_107 : i32
    %c0_i32_108 = arith.constant 0 : i32
    %164 = arith.addi %c0_i32_108, %163 : i32
    %c0_109 = arith.constant 0 : index
    %c0_110 = arith.constant 0 : index
    %165 = vector.load %arg16[%c0_109, %c0_110] : memref<2x32xf32, #tpu.memory_space<vmem>>, vector<2x32xf32>
    %c0_111 = arith.constant 0 : index
    %c0_112 = arith.constant 0 : index
    %166 = vector.load %arg17[%c0_111, %c0_112] : memref<2x32xf32, #tpu.memory_space<vmem>>, vector<2x32xf32>
    %c2_i32_113 = arith.constant 2 : i32
    %167 = arith.muli %164, %c2_i32_113 : i32
    %168 = arith.index_cast %167 : i32 to index
    %c0_114 = arith.constant 0 : index
    %169 = vector.load %arg15[%168, %c0_114] : memref<16x128xf32, #tpu.memory_space<vmem>>, vector<2x128xf32>
    %c0_115 = arith.constant 0 : index
    %c0_116 = arith.constant 0 : index
    %170 = vector.load %arg2[%c0_115, %c0_116] : memref<32x128xf32, #tpu.memory_space<vmem>>, vector<32x128xf32>
    %cst_117 = arith.constant dense<0.000000e+00> : vector<2x128xf32>
    %171 = tpu.matmul %165, %170, %cst_117 {dimension_numbers = #tpu.dot_dimension_numbers<[1], [0], [0], [1], [0, 0, 1, 1], [], []>} : vector<2x32xf32>, vector<32x128xf32>, vector<2x128xf32> -> vector<2x128xf32>
    %172 = arith.addf %169, %171 : vector<2x128xf32>
    %173 = arith.negf %172 : vector<2x128xf32>
    %174 = math.exp %173 : vector<2x128xf32>
    %cst_118 = arith.constant 1.000000e+00 : f32
    %175 = vector.broadcast %cst_118 : f32 to vector<2x128xf32>
    %176 = arith.addf %175, %174 : vector<2x128xf32>
    %177 = arith.divf %175, %176 : vector<2x128xf32>
    %178 = math.tanh %172 : vector<2x128xf32>
    %179 = vector.extract_strided_slice %177 {offsets = [0, 0], sizes = [2, 32], strides = [1, 1]} : vector<2x128xf32> to vector<2x32xf32>
    %180 = vector.extract_strided_slice %177 {offsets = [0, 32], sizes = [2, 32], strides = [1, 1]} : vector<2x128xf32> to vector<2x32xf32>
    %181 = vector.extract_strided_slice %178 {offsets = [0, 64], sizes = [2, 32], strides = [1, 1]} : vector<2x128xf32> to vector<2x32xf32>
    %182 = vector.extract_strided_slice %177 {offsets = [0, 96], sizes = [2, 32], strides = [1, 1]} : vector<2x128xf32> to vector<2x32xf32>
    %183 = arith.mulf %180, %166 : vector<2x32xf32>
    %184 = arith.mulf %179, %181 : vector<2x32xf32>
    %185 = arith.addf %183, %184 : vector<2x32xf32>
    %186 = math.tanh %185 : vector<2x32xf32>
    %187 = arith.mulf %182, %186 : vector<2x32xf32>
    %c0_119 = arith.constant 0 : index
    %c0_120 = arith.constant 0 : index
    %188 = vector.load %arg16[%c0_119, %c0_120] : memref<2x32xf32, #tpu.memory_space<vmem>>, vector<2x32xf32>
    tpu.vector_store %arg16[%c0_119, %c0_120], %187 {strides = array<i32>} : memref<2x32xf32, #tpu.memory_space<vmem>>, vector<2x32xf32>,
    %c0_121 = arith.constant 0 : index
    %c0_122 = arith.constant 0 : index
    %189 = vector.load %arg17[%c0_121, %c0_122] : memref<2x32xf32, #tpu.memory_space<vmem>>, vector<2x32xf32>
    tpu.vector_store %arg17[%c0_121, %c0_122], %185 {strides = array<i32>} : memref<2x32xf32, #tpu.memory_space<vmem>>, vector<2x32xf32>,
    %c2_i32_123 = arith.constant 2 : i32
    %190 = arith.muli %164, %c2_i32_123 : i32
    %191 = arith.index_cast %190 : i32 to index
    %c0_124 = arith.constant 0 : index
    %192 = vector.load %arg14[%191, %c0_124] : memref<16x32xf32, #tpu.memory_space<vmem>>, vector<2x32xf32>
    tpu.vector_store %arg14[%191, %c0_124], %187 {strides = array<i32>} : memref<16x32xf32, #tpu.memory_space<vmem>>, vector<2x32xf32>,
    %c6_i32 = arith.constant 6 : i32
    %c1_i32_125 = arith.constant 1 : i32
    %193 = arith.muli %c6_i32, %c1_i32_125 : i32
    %c0_i32_126 = arith.constant 0 : i32
    %194 = arith.addi %c0_i32_126, %193 : i32
    %c0_127 = arith.constant 0 : index
    %c0_128 = arith.constant 0 : index
    %195 = vector.load %arg16[%c0_127, %c0_128] : memref<2x32xf32, #tpu.memory_space<vmem>>, vector<2x32xf32>
    %c0_129 = arith.constant 0 : index
    %c0_130 = arith.constant 0 : index
    %196 = vector.load %arg17[%c0_129, %c0_130] : memref<2x32xf32, #tpu.memory_space<vmem>>, vector<2x32xf32>
    %c2_i32_131 = arith.constant 2 : i32
    %197 = arith.muli %194, %c2_i32_131 : i32
    %198 = arith.index_cast %197 : i32 to index
    %c0_132 = arith.constant 0 : index
    %199 = vector.load %arg15[%198, %c0_132] : memref<16x128xf32, #tpu.memory_space<vmem>>, vector<2x128xf32>
    %c0_133 = arith.constant 0 : index
    %c0_134 = arith.constant 0 : index
    %200 = vector.load %arg2[%c0_133, %c0_134] : memref<32x128xf32, #tpu.memory_space<vmem>>, vector<32x128xf32>
    %cst_135 = arith.constant dense<0.000000e+00> : vector<2x128xf32>
    %201 = tpu.matmul %195, %200, %cst_135 {dimension_numbers = #tpu.dot_dimension_numbers<[1], [0], [0], [1], [0, 0, 1, 1], [], []>} : vector<2x32xf32>, vector<32x128xf32>, vector<2x128xf32> -> vector<2x128xf32>
    %202 = arith.addf %199, %201 : vector<2x128xf32>
    %203 = arith.negf %202 : vector<2x128xf32>
    %204 = math.exp %203 : vector<2x128xf32>
    %cst_136 = arith.constant 1.000000e+00 : f32
    %205 = vector.broadcast %cst_136 : f32 to vector<2x128xf32>
    %206 = arith.addf %205, %204 : vector<2x128xf32>
    %207 = arith.divf %205, %206 : vector<2x128xf32>
    %208 = math.tanh %202 : vector<2x128xf32>
    %209 = vector.extract_strided_slice %207 {offsets = [0, 0], sizes = [2, 32], strides = [1, 1]} : vector<2x128xf32> to vector<2x32xf32>
    %210 = vector.extract_strided_slice %207 {offsets = [0, 32], sizes = [2, 32], strides = [1, 1]} : vector<2x128xf32> to vector<2x32xf32>
    %211 = vector.extract_strided_slice %208 {offsets = [0, 64], sizes = [2, 32], strides = [1, 1]} : vector<2x128xf32> to vector<2x32xf32>
    %212 = vector.extract_strided_slice %207 {offsets = [0, 96], sizes = [2, 32], strides = [1, 1]} : vector<2x128xf32> to vector<2x32xf32>
    %213 = arith.mulf %210, %196 : vector<2x32xf32>
    %214 = arith.mulf %209, %211 : vector<2x32xf32>
    %215 = arith.addf %213, %214 : vector<2x32xf32>
    %216 = math.tanh %215 : vector<2x32xf32>
    %217 = arith.mulf %212, %216 : vector<2x32xf32>
    %c0_137 = arith.constant 0 : index
    %c0_138 = arith.constant 0 : index
    %218 = vector.load %arg16[%c0_137, %c0_138] : memref<2x32xf32, #tpu.memory_space<vmem>>, vector<2x32xf32>
    tpu.vector_store %arg16[%c0_137, %c0_138], %217 {strides = array<i32>} : memref<2x32xf32, #tpu.memory_space<vmem>>, vector<2x32xf32>,
    %c0_139 = arith.constant 0 : index
    %c0_140 = arith.constant 0 : index
    %219 = vector.load %arg17[%c0_139, %c0_140] : memref<2x32xf32, #tpu.memory_space<vmem>>, vector<2x32xf32>
    tpu.vector_store %arg17[%c0_139, %c0_140], %215 {strides = array<i32>} : memref<2x32xf32, #tpu.memory_space<vmem>>, vector<2x32xf32>,
    %c2_i32_141 = arith.constant 2 : i32
    %220 = arith.muli %194, %c2_i32_141 : i32
    %221 = arith.index_cast %220 : i32 to index
    %c0_142 = arith.constant 0 : index
    %222 = vector.load %arg14[%221, %c0_142] : memref<16x32xf32, #tpu.memory_space<vmem>>, vector<2x32xf32>
    tpu.vector_store %arg14[%221, %c0_142], %217 {strides = array<i32>} : memref<16x32xf32, #tpu.memory_space<vmem>>, vector<2x32xf32>,
    %c7_i32 = arith.constant 7 : i32
    %c1_i32_143 = arith.constant 1 : i32
    %223 = arith.muli %c7_i32, %c1_i32_143 : i32
    %c0_i32_144 = arith.constant 0 : i32
    %224 = arith.addi %c0_i32_144, %223 : i32
    %c0_145 = arith.constant 0 : index
    %c0_146 = arith.constant 0 : index
    %225 = vector.load %arg16[%c0_145, %c0_146] : memref<2x32xf32, #tpu.memory_space<vmem>>, vector<2x32xf32>
    %c0_147 = arith.constant 0 : index
    %c0_148 = arith.constant 0 : index
    %226 = vector.load %arg17[%c0_147, %c0_148] : memref<2x32xf32, #tpu.memory_space<vmem>>, vector<2x32xf32>
    %c2_i32_149 = arith.constant 2 : i32
    %227 = arith.muli %224, %c2_i32_149 : i32
    %228 = arith.index_cast %227 : i32 to index
    %c0_150 = arith.constant 0 : index
    %229 = vector.load %arg15[%228, %c0_150] : memref<16x128xf32, #tpu.memory_space<vmem>>, vector<2x128xf32>
    %c0_151 = arith.constant 0 : index
    %c0_152 = arith.constant 0 : index
    %230 = vector.load %arg2[%c0_151, %c0_152] : memref<32x128xf32, #tpu.memory_space<vmem>>, vector<32x128xf32>
    %cst_153 = arith.constant dense<0.000000e+00> : vector<2x128xf32>
    %231 = tpu.matmul %225, %230, %cst_153 {dimension_numbers = #tpu.dot_dimension_numbers<[1], [0], [0], [1], [0, 0, 1, 1], [], []>} : vector<2x32xf32>, vector<32x128xf32>, vector<2x128xf32> -> vector<2x128xf32>
    %232 = arith.addf %229, %231 : vector<2x128xf32>
    %233 = arith.negf %232 : vector<2x128xf32>
    %234 = math.exp %233 : vector<2x128xf32>
    %cst_154 = arith.constant 1.000000e+00 : f32
    %235 = vector.broadcast %cst_154 : f32 to vector<2x128xf32>
    %236 = arith.addf %235, %234 : vector<2x128xf32>
    %237 = arith.divf %235, %236 : vector<2x128xf32>
    %238 = math.tanh %232 : vector<2x128xf32>
    %239 = vector.extract_strided_slice %237 {offsets = [0, 0], sizes = [2, 32], strides = [1, 1]} : vector<2x128xf32> to vector<2x32xf32>
    %240 = vector.extract_strided_slice %237 {offsets = [0, 32], sizes = [2, 32], strides = [1, 1]} : vector<2x128xf32> to vector<2x32xf32>
    %241 = vector.extract_strided_slice %238 {offsets = [0, 64], sizes = [2, 32], strides = [1, 1]} : vector<2x128xf32> to vector<2x32xf32>
    %242 = vector.extract_strided_slice %237 {offsets = [0, 96], sizes = [2, 32], strides = [1, 1]} : vector<2x128xf32> to vector<2x32xf32>
    %243 = arith.mulf %240, %226 : vector<2x32xf32>
    %244 = arith.mulf %239, %241 : vector<2x32xf32>
    %245 = arith.addf %243, %244 : vector<2x32xf32>
    %246 = math.tanh %245 : vector<2x32xf32>
    %247 = arith.mulf %242, %246 : vector<2x32xf32>
    %c0_155 = arith.constant 0 : index
    %c0_156 = arith.constant 0 : index
    %248 = vector.load %arg16[%c0_155, %c0_156] : memref<2x32xf32, #tpu.memory_space<vmem>>, vector<2x32xf32>
    tpu.vector_store %arg16[%c0_155, %c0_156], %247 {strides = array<i32>} : memref<2x32xf32, #tpu.memory_space<vmem>>, vector<2x32xf32>,
    %c0_157 = arith.constant 0 : index
    %c0_158 = arith.constant 0 : index
    %249 = vector.load %arg17[%c0_157, %c0_158] : memref<2x32xf32, #tpu.memory_space<vmem>>, vector<2x32xf32>
    tpu.vector_store %arg17[%c0_157, %c0_158], %245 {strides = array<i32>} : memref<2x32xf32, #tpu.memory_space<vmem>>, vector<2x32xf32>,
    %c2_i32_159 = arith.constant 2 : i32
    %250 = arith.muli %224, %c2_i32_159 : i32
    %251 = arith.index_cast %250 : i32 to index
    %c0_160 = arith.constant 0 : index
    %252 = vector.load %arg14[%251, %c0_160] : memref<16x32xf32, #tpu.memory_space<vmem>>, vector<2x32xf32>
    tpu.vector_store %arg14[%251, %c0_160], %247 {strides = array<i32>} : memref<16x32xf32, #tpu.memory_space<vmem>>, vector<2x32xf32>,
    %c8_i32 = arith.constant 8 : i32
    %c0_161 = arith.constant 0 : index
    %c0_162 = arith.constant 0 : index
    %253 = vector.load %arg16[%c0_161, %c0_162] : memref<2x32xf32, #tpu.memory_space<vmem>>, vector<2x32xf32>
    %c0_163 = arith.constant 0 : index
    %c0_164 = arith.constant 0 : index
    %c0_165 = arith.constant 0 : index
    %254 = vector.load %arg12[%c0_163, %c0_164, %c0_165] : memref<2x2x32xf32, #tpu.memory_space<vmem>>, vector<1x2x32xf32>
    %255 = vector.shape_cast %254 : vector<1x2x32xf32> to vector<2x32xf32>
    %256 = vector.shape_cast %253 : vector<2x32xf32> to vector<1x2x32xf32>
    tpu.vector_store %arg12[%c0_163, %c0_164, %c0_165], %256 {strides = array<i32>} : memref<2x2x32xf32, #tpu.memory_space<vmem>>, vector<1x2x32xf32>,
    %c0_166 = arith.constant 0 : index
    %c0_167 = arith.constant 0 : index
    %257 = vector.load %arg17[%c0_166, %c0_167] : memref<2x32xf32, #tpu.memory_space<vmem>>, vector<2x32xf32>
    %c0_168 = arith.constant 0 : index
    %c0_169 = arith.constant 0 : index
    %c0_170 = arith.constant 0 : index
    %258 = vector.load %arg13[%c0_168, %c0_169, %c0_170] : memref<2x2x32xf32, #tpu.memory_space<vmem>>, vector<1x2x32xf32>
    %259 = vector.shape_cast %258 : vector<1x2x32xf32> to vector<2x32xf32>
    %260 = vector.shape_cast %257 : vector<2x32xf32> to vector<1x2x32xf32>
    tpu.vector_store %arg13[%c0_168, %c0_169, %c0_170], %260 {strides = array<i32>} : memref<2x2x32xf32, #tpu.memory_space<vmem>>, vector<1x2x32xf32>,
    %c0_171 = arith.constant 0 : index
    %c0_172 = arith.constant 0 : index
    %261 = vector.load %arg14[%c0_171, %c0_172] : memref<16x32xf32, #tpu.memory_space<vmem>>, vector<16x32xf32>
    %c0_173 = arith.constant 0 : index
    %c0_174 = arith.constant 0 : index
    %262 = vector.load %arg4[%c0_173, %c0_174] : memref<32x128xf32, #tpu.memory_space<vmem>>, vector<32x128xf32>
    %cst_175 = arith.constant dense<0.000000e+00> : vector<16x128xf32>
    %263 = tpu.matmul %261, %262, %cst_175 {dimension_numbers = #tpu.dot_dimension_numbers<[1], [0], [0], [1], [0, 0, 1, 1], [], []>} : vector<16x32xf32>, vector<32x128xf32>, vector<16x128xf32> -> vector<16x128xf32>
    %c0_176 = arith.constant 0 : index
    %c0_177 = arith.constant 0 : index
    %264 = vector.load %arg6[%c0_176, %c0_177] : memref<1x128xf32, #tpu.memory_space<vmem>>, vector<1x128xf32>
    %265 = vector.broadcast %264 : vector<1x128xf32> to vector<16x128xf32>
    %266 = arith.addf %263, %265 : vector<16x128xf32>
    %c0_178 = arith.constant 0 : index
    %c0_179 = arith.constant 0 : index
    %267 = vector.load %arg15[%c0_178, %c0_179] : memref<16x128xf32, #tpu.memory_space<vmem>>, vector<16x128xf32>
    tpu.vector_store %arg15[%c0_178, %c0_179], %266 {strides = array<i32>} : memref<16x128xf32, #tpu.memory_space<vmem>>, vector<16x128xf32>,
    %c1 = arith.constant 1 : index
    %c0_180 = arith.constant 0 : index
    %c0_181 = arith.constant 0 : index
    %268 = vector.load %arg7[%c1, %c0_180, %c0_181] : memref<2x2x32xf32, #tpu.memory_space<vmem>>, vector<1x2x32xf32>
    %269 = vector.shape_cast %268 : vector<1x2x32xf32> to vector<2x32xf32>
    %c0_182 = arith.constant 0 : index
    %c0_183 = arith.constant 0 : index
    %270 = vector.load %arg16[%c0_182, %c0_183] : memref<2x32xf32, #tpu.memory_space<vmem>>, vector<2x32xf32>
    tpu.vector_store %arg16[%c0_182, %c0_183], %269 {strides = array<i32>} : memref<2x32xf32, #tpu.memory_space<vmem>>, vector<2x32xf32>,
    %c1_184 = arith.constant 1 : index
    %c0_185 = arith.constant 0 : index
    %c0_186 = arith.constant 0 : index
    %271 = vector.load %arg8[%c1_184, %c0_185, %c0_186] : memref<2x2x32xf32, #tpu.memory_space<vmem>>, vector<1x2x32xf32>
    %272 = vector.shape_cast %271 : vector<1x2x32xf32> to vector<2x32xf32>
    %c0_187 = arith.constant 0 : index
    %c0_188 = arith.constant 0 : index
    %273 = vector.load %arg17[%c0_187, %c0_188] : memref<2x32xf32, #tpu.memory_space<vmem>>, vector<2x32xf32>
    tpu.vector_store %arg17[%c0_187, %c0_188], %272 {strides = array<i32>} : memref<2x32xf32, #tpu.memory_space<vmem>>, vector<2x32xf32>,
    %c0_i32_189 = arith.constant 0 : i32
    %c1_i32_190 = arith.constant 1 : i32
    %274 = arith.muli %c0_i32_189, %c1_i32_190 : i32
    %c0_i32_191 = arith.constant 0 : i32
    %275 = arith.addi %c0_i32_191, %274 : i32
    %c0_192 = arith.constant 0 : index
    %c0_193 = arith.constant 0 : index
    %276 = vector.load %arg16[%c0_192, %c0_193] : memref<2x32xf32, #tpu.memory_space<vmem>>, vector<2x32xf32>
    %c0_194 = arith.constant 0 : index
    %c0_195 = arith.constant 0 : index
    %277 = vector.load %arg17[%c0_194, %c0_195] : memref<2x32xf32, #tpu.memory_space<vmem>>, vector<2x32xf32>
    %c2_i32_196 = arith.constant 2 : i32
    %278 = arith.muli %275, %c2_i32_196 : i32
    %279 = arith.index_cast %278 : i32 to index
    %c0_197 = arith.constant 0 : index
    %280 = vector.load %arg15[%279, %c0_197] : memref<16x128xf32, #tpu.memory_space<vmem>>, vector<2x128xf32>
    %c0_198 = arith.constant 0 : index
    %c0_199 = arith.constant 0 : index
    %281 = vector.load %arg5[%c0_198, %c0_199] : memref<32x128xf32, #tpu.memory_space<vmem>>, vector<32x128xf32>
    %cst_200 = arith.constant dense<0.000000e+00> : vector<2x128xf32>
    %282 = tpu.matmul %276, %281, %cst_200 {dimension_numbers = #tpu.dot_dimension_numbers<[1], [0], [0], [1], [0, 0, 1, 1], [], []>} : vector<2x32xf32>, vector<32x128xf32>, vector<2x128xf32> -> vector<2x128xf32>
    %283 = arith.addf %280, %282 : vector<2x128xf32>
    %284 = arith.negf %283 : vector<2x128xf32>
    %285 = math.exp %284 : vector<2x128xf32>
    %cst_201 = arith.constant 1.000000e+00 : f32
    %286 = vector.broadcast %cst_201 : f32 to vector<2x128xf32>
    %287 = arith.addf %286, %285 : vector<2x128xf32>
    %288 = arith.divf %286, %287 : vector<2x128xf32>
    %289 = math.tanh %283 : vector<2x128xf32>
    %290 = vector.extract_strided_slice %288 {offsets = [0, 0], sizes = [2, 32], strides = [1, 1]} : vector<2x128xf32> to vector<2x32xf32>
    %291 = vector.extract_strided_slice %288 {offsets = [0, 32], sizes = [2, 32], strides = [1, 1]} : vector<2x128xf32> to vector<2x32xf32>
    %292 = vector.extract_strided_slice %289 {offsets = [0, 64], sizes = [2, 32], strides = [1, 1]} : vector<2x128xf32> to vector<2x32xf32>
    %293 = vector.extract_strided_slice %288 {offsets = [0, 96], sizes = [2, 32], strides = [1, 1]} : vector<2x128xf32> to vector<2x32xf32>
    %294 = arith.mulf %291, %277 : vector<2x32xf32>
    %295 = arith.mulf %290, %292 : vector<2x32xf32>
    %296 = arith.addf %294, %295 : vector<2x32xf32>
    %297 = math.tanh %296 : vector<2x32xf32>
    %298 = arith.mulf %293, %297 : vector<2x32xf32>
    %c0_202 = arith.constant 0 : index
    %c0_203 = arith.constant 0 : index
    %299 = vector.load %arg16[%c0_202, %c0_203] : memref<2x32xf32, #tpu.memory_space<vmem>>, vector<2x32xf32>
    tpu.vector_store %arg16[%c0_202, %c0_203], %298 {strides = array<i32>} : memref<2x32xf32, #tpu.memory_space<vmem>>, vector<2x32xf32>,
    %c0_204 = arith.constant 0 : index
    %c0_205 = arith.constant 0 : index
    %300 = vector.load %arg17[%c0_204, %c0_205] : memref<2x32xf32, #tpu.memory_space<vmem>>, vector<2x32xf32>
    tpu.vector_store %arg17[%c0_204, %c0_205], %296 {strides = array<i32>} : memref<2x32xf32, #tpu.memory_space<vmem>>, vector<2x32xf32>,
    %c2_i32_206 = arith.constant 2 : i32
    %301 = arith.muli %275, %c2_i32_206 : i32
    %302 = arith.index_cast %301 : i32 to index
    %c0_207 = arith.constant 0 : index
    %303 = vector.load %arg14[%302, %c0_207] : memref<16x32xf32, #tpu.memory_space<vmem>>, vector<2x32xf32>
    tpu.vector_store %arg14[%302, %c0_207], %298 {strides = array<i32>} : memref<16x32xf32, #tpu.memory_space<vmem>>, vector<2x32xf32>,
    %c1_i32_208 = arith.constant 1 : i32
    %c1_i32_209 = arith.constant 1 : i32
    %304 = arith.muli %c1_i32_208, %c1_i32_209 : i32
    %c0_i32_210 = arith.constant 0 : i32
    %305 = arith.addi %c0_i32_210, %304 : i32
    %c0_211 = arith.constant 0 : index
    %c0_212 = arith.constant 0 : index
    %306 = vector.load %arg16[%c0_211, %c0_212] : memref<2x32xf32, #tpu.memory_space<vmem>>, vector<2x32xf32>
    %c0_213 = arith.constant 0 : index
    %c0_214 = arith.constant 0 : index
    %307 = vector.load %arg17[%c0_213, %c0_214] : memref<2x32xf32, #tpu.memory_space<vmem>>, vector<2x32xf32>
    %c2_i32_215 = arith.constant 2 : i32
    %308 = arith.muli %305, %c2_i32_215 : i32
    %309 = arith.index_cast %308 : i32 to index
    %c0_216 = arith.constant 0 : index
    %310 = vector.load %arg15[%309, %c0_216] : memref<16x128xf32, #tpu.memory_space<vmem>>, vector<2x128xf32>
    %c0_217 = arith.constant 0 : index
    %c0_218 = arith.constant 0 : index
    %311 = vector.load %arg5[%c0_217, %c0_218] : memref<32x128xf32, #tpu.memory_space<vmem>>, vector<32x128xf32>
    %cst_219 = arith.constant dense<0.000000e+00> : vector<2x128xf32>
    %312 = tpu.matmul %306, %311, %cst_219 {dimension_numbers = #tpu.dot_dimension_numbers<[1], [0], [0], [1], [0, 0, 1, 1], [], []>} : vector<2x32xf32>, vector<32x128xf32>, vector<2x128xf32> -> vector<2x128xf32>
    %313 = arith.addf %310, %312 : vector<2x128xf32>
    %314 = arith.negf %313 : vector<2x128xf32>
    %315 = math.exp %314 : vector<2x128xf32>
    %cst_220 = arith.constant 1.000000e+00 : f32
    %316 = vector.broadcast %cst_220 : f32 to vector<2x128xf32>
    %317 = arith.addf %316, %315 : vector<2x128xf32>
    %318 = arith.divf %316, %317 : vector<2x128xf32>
    %319 = math.tanh %313 : vector<2x128xf32>
    %320 = vector.extract_strided_slice %318 {offsets = [0, 0], sizes = [2, 32], strides = [1, 1]} : vector<2x128xf32> to vector<2x32xf32>
    %321 = vector.extract_strided_slice %318 {offsets = [0, 32], sizes = [2, 32], strides = [1, 1]} : vector<2x128xf32> to vector<2x32xf32>
    %322 = vector.extract_strided_slice %319 {offsets = [0, 64], sizes = [2, 32], strides = [1, 1]} : vector<2x128xf32> to vector<2x32xf32>
    %323 = vector.extract_strided_slice %318 {offsets = [0, 96], sizes = [2, 32], strides = [1, 1]} : vector<2x128xf32> to vector<2x32xf32>
    %324 = arith.mulf %321, %307 : vector<2x32xf32>
    %325 = arith.mulf %320, %322 : vector<2x32xf32>
    %326 = arith.addf %324, %325 : vector<2x32xf32>
    %327 = math.tanh %326 : vector<2x32xf32>
    %328 = arith.mulf %323, %327 : vector<2x32xf32>
    %c0_221 = arith.constant 0 : index
    %c0_222 = arith.constant 0 : index
    %329 = vector.load %arg16[%c0_221, %c0_222] : memref<2x32xf32, #tpu.memory_space<vmem>>, vector<2x32xf32>
    tpu.vector_store %arg16[%c0_221, %c0_222], %328 {strides = array<i32>} : memref<2x32xf32, #tpu.memory_space<vmem>>, vector<2x32xf32>,
    %c0_223 = arith.constant 0 : index
    %c0_224 = arith.constant 0 : index
    %330 = vector.load %arg17[%c0_223, %c0_224] : memref<2x32xf32, #tpu.memory_space<vmem>>, vector<2x32xf32>
    tpu.vector_store %arg17[%c0_223, %c0_224], %326 {strides = array<i32>} : memref<2x32xf32, #tpu.memory_space<vmem>>, vector<2x32xf32>,
    %c2_i32_225 = arith.constant 2 : i32
    %331 = arith.muli %305, %c2_i32_225 : i32
    %332 = arith.index_cast %331 : i32 to index
    %c0_226 = arith.constant 0 : index
    %333 = vector.load %arg14[%332, %c0_226] : memref<16x32xf32, #tpu.memory_space<vmem>>, vector<2x32xf32>
    tpu.vector_store %arg14[%332, %c0_226], %328 {strides = array<i32>} : memref<16x32xf32, #tpu.memory_space<vmem>>, vector<2x32xf32>,
    %c2_i32_227 = arith.constant 2 : i32
    %c1_i32_228 = arith.constant 1 : i32
    %334 = arith.muli %c2_i32_227, %c1_i32_228 : i32
    %c0_i32_229 = arith.constant 0 : i32
    %335 = arith.addi %c0_i32_229, %334 : i32
    %c0_230 = arith.constant 0 : index
    %c0_231 = arith.constant 0 : index
    %336 = vector.load %arg16[%c0_230, %c0_231] : memref<2x32xf32, #tpu.memory_space<vmem>>, vector<2x32xf32>
    %c0_232 = arith.constant 0 : index
    %c0_233 = arith.constant 0 : index
    %337 = vector.load %arg17[%c0_232, %c0_233] : memref<2x32xf32, #tpu.memory_space<vmem>>, vector<2x32xf32>
    %c2_i32_234 = arith.constant 2 : i32
    %338 = arith.muli %335, %c2_i32_234 : i32
    %339 = arith.index_cast %338 : i32 to index
    %c0_235 = arith.constant 0 : index
    %340 = vector.load %arg15[%339, %c0_235] : memref<16x128xf32, #tpu.memory_space<vmem>>, vector<2x128xf32>
    %c0_236 = arith.constant 0 : index
    %c0_237 = arith.constant 0 : index
    %341 = vector.load %arg5[%c0_236, %c0_237] : memref<32x128xf32, #tpu.memory_space<vmem>>, vector<32x128xf32>
    %cst_238 = arith.constant dense<0.000000e+00> : vector<2x128xf32>
    %342 = tpu.matmul %336, %341, %cst_238 {dimension_numbers = #tpu.dot_dimension_numbers<[1], [0], [0], [1], [0, 0, 1, 1], [], []>} : vector<2x32xf32>, vector<32x128xf32>, vector<2x128xf32> -> vector<2x128xf32>
    %343 = arith.addf %340, %342 : vector<2x128xf32>
    %344 = arith.negf %343 : vector<2x128xf32>
    %345 = math.exp %344 : vector<2x128xf32>
    %cst_239 = arith.constant 1.000000e+00 : f32
    %346 = vector.broadcast %cst_239 : f32 to vector<2x128xf32>
    %347 = arith.addf %346, %345 : vector<2x128xf32>
    %348 = arith.divf %346, %347 : vector<2x128xf32>
    %349 = math.tanh %343 : vector<2x128xf32>
    %350 = vector.extract_strided_slice %348 {offsets = [0, 0], sizes = [2, 32], strides = [1, 1]} : vector<2x128xf32> to vector<2x32xf32>
    %351 = vector.extract_strided_slice %348 {offsets = [0, 32], sizes = [2, 32], strides = [1, 1]} : vector<2x128xf32> to vector<2x32xf32>
    %352 = vector.extract_strided_slice %349 {offsets = [0, 64], sizes = [2, 32], strides = [1, 1]} : vector<2x128xf32> to vector<2x32xf32>
    %353 = vector.extract_strided_slice %348 {offsets = [0, 96], sizes = [2, 32], strides = [1, 1]} : vector<2x128xf32> to vector<2x32xf32>
    %354 = arith.mulf %351, %337 : vector<2x32xf32>
    %355 = arith.mulf %350, %352 : vector<2x32xf32>
    %356 = arith.addf %354, %355 : vector<2x32xf32>
    %357 = math.tanh %356 : vector<2x32xf32>
    %358 = arith.mulf %353, %357 : vector<2x32xf32>
    %c0_240 = arith.constant 0 : index
    %c0_241 = arith.constant 0 : index
    %359 = vector.load %arg16[%c0_240, %c0_241] : memref<2x32xf32, #tpu.memory_space<vmem>>, vector<2x32xf32>
    tpu.vector_store %arg16[%c0_240, %c0_241], %358 {strides = array<i32>} : memref<2x32xf32, #tpu.memory_space<vmem>>, vector<2x32xf32>,
    %c0_242 = arith.constant 0 : index
    %c0_243 = arith.constant 0 : index
    %360 = vector.load %arg17[%c0_242, %c0_243] : memref<2x32xf32, #tpu.memory_space<vmem>>, vector<2x32xf32>
    tpu.vector_store %arg17[%c0_242, %c0_243], %356 {strides = array<i32>} : memref<2x32xf32, #tpu.memory_space<vmem>>, vector<2x32xf32>,
    %c2_i32_244 = arith.constant 2 : i32
    %361 = arith.muli %335, %c2_i32_244 : i32
    %362 = arith.index_cast %361 : i32 to index
    %c0_245 = arith.constant 0 : index
    %363 = vector.load %arg14[%362, %c0_245] : memref<16x32xf32, #tpu.memory_space<vmem>>, vector<2x32xf32>
    tpu.vector_store %arg14[%362, %c0_245], %358 {strides = array<i32>} : memref<16x32xf32, #tpu.memory_space<vmem>>, vector<2x32xf32>,
    %c3_i32_246 = arith.constant 3 : i32
    %c1_i32_247 = arith.constant 1 : i32
    %364 = arith.muli %c3_i32_246, %c1_i32_247 : i32
    %c0_i32_248 = arith.constant 0 : i32
    %365 = arith.addi %c0_i32_248, %364 : i32
    %c0_249 = arith.constant 0 : index
    %c0_250 = arith.constant 0 : index
    %366 = vector.load %arg16[%c0_249, %c0_250] : memref<2x32xf32, #tpu.memory_space<vmem>>, vector<2x32xf32>
    %c0_251 = arith.constant 0 : index
    %c0_252 = arith.constant 0 : index
    %367 = vector.load %arg17[%c0_251, %c0_252] : memref<2x32xf32, #tpu.memory_space<vmem>>, vector<2x32xf32>
    %c2_i32_253 = arith.constant 2 : i32
    %368 = arith.muli %365, %c2_i32_253 : i32
    %369 = arith.index_cast %368 : i32 to index
    %c0_254 = arith.constant 0 : index
    %370 = vector.load %arg15[%369, %c0_254] : memref<16x128xf32, #tpu.memory_space<vmem>>, vector<2x128xf32>
    %c0_255 = arith.constant 0 : index
    %c0_256 = arith.constant 0 : index
    %371 = vector.load %arg5[%c0_255, %c0_256] : memref<32x128xf32, #tpu.memory_space<vmem>>, vector<32x128xf32>
    %cst_257 = arith.constant dense<0.000000e+00> : vector<2x128xf32>
    %372 = tpu.matmul %366, %371, %cst_257 {dimension_numbers = #tpu.dot_dimension_numbers<[1], [0], [0], [1], [0, 0, 1, 1], [], []>} : vector<2x32xf32>, vector<32x128xf32>, vector<2x128xf32> -> vector<2x128xf32>
    %373 = arith.addf %370, %372 : vector<2x128xf32>
    %374 = arith.negf %373 : vector<2x128xf32>
    %375 = math.exp %374 : vector<2x128xf32>
    %cst_258 = arith.constant 1.000000e+00 : f32
    %376 = vector.broadcast %cst_258 : f32 to vector<2x128xf32>
    %377 = arith.addf %376, %375 : vector<2x128xf32>
    %378 = arith.divf %376, %377 : vector<2x128xf32>
    %379 = math.tanh %373 : vector<2x128xf32>
    %380 = vector.extract_strided_slice %378 {offsets = [0, 0], sizes = [2, 32], strides = [1, 1]} : vector<2x128xf32> to vector<2x32xf32>
    %381 = vector.extract_strided_slice %378 {offsets = [0, 32], sizes = [2, 32], strides = [1, 1]} : vector<2x128xf32> to vector<2x32xf32>
    %382 = vector.extract_strided_slice %379 {offsets = [0, 64], sizes = [2, 32], strides = [1, 1]} : vector<2x128xf32> to vector<2x32xf32>
    %383 = vector.extract_strided_slice %378 {offsets = [0, 96], sizes = [2, 32], strides = [1, 1]} : vector<2x128xf32> to vector<2x32xf32>
    %384 = arith.mulf %381, %367 : vector<2x32xf32>
    %385 = arith.mulf %380, %382 : vector<2x32xf32>
    %386 = arith.addf %384, %385 : vector<2x32xf32>
    %387 = math.tanh %386 : vector<2x32xf32>
    %388 = arith.mulf %383, %387 : vector<2x32xf32>
    %c0_259 = arith.constant 0 : index
    %c0_260 = arith.constant 0 : index
    %389 = vector.load %arg16[%c0_259, %c0_260] : memref<2x32xf32, #tpu.memory_space<vmem>>, vector<2x32xf32>
    tpu.vector_store %arg16[%c0_259, %c0_260], %388 {strides = array<i32>} : memref<2x32xf32, #tpu.memory_space<vmem>>, vector<2x32xf32>,
    %c0_261 = arith.constant 0 : index
    %c0_262 = arith.constant 0 : index
    %390 = vector.load %arg17[%c0_261, %c0_262] : memref<2x32xf32, #tpu.memory_space<vmem>>, vector<2x32xf32>
    tpu.vector_store %arg17[%c0_261, %c0_262], %386 {strides = array<i32>} : memref<2x32xf32, #tpu.memory_space<vmem>>, vector<2x32xf32>,
    %c2_i32_263 = arith.constant 2 : i32
    %391 = arith.muli %365, %c2_i32_263 : i32
    %392 = arith.index_cast %391 : i32 to index
    %c0_264 = arith.constant 0 : index
    %393 = vector.load %arg14[%392, %c0_264] : memref<16x32xf32, #tpu.memory_space<vmem>>, vector<2x32xf32>
    tpu.vector_store %arg14[%392, %c0_264], %388 {strides = array<i32>} : memref<16x32xf32, #tpu.memory_space<vmem>>, vector<2x32xf32>,
    %c4_i32_265 = arith.constant 4 : i32
    %c1_i32_266 = arith.constant 1 : i32
    %394 = arith.muli %c4_i32_265, %c1_i32_266 : i32
    %c0_i32_267 = arith.constant 0 : i32
    %395 = arith.addi %c0_i32_267, %394 : i32
    %c0_268 = arith.constant 0 : index
    %c0_269 = arith.constant 0 : index
    %396 = vector.load %arg16[%c0_268, %c0_269] : memref<2x32xf32, #tpu.memory_space<vmem>>, vector<2x32xf32>
    %c0_270 = arith.constant 0 : index
    %c0_271 = arith.constant 0 : index
    %397 = vector.load %arg17[%c0_270, %c0_271] : memref<2x32xf32, #tpu.memory_space<vmem>>, vector<2x32xf32>
    %c2_i32_272 = arith.constant 2 : i32
    %398 = arith.muli %395, %c2_i32_272 : i32
    %399 = arith.index_cast %398 : i32 to index
    %c0_273 = arith.constant 0 : index
    %400 = vector.load %arg15[%399, %c0_273] : memref<16x128xf32, #tpu.memory_space<vmem>>, vector<2x128xf32>
    %c0_274 = arith.constant 0 : index
    %c0_275 = arith.constant 0 : index
    %401 = vector.load %arg5[%c0_274, %c0_275] : memref<32x128xf32, #tpu.memory_space<vmem>>, vector<32x128xf32>
    %cst_276 = arith.constant dense<0.000000e+00> : vector<2x128xf32>
    %402 = tpu.matmul %396, %401, %cst_276 {dimension_numbers = #tpu.dot_dimension_numbers<[1], [0], [0], [1], [0, 0, 1, 1], [], []>} : vector<2x32xf32>, vector<32x128xf32>, vector<2x128xf32> -> vector<2x128xf32>
    %403 = arith.addf %400, %402 : vector<2x128xf32>
    %404 = arith.negf %403 : vector<2x128xf32>
    %405 = math.exp %404 : vector<2x128xf32>
    %cst_277 = arith.constant 1.000000e+00 : f32
    %406 = vector.broadcast %cst_277 : f32 to vector<2x128xf32>
    %407 = arith.addf %406, %405 : vector<2x128xf32>
    %408 = arith.divf %406, %407 : vector<2x128xf32>
    %409 = math.tanh %403 : vector<2x128xf32>
    %410 = vector.extract_strided_slice %408 {offsets = [0, 0], sizes = [2, 32], strides = [1, 1]} : vector<2x128xf32> to vector<2x32xf32>
    %411 = vector.extract_strided_slice %408 {offsets = [0, 32], sizes = [2, 32], strides = [1, 1]} : vector<2x128xf32> to vector<2x32xf32>
    %412 = vector.extract_strided_slice %409 {offsets = [0, 64], sizes = [2, 32], strides = [1, 1]} : vector<2x128xf32> to vector<2x32xf32>
    %413 = vector.extract_strided_slice %408 {offsets = [0, 96], sizes = [2, 32], strides = [1, 1]} : vector<2x128xf32> to vector<2x32xf32>
    %414 = arith.mulf %411, %397 : vector<2x32xf32>
    %415 = arith.mulf %410, %412 : vector<2x32xf32>
    %416 = arith.addf %414, %415 : vector<2x32xf32>
    %417 = math.tanh %416 : vector<2x32xf32>
    %418 = arith.mulf %413, %417 : vector<2x32xf32>
    %c0_278 = arith.constant 0 : index
    %c0_279 = arith.constant 0 : index
    %419 = vector.load %arg16[%c0_278, %c0_279] : memref<2x32xf32, #tpu.memory_space<vmem>>, vector<2x32xf32>
    tpu.vector_store %arg16[%c0_278, %c0_279], %418 {strides = array<i32>} : memref<2x32xf32, #tpu.memory_space<vmem>>, vector<2x32xf32>,
    %c0_280 = arith.constant 0 : index
    %c0_281 = arith.constant 0 : index
    %420 = vector.load %arg17[%c0_280, %c0_281] : memref<2x32xf32, #tpu.memory_space<vmem>>, vector<2x32xf32>
    tpu.vector_store %arg17[%c0_280, %c0_281], %416 {strides = array<i32>} : memref<2x32xf32, #tpu.memory_space<vmem>>, vector<2x32xf32>,
    %c2_i32_282 = arith.constant 2 : i32
    %421 = arith.muli %395, %c2_i32_282 : i32
    %422 = arith.index_cast %421 : i32 to index
    %c0_283 = arith.constant 0 : index
    %423 = vector.load %arg14[%422, %c0_283] : memref<16x32xf32, #tpu.memory_space<vmem>>, vector<2x32xf32>
    tpu.vector_store %arg14[%422, %c0_283], %418 {strides = array<i32>} : memref<16x32xf32, #tpu.memory_space<vmem>>, vector<2x32xf32>,
    %c5_i32_284 = arith.constant 5 : i32
    %c1_i32_285 = arith.constant 1 : i32
    %424 = arith.muli %c5_i32_284, %c1_i32_285 : i32
    %c0_i32_286 = arith.constant 0 : i32
    %425 = arith.addi %c0_i32_286, %424 : i32
    %c0_287 = arith.constant 0 : index
    %c0_288 = arith.constant 0 : index
    %426 = vector.load %arg16[%c0_287, %c0_288] : memref<2x32xf32, #tpu.memory_space<vmem>>, vector<2x32xf32>
    %c0_289 = arith.constant 0 : index
    %c0_290 = arith.constant 0 : index
    %427 = vector.load %arg17[%c0_289, %c0_290] : memref<2x32xf32, #tpu.memory_space<vmem>>, vector<2x32xf32>
    %c2_i32_291 = arith.constant 2 : i32
    %428 = arith.muli %425, %c2_i32_291 : i32
    %429 = arith.index_cast %428 : i32 to index
    %c0_292 = arith.constant 0 : index
    %430 = vector.load %arg15[%429, %c0_292] : memref<16x128xf32, #tpu.memory_space<vmem>>, vector<2x128xf32>
    %c0_293 = arith.constant 0 : index
    %c0_294 = arith.constant 0 : index
    %431 = vector.load %arg5[%c0_293, %c0_294] : memref<32x128xf32, #tpu.memory_space<vmem>>, vector<32x128xf32>
    %cst_295 = arith.constant dense<0.000000e+00> : vector<2x128xf32>
    %432 = tpu.matmul %426, %431, %cst_295 {dimension_numbers = #tpu.dot_dimension_numbers<[1], [0], [0], [1], [0, 0, 1, 1], [], []>} : vector<2x32xf32>, vector<32x128xf32>, vector<2x128xf32> -> vector<2x128xf32>
    %433 = arith.addf %430, %432 : vector<2x128xf32>
    %434 = arith.negf %433 : vector<2x128xf32>
    %435 = math.exp %434 : vector<2x128xf32>
    %cst_296 = arith.constant 1.000000e+00 : f32
    %436 = vector.broadcast %cst_296 : f32 to vector<2x128xf32>
    %437 = arith.addf %436, %435 : vector<2x128xf32>
    %438 = arith.divf %436, %437 : vector<2x128xf32>
    %439 = math.tanh %433 : vector<2x128xf32>
    %440 = vector.extract_strided_slice %438 {offsets = [0, 0], sizes = [2, 32], strides = [1, 1]} : vector<2x128xf32> to vector<2x32xf32>
    %441 = vector.extract_strided_slice %438 {offsets = [0, 32], sizes = [2, 32], strides = [1, 1]} : vector<2x128xf32> to vector<2x32xf32>
    %442 = vector.extract_strided_slice %439 {offsets = [0, 64], sizes = [2, 32], strides = [1, 1]} : vector<2x128xf32> to vector<2x32xf32>
    %443 = vector.extract_strided_slice %438 {offsets = [0, 96], sizes = [2, 32], strides = [1, 1]} : vector<2x128xf32> to vector<2x32xf32>
    %444 = arith.mulf %441, %427 : vector<2x32xf32>
    %445 = arith.mulf %440, %442 : vector<2x32xf32>
    %446 = arith.addf %444, %445 : vector<2x32xf32>
    %447 = math.tanh %446 : vector<2x32xf32>
    %448 = arith.mulf %443, %447 : vector<2x32xf32>
    %c0_297 = arith.constant 0 : index
    %c0_298 = arith.constant 0 : index
    %449 = vector.load %arg16[%c0_297, %c0_298] : memref<2x32xf32, #tpu.memory_space<vmem>>, vector<2x32xf32>
    tpu.vector_store %arg16[%c0_297, %c0_298], %448 {strides = array<i32>} : memref<2x32xf32, #tpu.memory_space<vmem>>, vector<2x32xf32>,
    %c0_299 = arith.constant 0 : index
    %c0_300 = arith.constant 0 : index
    %450 = vector.load %arg17[%c0_299, %c0_300] : memref<2x32xf32, #tpu.memory_space<vmem>>, vector<2x32xf32>
    tpu.vector_store %arg17[%c0_299, %c0_300], %446 {strides = array<i32>} : memref<2x32xf32, #tpu.memory_space<vmem>>, vector<2x32xf32>,
    %c2_i32_301 = arith.constant 2 : i32
    %451 = arith.muli %425, %c2_i32_301 : i32
    %452 = arith.index_cast %451 : i32 to index
    %c0_302 = arith.constant 0 : index
    %453 = vector.load %arg14[%452, %c0_302] : memref<16x32xf32, #tpu.memory_space<vmem>>, vector<2x32xf32>
    tpu.vector_store %arg14[%452, %c0_302], %448 {strides = array<i32>} : memref<16x32xf32, #tpu.memory_space<vmem>>, vector<2x32xf32>,
    %c6_i32_303 = arith.constant 6 : i32
    %c1_i32_304 = arith.constant 1 : i32
    %454 = arith.muli %c6_i32_303, %c1_i32_304 : i32
    %c0_i32_305 = arith.constant 0 : i32
    %455 = arith.addi %c0_i32_305, %454 : i32
    %c0_306 = arith.constant 0 : index
    %c0_307 = arith.constant 0 : index
    %456 = vector.load %arg16[%c0_306, %c0_307] : memref<2x32xf32, #tpu.memory_space<vmem>>, vector<2x32xf32>
    %c0_308 = arith.constant 0 : index
    %c0_309 = arith.constant 0 : index
    %457 = vector.load %arg17[%c0_308, %c0_309] : memref<2x32xf32, #tpu.memory_space<vmem>>, vector<2x32xf32>
    %c2_i32_310 = arith.constant 2 : i32
    %458 = arith.muli %455, %c2_i32_310 : i32
    %459 = arith.index_cast %458 : i32 to index
    %c0_311 = arith.constant 0 : index
    %460 = vector.load %arg15[%459, %c0_311] : memref<16x128xf32, #tpu.memory_space<vmem>>, vector<2x128xf32>
    %c0_312 = arith.constant 0 : index
    %c0_313 = arith.constant 0 : index
    %461 = vector.load %arg5[%c0_312, %c0_313] : memref<32x128xf32, #tpu.memory_space<vmem>>, vector<32x128xf32>
    %cst_314 = arith.constant dense<0.000000e+00> : vector<2x128xf32>
    %462 = tpu.matmul %456, %461, %cst_314 {dimension_numbers = #tpu.dot_dimension_numbers<[1], [0], [0], [1], [0, 0, 1, 1], [], []>} : vector<2x32xf32>, vector<32x128xf32>, vector<2x128xf32> -> vector<2x128xf32>
    %463 = arith.addf %460, %462 : vector<2x128xf32>
    %464 = arith.negf %463 : vector<2x128xf32>
    %465 = math.exp %464 : vector<2x128xf32>
    %cst_315 = arith.constant 1.000000e+00 : f32
    %466 = vector.broadcast %cst_315 : f32 to vector<2x128xf32>
    %467 = arith.addf %466, %465 : vector<2x128xf32>
    %468 = arith.divf %466, %467 : vector<2x128xf32>
    %469 = math.tanh %463 : vector<2x128xf32>
    %470 = vector.extract_strided_slice %468 {offsets = [0, 0], sizes = [2, 32], strides = [1, 1]} : vector<2x128xf32> to vector<2x32xf32>
    %471 = vector.extract_strided_slice %468 {offsets = [0, 32], sizes = [2, 32], strides = [1, 1]} : vector<2x128xf32> to vector<2x32xf32>
    %472 = vector.extract_strided_slice %469 {offsets = [0, 64], sizes = [2, 32], strides = [1, 1]} : vector<2x128xf32> to vector<2x32xf32>
    %473 = vector.extract_strided_slice %468 {offsets = [0, 96], sizes = [2, 32], strides = [1, 1]} : vector<2x128xf32> to vector<2x32xf32>
    %474 = arith.mulf %471, %457 : vector<2x32xf32>
    %475 = arith.mulf %470, %472 : vector<2x32xf32>
    %476 = arith.addf %474, %475 : vector<2x32xf32>
    %477 = math.tanh %476 : vector<2x32xf32>
    %478 = arith.mulf %473, %477 : vector<2x32xf32>
    %c0_316 = arith.constant 0 : index
    %c0_317 = arith.constant 0 : index
    %479 = vector.load %arg16[%c0_316, %c0_317] : memref<2x32xf32, #tpu.memory_space<vmem>>, vector<2x32xf32>
    tpu.vector_store %arg16[%c0_316, %c0_317], %478 {strides = array<i32>} : memref<2x32xf32, #tpu.memory_space<vmem>>, vector<2x32xf32>,
    %c0_318 = arith.constant 0 : index
    %c0_319 = arith.constant 0 : index
    %480 = vector.load %arg17[%c0_318, %c0_319] : memref<2x32xf32, #tpu.memory_space<vmem>>, vector<2x32xf32>
    tpu.vector_store %arg17[%c0_318, %c0_319], %476 {strides = array<i32>} : memref<2x32xf32, #tpu.memory_space<vmem>>, vector<2x32xf32>,
    %c2_i32_320 = arith.constant 2 : i32
    %481 = arith.muli %455, %c2_i32_320 : i32
    %482 = arith.index_cast %481 : i32 to index
    %c0_321 = arith.constant 0 : index
    %483 = vector.load %arg14[%482, %c0_321] : memref<16x32xf32, #tpu.memory_space<vmem>>, vector<2x32xf32>
    tpu.vector_store %arg14[%482, %c0_321], %478 {strides = array<i32>} : memref<16x32xf32, #tpu.memory_space<vmem>>, vector<2x32xf32>,
    %c7_i32_322 = arith.constant 7 : i32
    %c1_i32_323 = arith.constant 1 : i32
    %484 = arith.muli %c7_i32_322, %c1_i32_323 : i32
    %c0_i32_324 = arith.constant 0 : i32
    %485 = arith.addi %c0_i32_324, %484 : i32
    %c0_325 = arith.constant 0 : index
    %c0_326 = arith.constant 0 : index
    %486 = vector.load %arg16[%c0_325, %c0_326] : memref<2x32xf32, #tpu.memory_space<vmem>>, vector<2x32xf32>
    %c0_327 = arith.constant 0 : index
    %c0_328 = arith.constant 0 : index
    %487 = vector.load %arg17[%c0_327, %c0_328] : memref<2x32xf32, #tpu.memory_space<vmem>>, vector<2x32xf32>
    %c2_i32_329 = arith.constant 2 : i32
    %488 = arith.muli %485, %c2_i32_329 : i32
    %489 = arith.index_cast %488 : i32 to index
    %c0_330 = arith.constant 0 : index
    %490 = vector.load %arg15[%489, %c0_330] : memref<16x128xf32, #tpu.memory_space<vmem>>, vector<2x128xf32>
    %c0_331 = arith.constant 0 : index
    %c0_332 = arith.constant 0 : index
    %491 = vector.load %arg5[%c0_331, %c0_332] : memref<32x128xf32, #tpu.memory_space<vmem>>, vector<32x128xf32>
    %cst_333 = arith.constant dense<0.000000e+00> : vector<2x128xf32>
    %492 = tpu.matmul %486, %491, %cst_333 {dimension_numbers = #tpu.dot_dimension_numbers<[1], [0], [0], [1], [0, 0, 1, 1], [], []>} : vector<2x32xf32>, vector<32x128xf32>, vector<2x128xf32> -> vector<2x128xf32>
    %493 = arith.addf %490, %492 : vector<2x128xf32>
    %494 = arith.negf %493 : vector<2x128xf32>
    %495 = math.exp %494 : vector<2x128xf32>
    %cst_334 = arith.constant 1.000000e+00 : f32
    %496 = vector.broadcast %cst_334 : f32 to vector<2x128xf32>
    %497 = arith.addf %496, %495 : vector<2x128xf32>
    %498 = arith.divf %496, %497 : vector<2x128xf32>
    %499 = math.tanh %493 : vector<2x128xf32>
    %500 = vector.extract_strided_slice %498 {offsets = [0, 0], sizes = [2, 32], strides = [1, 1]} : vector<2x128xf32> to vector<2x32xf32>
    %501 = vector.extract_strided_slice %498 {offsets = [0, 32], sizes = [2, 32], strides = [1, 1]} : vector<2x128xf32> to vector<2x32xf32>
    %502 = vector.extract_strided_slice %499 {offsets = [0, 64], sizes = [2, 32], strides = [1, 1]} : vector<2x128xf32> to vector<2x32xf32>
    %503 = vector.extract_strided_slice %498 {offsets = [0, 96], sizes = [2, 32], strides = [1, 1]} : vector<2x128xf32> to vector<2x32xf32>
    %504 = arith.mulf %501, %487 : vector<2x32xf32>
    %505 = arith.mulf %500, %502 : vector<2x32xf32>
    %506 = arith.addf %504, %505 : vector<2x32xf32>
    %507 = math.tanh %506 : vector<2x32xf32>
    %508 = arith.mulf %503, %507 : vector<2x32xf32>
    %c0_335 = arith.constant 0 : index
    %c0_336 = arith.constant 0 : index
    %509 = vector.load %arg16[%c0_335, %c0_336] : memref<2x32xf32, #tpu.memory_space<vmem>>, vector<2x32xf32>
    tpu.vector_store %arg16[%c0_335, %c0_336], %508 {strides = array<i32>} : memref<2x32xf32, #tpu.memory_space<vmem>>, vector<2x32xf32>,
    %c0_337 = arith.constant 0 : index
    %c0_338 = arith.constant 0 : index
    %510 = vector.load %arg17[%c0_337, %c0_338] : memref<2x32xf32, #tpu.memory_space<vmem>>, vector<2x32xf32>
    tpu.vector_store %arg17[%c0_337, %c0_338], %506 {strides = array<i32>} : memref<2x32xf32, #tpu.memory_space<vmem>>, vector<2x32xf32>,
    %c2_i32_339 = arith.constant 2 : i32
    %511 = arith.muli %485, %c2_i32_339 : i32
    %512 = arith.index_cast %511 : i32 to index
    %c0_340 = arith.constant 0 : index
    %513 = vector.load %arg14[%512, %c0_340] : memref<16x32xf32, #tpu.memory_space<vmem>>, vector<2x32xf32>
    tpu.vector_store %arg14[%512, %c0_340], %508 {strides = array<i32>} : memref<16x32xf32, #tpu.memory_space<vmem>>, vector<2x32xf32>,
    %c8_i32_341 = arith.constant 8 : i32
    %c0_342 = arith.constant 0 : index
    %c0_343 = arith.constant 0 : index
    %514 = vector.load %arg16[%c0_342, %c0_343] : memref<2x32xf32, #tpu.memory_space<vmem>>, vector<2x32xf32>
    %c1_344 = arith.constant 1 : index
    %c0_345 = arith.constant 0 : index
    %c0_346 = arith.constant 0 : index
    %515 = vector.load %arg12[%c1_344, %c0_345, %c0_346] : memref<2x2x32xf32, #tpu.memory_space<vmem>>, vector<1x2x32xf32>
    %516 = vector.shape_cast %515 : vector<1x2x32xf32> to vector<2x32xf32>
    %517 = vector.shape_cast %514 : vector<2x32xf32> to vector<1x2x32xf32>
    tpu.vector_store %arg12[%c1_344, %c0_345, %c0_346], %517 {strides = array<i32>} : memref<2x2x32xf32, #tpu.memory_space<vmem>>, vector<1x2x32xf32>,
    %c0_347 = arith.constant 0 : index
    %c0_348 = arith.constant 0 : index
    %518 = vector.load %arg17[%c0_347, %c0_348] : memref<2x32xf32, #tpu.memory_space<vmem>>, vector<2x32xf32>
    %c1_349 = arith.constant 1 : index
    %c0_350 = arith.constant 0 : index
    %c0_351 = arith.constant 0 : index
    %519 = vector.load %arg13[%c1_349, %c0_350, %c0_351] : memref<2x2x32xf32, #tpu.memory_space<vmem>>, vector<1x2x32xf32>
    %520 = vector.shape_cast %519 : vector<1x2x32xf32> to vector<2x32xf32>
    %521 = vector.shape_cast %518 : vector<2x32xf32> to vector<1x2x32xf32>
    tpu.vector_store %arg13[%c1_349, %c0_350, %c0_351], %521 {strides = array<i32>} : memref<2x2x32xf32, #tpu.memory_space<vmem>>, vector<1x2x32xf32>,
    %c0_352 = arith.constant 0 : index
    %c0_353 = arith.constant 0 : index
    %522 = vector.load %arg14[%c0_352, %c0_353] : memref<16x32xf32, #tpu.memory_space<vmem>>, vector<16x32xf32>
    %c0_354 = arith.constant 0 : index
    %c0_355 = arith.constant 0 : index
    %523 = vector.load %arg9[%c0_354, %c0_355] : memref<32x128xf32, #tpu.memory_space<vmem>>, vector<32x128xf32>
    %cst_356 = arith.constant dense<0.000000e+00> : vector<16x128xf32>
    %524 = tpu.matmul %522, %523, %cst_356 {dimension_numbers = #tpu.dot_dimension_numbers<[1], [0], [0], [1], [0, 0, 1, 1], [], []>} : vector<16x32xf32>, vector<32x128xf32>, vector<16x128xf32> -> vector<16x128xf32>
    %c0_357 = arith.constant 0 : index
    %c0_358 = arith.constant 0 : index
    %525 = vector.load %arg10[%c0_357, %c0_358] : memref<1x128xf32, #tpu.memory_space<vmem>>, vector<1x128xf32>
    %526 = vector.broadcast %525 : vector<1x128xf32> to vector<16x128xf32>
    %527 = arith.addf %524, %526 : vector<16x128xf32>
    %c0_359 = arith.constant 0 : index
    %c0_360 = arith.constant 0 : index
    %528 = vector.load %arg11[%c0_359, %c0_360] : memref<16x128xf32, #tpu.memory_space<vmem>>, vector<16x128xf32>
    tpu.vector_store %arg11[%c0_359, %c0_360], %527 {strides = array<i32>} : memref<16x128xf32, #tpu.memory_space<vmem>>, vector<16x128xf32>,
    return
  }
}

</mosaic_0001>

<llo_original>
// kernel: tpu_custom_call.1
$region0: #{tpu_custom_call.1}
  #allocation0 [shape = 'u32[]', space=smem, size = 0x4, offset = 0x4, fixed_abs, tag = 'smem constant byte address 0x4 - core index']
  #allocation1 [shape = 'u32[144,128]{1,0:T(1,128)}', space=vmem, size = 0x12000, scoped, tag = 'internal scratch']
  #allocation2 [shape = 'f32[16,32]{1,0:T(8,128)}', space=vmem, size = 0x2000, scoped, tag = 'scratch operand']
  #allocation3 [shape = 'f32[16,128]{1,0:T(8,128)}', space=vmem, size = 0x2000, scoped, tag = 'scratch operand']
  #allocation4 [shape = 'f32[2,32]{1,0:T(2,128)}', space=vmem, size = 0x400, scoped, tag = 'scratch operand']
  #allocation5 [shape = 'f32[2,32]{1,0:T(2,128)}', space=vmem, size = 0x400, scoped, tag = 'scratch operand']
  %s0 = inlined_call_operand.hbm [shape: f32[16,16], index: 0, kind: input, shape index: {}]
  %s1 = inlined_call_operand.hbm [shape: f32[16,128], index: 1, kind: input, shape index: {}]
  %s2 = inlined_call_operand.hbm [shape: f32[32,128], index: 2, kind: input, shape index: {}]
  %s3 = inlined_call_operand.vmem [shape: f32[1,128], index: 3, kind: input, shape index: {}]
  %s4 = inlined_call_operand.hbm [shape: f32[32,128], index: 4, kind: input, shape index: {}]
  %s5 = inlined_call_operand.hbm [shape: f32[32,128], index: 5, kind: input, shape index: {}]
  %s6 = inlined_call_operand.vmem [shape: f32[1,128], index: 6, kind: input, shape index: {}]
  %s7 = inlined_call_operand.hbm [shape: f32[2,2,32], index: 7, kind: input, shape index: {}]
  %s8 = inlined_call_operand.hbm [shape: f32[2,2,32], index: 8, kind: input, shape index: {}]
  %s9 = inlined_call_operand.vmem [shape: f32[32,128], index: 9, kind: input, shape index: {}]
  %s10 = inlined_call_operand.vmem [shape: f32[1,128], index: 10, kind: input, shape index: {}]
  %s11 = inlined_call_operand.hbm [shape: f32[16,128], index: 11, kind: output, shape index: {0}]
  %s12 = inlined_call_operand.hbm [shape: f32[2,2,32], index: 12, kind: output, shape index: {1}]
  %s13 = inlined_call_operand.hbm [shape: f32[2,2,32], index: 13, kind: output, shape index: {2}]
  %14 = xla_tuple %s11, %s12, %s13
  %s15 = sld [smem:[#allocation0]]
  $region98: #{tpu_custom_call.1} parent=0
    _
  %s17 = ssub.s32 1, %s15
  %s18 = scalar_select 0, %s17, %s15
  $region1: #{tpu_custom_call.1} parent=0
    #allocation6 [shape = 'u8[8192]{0}', space=vmem, size = 0x2000, scoped, tag = 'input window, operand 0, single buffered']
    #allocation7 [shape = 's32[1]{0}', space=sflag, size = 0x4, scoped, tag = 'scoped memory for tpu_custom_call.1']
    #allocation8 [shape = 's32[1]{0}', space=sflag, size = 0x4, scoped, tag = 'scoped memory for tpu_custom_call.1']
    #allocation9 [shape = 'u8[8192]{0}', space=vmem, size = 0x2000, scoped, tag = 'input window, operand 1, single buffered']
    #allocation10 [shape = 's32[1]{0}', space=sflag, size = 0x4, scoped, tag = 'scoped memory for tpu_custom_call.1']
    #allocation11 [shape = 'u8[16384]{0}', space=vmem, size = 0x4000, scoped, tag = 'input window, operand 2, single buffered']
    #allocation12 [shape = 'u8[16384]{0}', space=vmem, size = 0x4000, scoped, tag = 'input window, operand 4, single buffered']
    #allocation13 [shape = 's32[1]{0}', space=sflag, size = 0x4, scoped, tag = 'scoped memory for tpu_custom_call.1']
    #allocation14 [shape = 'u8[16384]{0}', space=vmem, size = 0x4000, scoped, tag = 'input window, operand 5, single buffered']
    #allocation15 [shape = 'u8[2048]{0}', space=vmem, size = 0x800, scoped, tag = 'input window, operand 7, single buffered']
    #allocation16 [shape = 's32[1]{0}', space=sflag, size = 0x4, scoped, tag = 'scoped memory for tpu_custom_call.1']
    #allocation17 [shape = 'u8[2048]{0}', space=vmem, size = 0x800, scoped, tag = 'input window, operand 8, single buffered']
    #allocation18 [shape = 'u8[8192]{0}', space=vmem, size = 0x2000, scoped, tag = 'output window, operand 0, single buffered']
    #allocation19 [shape = 'u8[2048]{0}', space=vmem, size = 0x800, scoped, tag = 'output window, operand 1, single buffered']
    #allocation20 [shape = 's32[1]{0}', space=sflag, size = 0x4, scoped, tag = 'scoped memory for tpu_custom_call.1']
    #allocation21 [shape = 'u8[2048]{0}', space=vmem, size = 0x800, scoped, tag = 'output window, operand 2, single buffered']
    %19 = vsyncpa [#allocation7], 0
    %20 = vsyncpa [#allocation10], 0
    %21 = vsyncpa [#allocation13], 0
    %22 = vsyncpa [#allocation16], 0
    %23 = vsyncpa [#allocation8], 0
    %24 = vsyncpa [#allocation20], 0
    // Predicated region
    $region2: #{tpu_custom_call.1} parent=1 // pred_check
      _
    $region3: #{tpu_custom_call.1} parent=1 // pred_check_branch
      %26 = sbr.rel (0) target = $region5
    $region4: #{tpu_custom_call.1} parent=1 // pred_region
      %s28 = ssub.s32 256, 256
      %29 = vsyncadd [#allocation7], %s28
      %s30 = sshll.u32 [#allocation6], 4
      %s31 = int_to_ptr.vmem [resolvable:$true] %s30
      %36 = dma.hbm_to_vmem [thread:$0]  %s0, 256, %s31, [#allocation7], 128, 128, 8
    $region5: #{tpu_custom_call.1} parent=1 // pred_fallthru
      _
    // Predicated region
    $region6: #{tpu_custom_call.1} parent=1 // pred_check
      _
    $region7: #{tpu_custom_call.1} parent=1 // pred_check_branch
      %38 = sbr.rel (0) target = $region9
    $region8: #{tpu_custom_call.1} parent=1 // pred_region
      %s40 = ssub.s32 256, 256
      %41 = vsyncadd [#allocation10], %s40
      %s42 = sshll.u32 [#allocation9], 4
      %s43 = int_to_ptr.vmem [resolvable:$true] %s42
      %48 = dma.hbm_to_vmem [thread:$0]  %s1, 256, %s43, [#allocation10], 128, 128, 8
    $region9: #{tpu_custom_call.1} parent=1 // pred_fallthru
      _
    // Predicated region
    $region10: #{tpu_custom_call.1} parent=1 // pred_check
      _
    $region11: #{tpu_custom_call.1} parent=1 // pred_check_branch
      %50 = sbr.rel (0) target = $region13
    $region12: #{tpu_custom_call.1} parent=1 // pred_region
      %s52 = ssub.s32 512, 512
      %53 = vsyncadd [#allocation10], %s52
      %s54 = sshll.u32 [#allocation11], 4
      %s55 = int_to_ptr.vmem [resolvable:$true] %s54
      %60 = dma.hbm_to_vmem [thread:$0]  %s2, 512, %s55, [#allocation10], 128, 128, 8
    $region13: #{tpu_custom_call.1} parent=1 // pred_fallthru
      _
    // Predicated region
    $region14: #{tpu_custom_call.1} parent=1 // pred_check
      _
    $region15: #{tpu_custom_call.1} parent=1 // pred_check_branch
      %62 = sbr.rel (0) target = $region17
    $region16: #{tpu_custom_call.1} parent=1 // pred_region
      _
    $region17: #{tpu_custom_call.1} parent=1 // pred_fallthru
      _
    // Predicated region
    $region18: #{tpu_custom_call.1} parent=1 // pred_check
      _
    $region19: #{tpu_custom_call.1} parent=1 // pred_check_branch
      %64 = sbr.rel (0) target = $region21
    $region20: #{tpu_custom_call.1} parent=1 // pred_region
      %s66 = ssub.s32 512, 512
      %67 = vsyncadd [#allocation13], %s66
      %s68 = sshll.u32 [#allocation12], 4
      %s69 = int_to_ptr.vmem [resolvable:$true] %s68
      %74 = dma.hbm_to_vmem [thread:$0]  %s4, 512, %s69, [#allocation13], 128, 128, 8
    $region21: #{tpu_custom_call.1} parent=1 // pred_fallthru
      _
    // Predicated region
    $region22: #{tpu_custom_call.1} parent=1 // pred_check
      _
    $region23: #{tpu_custom_call.1} parent=1 // pred_check_branch
      %76 = sbr.rel (0) target = $region25
    $region24: #{tpu_custom_call.1} parent=1 // pred_region
      %s78 = ssub.s32 512, 512
      %79 = vsyncadd [#allocation13], %s78
      %s80 = sshll.u32 [#allocation14], 4
      %s81 = int_to_ptr.vmem [resolvable:$true] %s80
      %86 = dma.hbm_to_vmem [thread:$0]  %s5, 512, %s81, [#allocation13], 128, 128, 8
    $region25: #{tpu_custom_call.1} parent=1 // pred_fallthru
      _
    // Predicated region
    $region26: #{tpu_custom_call.1} parent=1 // pred_check
      _
    $region27: #{tpu_custom_call.1} parent=1 // pred_check_branch
      %88 = sbr.rel (0) target = $region29
    $region28: #{tpu_custom_call.1} parent=1 // pred_region
      _
    $region29: #{tpu_custom_call.1} parent=1 // pred_fallthru
      _
    // Predicated region
    $region30: #{tpu_custom_call.1} parent=1 // pred_check
      _
    $region31: #{tpu_custom_call.1} parent=1 // pred_check_branch
      %90 = sbr.rel (0) target = $region33
    $region32: #{tpu_custom_call.1} parent=1 // pred_region
      %s92 = ssub.s32 64, 64
      %93 = vsyncadd [#allocation16], %s92
      %s94 = sshll.u32 [#allocation15], 4
      %s95 = int_to_ptr.vmem [resolvable:$true] %s94
      %100 = dma.hbm_to_vmem [thread:$0]  %s7, 64, %s95, [#allocation16], 32, 32, 2
    $region33: #{tpu_custom_call.1} parent=1 // pred_fallthru
      _
    // Predicated region
    $region34: #{tpu_custom_call.1} parent=1 // pred_check
      _
    $region35: #{tpu_custom_call.1} parent=1 // pred_check_branch
      %102 = sbr.rel (0) target = $region37
    $region36: #{tpu_custom_call.1} parent=1 // pred_region
      %s104 = ssub.s32 64, 64
      %105 = vsyncadd [#allocation16], %s104
      %s106 = sshll.u32 [#allocation17], 4
      %s107 = int_to_ptr.vmem [resolvable:$true] %s106
      %112 = dma.hbm_to_vmem [thread:$0]  %s8, 64, %s107, [#allocation16], 32, 32, 2
    $region37: #{tpu_custom_call.1} parent=1 // pred_fallthru
      _
    // Predicated region
    $region38: #{tpu_custom_call.1} parent=1 // pred_check
      _
    $region39: #{tpu_custom_call.1} parent=1 // pred_check_branch
      %114 = sbr.rel (0) target = $region41
    $region40: #{tpu_custom_call.1} parent=1 // pred_region
      _
    $region41: #{tpu_custom_call.1} parent=1 // pred_fallthru
      _
    // Predicated region
    $region42: #{tpu_custom_call.1} parent=1 // pred_check
      _
    $region43: #{tpu_custom_call.1} parent=1 // pred_check_branch
      %116 = sbr.rel (0) target = $region45
    $region44: #{tpu_custom_call.1} parent=1 // pred_region
      _
    $region45: #{tpu_custom_call.1} parent=1 // pred_fallthru
      _
    // Predicated region
    $region46: #{tpu_custom_call.1} parent=1 // pred_check
      _
    $region47: #{tpu_custom_call.1} parent=1 // pred_check_branch
      %118 = sbr.rel (0) target = $region49
    $region48: #{tpu_custom_call.1} parent=1 // pred_region
      %119 = dma.done [#allocation7], 256
    $region49: #{tpu_custom_call.1} parent=1 // pred_fallthru
      _
    // Predicated region
    $region50: #{tpu_custom_call.1} parent=1 // pred_check
      _
    $region51: #{tpu_custom_call.1} parent=1 // pred_check_branch
      %121 = sbr.rel (0) target = $region53
    $region52: #{tpu_custom_call.1} parent=1 // pred_region
      %122 = dma.done [#allocation10], 256
    $region53: #{tpu_custom_call.1} parent=1 // pred_fallthru
      _
    // Predicated region
    $region54: #{tpu_custom_call.1} parent=1 // pred_check
      _
    $region55: #{tpu_custom_call.1} parent=1 // pred_check_branch
      %124 = sbr.rel (0) target = $region57
    $region56: #{tpu_custom_call.1} parent=1 // pred_region
      %125 = dma.done [#allocation10], 512
    $region57: #{tpu_custom_call.1} parent=1 // pred_fallthru
      _
    // Predicated region
    $region58: #{tpu_custom_call.1} parent=1 // pred_check
      _
    $region59: #{tpu_custom_call.1} parent=1 // pred_check_branch
      %127 = sbr.rel (0) target = $region61
    $region60: #{tpu_custom_call.1} parent=1 // pred_region
      %128 = dma.done [#allocation13], 512
    $region61: #{tpu_custom_call.1} parent=1 // pred_fallthru
      _
    // Predicated region
    $region62: #{tpu_custom_call.1} parent=1 // pred_check
      _
    $region63: #{tpu_custom_call.1} parent=1 // pred_check_branch
      %130 = sbr.rel (0) target = $region65
    $region64: #{tpu_custom_call.1} parent=1 // pred_region
      %131 = dma.done [#allocation13], 512
    $region65: #{tpu_custom_call.1} parent=1 // pred_fallthru
      _
    // Predicated region
    $region66: #{tpu_custom_call.1} parent=1 // pred_check
      _
    $region67: #{tpu_custom_call.1} parent=1 // pred_check_branch
      %133 = sbr.rel (0) target = $region69
    $region68: #{tpu_custom_call.1} parent=1 // pred_region
      %134 = dma.done [#allocation16], 64
    $region69: #{tpu_custom_call.1} parent=1 // pred_fallthru
      _
    // Predicated region
    $region70: #{tpu_custom_call.1} parent=1 // pred_check
      _
    $region71: #{tpu_custom_call.1} parent=1 // pred_check_branch
      %136 = sbr.rel (0) target = $region73
    $region72: #{tpu_custom_call.1} parent=1 // pred_region
      %137 = dma.done [#allocation16], 64
    $region73: #{tpu_custom_call.1} parent=1 // pred_fallthru
      _
    %v138 = vld [vmem:[#allocation6] sm:$0xff]
    %v139 = vld [vmem:[#allocation6 + $0x8] sm:$0xff]
    %v140 = vld [vmem:[#allocation9] sm:$0xff]
    %v141 = vld [vmem:[#allocation9 + $0x8] sm:$0xff]
    %v142 = vld [vmem:[%s3] sm:$0x1]
    %v144 = vlaneseq
    %v145 = vshrl.u32 %v144, 7
    %v146 = vsub.s32 0, %v145
    %v147 = vrot.slane %v142, %v146
    %vm149 = vcmask 130048
    %v151 = vsel %vm149, %v138, 0
    %v154 = vsel %vm149, %v139, 0
    %156 = vmatprep.subr.mxu0 0.0
    %157 = vmatpush1.msra.mxu0 %v140
    %158 = vmatprep.subr.mxu0 0.0
    %159 = vmatpush1.msra.mxu0 %v141
    %160 = vmatprep.subr.mxu0 0.0
    %161 = vmatpush1.msra.mxu0 0.0
    %162 = vmatprep.subr.mxu0 0.0
    %163 = vmatpush1.msra.mxu0 0.0
    %164 = vmatprep.subr.mxu0 0.0
    %165 = vmatpush1.msra.mxu0 0.0
    %166 = vmatprep.subr.mxu0 0.0
    %167 = vmatpush1.msra.mxu0 0.0
    %168 = vmatprep.subr.mxu0 0.0
    %169 = vmatpush1.msra.mxu0 0.0
    %170 = vmatprep.subr.mxu0 0.0
    %171 = vmatpush1.msra.mxu0 0.0
    %172 = vmatprep.subr.mxu0 0.0
    %173 = vmatpush1.msra.mxu0 0.0
    %174 = vmatprep.subr.mxu0 0.0
    %175 = vmatpush1.msra.mxu0 0.0
    %176 = vmatprep.subr.mxu0 0.0
    %177 = vmatpush1.msra.mxu0 0.0
    %178 = vmatprep.subr.mxu0 0.0
    %179 = vmatpush1.msra.mxu0 0.0
    %180 = vmatprep.subr.mxu0 0.0
    %181 = vmatpush1.msra.mxu0 0.0
    %182 = vmatprep.subr.mxu0 0.0
    %183 = vmatpush1.msra.mxu0 0.0
    %184 = vmatprep.subr.mxu0 0.0
    %185 = vmatpush1.msra.mxu0 0.0
    %186 = vmatprep.subr.mxu0 0.0
    %187 = vmatpush1.msra.mxu0 0.0
    %188 = vmatprep.subr.mxu0 0.0
    %189 = vmatpush1.msra.mxu0 0.0
    %190 = vmatprep.subr.mxu0 0.0
    %191 = vmatpush1.msra.mxu0 0.0
    %192 = vmatprep.subr.mxu0 0.0
    %193 = vmatpush1.msra.mxu0 0.0
    %194 = vmatprep.subr.mxu0 0.0
    %195 = vmatpush1.msra.mxu0 0.0
    %196 = vmatprep.subr.mxu0 0.0
    %197 = vmatpush1.msra.mxu0 0.0
    %198 = vmatprep.subr.mxu0 0.0
    %199 = vmatpush1.msra.mxu0 0.0
    %200 = vmatprep.subr.mxu0 0.0
    %201 = vmatpush1.msra.mxu0 0.0
    %202 = vmatprep.subr.mxu0 0.0
    %203 = vmatpush1.msra.mxu0 0.0
    %204 = vmatprep.subr.mxu0 0.0
    %205 = vmatpush1.msra.mxu0 0.0
    %206 = vmatprep.subr.mxu0 0.0
    %207 = vmatpush1.msra.mxu0 0.0
    %208 = vmatprep.subr.mxu0 0.0
    %209 = vmatpush1.msra.mxu0 0.0
    %210 = vmatprep.subr.mxu0 0.0
    %211 = vmatpush1.msra.mxu0 0.0
    %212 = vmatprep.subr.mxu0 0.0
    %213 = vmatpush1.msra.mxu0 0.0
    %214 = vmatprep.subr.mxu0 0.0
    %215 = vmatpush1.msra.mxu0 0.0
    %216 = vmatprep.subr.mxu0 0.0
    %217 = vmatpush1.msra.mxu0 0.0
    %218 = vmatprep.subr.mxu0 0.0
    %219 = vmatpush1.msra.mxu0 0.0
    %220 = vmatprep.mubr.f32.mxu0 0.0
    %221 = vmatmul.mubr.f32.gmra.mrb[0].mxu0 %v151
    %v222 = vpop.f32.mrb[0].mxu0
    %v223 = vadd.f32 %v147, %v222
    %v224 = vpop.f32.mrb[0].mxu0
    %225 = vmatprep.mubr.f32.mxu0 0.0
    %226 = vmatmul.mubr.f32.gmra.mrb[0].mxu0 %v154
    %v227 = vpop.f32.mrb[0].mxu0
    %v228 = vadd.f32 %v147, %v227
    %v229 = vpop.f32.mrb[0].mxu0
    %230 = vdwg.mxu0
    %231 = vst [vmem:[#allocation3] sm:$0xff] %v223
    %232 = vst [vmem:[#allocation3 + $0x8] sm:$0xff] %v228
    %v233 = vld [vmem:[#allocation15] sm:$0x3]
    %vm234 = vcmask 254976
    %235 = vst.msk [vmem:[#allocation4] sm:$0x3] %vm234, %v233
    %v236 = vld [vmem:[#allocation17] sm:$0x3]
    %237 = vst.msk [vmem:[#allocation5] sm:$0x3] %vm234, %v236
    %v238 = vld [vmem:[#allocation4] sm:$0x3]
    %v239 = vld [vmem:[#allocation5] sm:$0x3]
    %v240 = vld [vmem:[#allocation3] sm:$0x3]
    %v241 = vld [vmem:[#allocation11] sm:$0xff]
    %v242 = vld [vmem:[#allocation11 + $0x8] sm:$0xff]
    %v243 = vld [vmem:[#allocation11 + $0x10] sm:$0xff]
    %v244 = vld [vmem:[#allocation11 + $0x18] sm:$0xff]
    %vm245 = vcmask 261120
    %v247 = vsel %vm245, %v238, 0
    %249 = vmatprep.subr.mxu0 0.0
    %250 = vmatpush1.msra.mxu0 %v241
    %251 = vmatprep.subr.mxu0 0.0
    %252 = vmatpush1.msra.mxu0 %v242
    %253 = vmatprep.subr.mxu0 0.0
    %254 = vmatpush1.msra.mxu0 %v243
    %255 = vmatprep.subr.mxu0 0.0
    %256 = vmatpush1.msra.mxu0 %v244
    %257 = vmatprep.subr.mxu0 0.0
    %258 = vmatpush1.msra.mxu0 0.0
    %259 = vmatprep.subr.mxu0 0.0
    %260 = vmatpush1.msra.mxu0 0.0
    %261 = vmatprep.subr.mxu0 0.0
    %262 = vmatpush1.msra.mxu0 0.0
    %263 = vmatprep.subr.mxu0 0.0
    %264 = vmatpush1.msra.mxu0 0.0
    %265 = vmatprep.subr.mxu0 0.0
    %266 = vmatpush1.msra.mxu0 0.0
    %267 = vmatprep.subr.mxu0 0.0
    %268 = vmatpush1.msra.mxu0 0.0
    %269 = vmatprep.subr.mxu0 0.0
    %270 = vmatpush1.msra.mxu0 0.0
    %271 = vmatprep.subr.mxu0 0.0
    %272 = vmatpush1.msra.mxu0 0.0
    %273 = vmatprep.subr.mxu0 0.0
    %274 = vmatpush1.msra.mxu0 0.0
    %275 = vmatprep.subr.mxu0 0.0
    %276 = vmatpush1.msra.mxu0 0.0
    %277 = vmatprep.subr.mxu0 0.0
    %278 = vmatpush1.msra.mxu0 0.0
    %279 = vmatprep.subr.mxu0 0.0
    %280 = vmatpush1.msra.mxu0 0.0
    %281 = vmatprep.subr.mxu0 0.0
    %282 = vmatpush1.msra.mxu0 0.0
    %283 = vmatprep.subr.mxu0 0.0
    %284 = vmatpush1.msra.mxu0 0.0
    %285 = vmatprep.subr.mxu0 0.0
    %286 = vmatpush1.msra.mxu0 0.0
    %287 = vmatprep.subr.mxu0 0.0
    %288 = vmatpush1.msra.mxu0 0.0
    %289 = vmatprep.subr.mxu0 0.0
    %290 = vmatpush1.msra.mxu0 0.0
    %291 = vmatprep.subr.mxu0 0.0
    %292 = vmatpush1.msra.mxu0 0.0
    %293 = vmatprep.subr.mxu0 0.0
    %294 = vmatpush1.msra.mxu0 0.0
    %295 = vmatprep.subr.mxu0 0.0
    %296 = vmatpush1.msra.mxu0 0.0
    %297 = vmatprep.subr.mxu0 0.0
    %298 = vmatpush1.msra.mxu0 0.0
    %299 = vmatprep.subr.mxu0 0.0
    %300 = vmatpush1.msra.mxu0 0.0
    %301 = vmatprep.subr.mxu0 0.0
    %302 = vmatpush1.msra.mxu0 0.0
    %303 = vmatprep.subr.mxu0 0.0
    %304 = vmatpush1.msra.mxu0 0.0
    %305 = vmatprep.subr.mxu0 0.0
    %306 = vmatpush1.msra.mxu0 0.0
    %307 = vmatprep.subr.mxu0 0.0
    %308 = vmatpush1.msra.mxu0 0.0
    %309 = vmatprep.subr.mxu0 0.0
    %310 = vmatpush1.msra.mxu0 0.0
    %311 = vmatprep.subr.mxu0 0.0
    %312 = vmatpush1.msra.mxu0 0.0
    %313 = vmatprep.mubr.f32.mxu0 0.0
    %314 = vmatmul.mubr.f32.gmra.mrb[0].mxu0 %v247
    %v315 = vpop.f32.mrb[0].mxu0
    %v316 = vadd.f32 0.0, %v315
    %v317 = vpop.f32.mrb[0].mxu0
    %318 = vdwg.mxu0
    %v319 = vadd.f32 %v240, %v316
    %v320 = vxor.u32 %v319, 2147483648
    %v321 = vmul.f32 %v320, 1.442695
    %v322 = vpow.pop %v321
    %v323 = vadd.f32 %v322, 1.0
    %v324 = vrcp.pop %v323
    %v325 = vmul.f32 1.0, %v324
    %v326 = vtanh.pop %v319
    %328 = vrot.lane.b32.xlu0 %v239, 32
    %v329 = vpop.permute.xlu0 %328
    %v331 = vmul.f32 %v325, %v329
    %333 = vrot.lane.b32.xlu0 %v326, 64
    %v334 = vpop.permute.xlu0 %333
    %v336 = vmul.f32 %v325, %v334
    %338 = vrot.lane.b32.xlu0 %v336, 32
    %v339 = vpop.permute.xlu0 %338
    %v341 = vadd.f32 %v331, %v339
    %v342 = vtanh.pop %v341
    %344 = vrot.lane.b32.xlu0 %v342, 64
    %v345 = vpop.permute.xlu0 %344
    %v347 = vmul.f32 %v325, %v345
    %349 = vrot.lane.b32.xlu0 %v347, 32
    %v350 = vpop.permute.xlu0 %349
    %352 = vst.msk [vmem:[#allocation4] sm:$0x3] %vm234, %v350
    %354 = vrot.lane.b32.xlu0 %v341, 96
    %v355 = vpop.permute.xlu0 %354
    %357 = vst.msk [vmem:[#allocation5] sm:$0x3] %vm234, %v355
    %358 = vst.msk [vmem:[#allocation2] sm:$0x3] %vm234, %v350
    %v359 = vld [vmem:[#allocation4] sm:$0x3]
    %v360 = vld [vmem:[#allocation5] sm:$0x3]
    %v361 = vld [vmem:[#allocation3 + $0x2] sm:$0x3]
    %v362 = vld [vmem:[#allocation11] sm:$0xff]
    %v363 = vld [vmem:[#allocation11 + $0x8] sm:$0xff]
    %v364 = vld [vmem:[#allocation11 + $0x10] sm:$0xff]
    %v365 = vld [vmem:[#allocation11 + $0x18] sm:$0xff]
    %v367 = vsel %vm245, %v359, 0
    %369 = vmatprep.subr.mxu0 0.0
    %370 = vmatpush1.msra.mxu0 %v362
    %371 = vmatprep.subr.mxu0 0.0
    %372 = vmatpush1.msra.mxu0 %v363
    %373 = vmatprep.subr.mxu0 0.0
    %374 = vmatpush1.msra.mxu0 %v364
    %375 = vmatprep.subr.mxu0 0.0
    %376 = vmatpush1.msra.mxu0 %v365
    %377 = vmatprep.subr.mxu0 0.0
    %378 = vmatpush1.msra.mxu0 0.0
    %379 = vmatprep.subr.mxu0 0.0
    %380 = vmatpush1.msra.mxu0 0.0
    %381 = vmatprep.subr.mxu0 0.0
    %382 = vmatpush1.msra.mxu0 0.0
    %383 = vmatprep.subr.mxu0 0.0
    %384 = vmatpush1.msra.mxu0 0.0
    %385 = vmatprep.subr.mxu0 0.0
    %386 = vmatpush1.msra.mxu0 0.0
    %387 = vmatprep.subr.mxu0 0.0
    %388 = vmatpush1.msra.mxu0 0.0
    %389 = vmatprep.subr.mxu0 0.0
    %390 = vmatpush1.msra.mxu0 0.0
    %391 = vmatprep.subr.mxu0 0.0
    %392 = vmatpush1.msra.mxu0 0.0
    %393 = vmatprep.subr.mxu0 0.0
    %394 = vmatpush1.msra.mxu0 0.0
    %395 = vmatprep.subr.mxu0 0.0
    %396 = vmatpush1.msra.mxu0 0.0
    %397 = vmatprep.subr.mxu0 0.0
    %398 = vmatpush1.msra.mxu0 0.0
    %399 = vmatprep.subr.mxu0 0.0
    %400 = vmatpush1.msra.mxu0 0.0
    %401 = vmatprep.subr.mxu0 0.0
    %402 = vmatpush1.msra.mxu0 0.0
    %403 = vmatprep.subr.mxu0 0.0
    %404 = vmatpush1.msra.mxu0 0.0
    %405 = vmatprep.subr.mxu0 0.0
    %406 = vmatpush1.msra.mxu0 0.0
    %407 = vmatprep.subr.mxu0 0.0
    %408 = vmatpush1.msra.mxu0 0.0
    %409 = vmatprep.subr.mxu0 0.0
    %410 = vmatpush1.msra.mxu0 0.0
    %411 = vmatprep.subr.mxu0 0.0
    %412 = vmatpush1.msra.mxu0 0.0
    %413 = vmatprep.subr.mxu0 0.0
    %414 = vmatpush1.msra.mxu0 0.0
    %415 = vmatprep.subr.mxu0 0.0
    %416 = vmatpush1.msra.mxu0 0.0
    %417 = vmatprep.subr.mxu0 0.0
    %418 = vmatpush1.msra.mxu0 0.0
    %419 = vmatprep.subr.mxu0 0.0
    %420 = vmatpush1.msra.mxu0 0.0
    %421 = vmatprep.subr.mxu0 0.0
    %422 = vmatpush1.msra.mxu0 0.0
    %423 = vmatprep.subr.mxu0 0.0
    %424 = vmatpush1.msra.mxu0 0.0
    %425 = vmatprep.subr.mxu0 0.0
    %426 = vmatpush1.msra.mxu0 0.0
    %427 = vmatprep.subr.mxu0 0.0
    %428 = vmatpush1.msra.mxu0 0.0
    %429 = vmatprep.subr.mxu0 0.0
    %430 = vmatpush1.msra.mxu0 0.0
    %431 = vmatprep.subr.mxu0 0.0
    %432 = vmatpush1.msra.mxu0 0.0
    %433 = vmatprep.mubr.f32.mxu0 0.0
    %434 = vmatmul.mubr.f32.gmra.mrb[0].mxu0 %v367
    %v435 = vpop.f32.mrb[0].mxu0
    %v436 = vadd.f32 0.0, %v435
    %v437 = vpop.f32.mrb[0].mxu0
    %438 = vdwg.mxu0
    %v439 = vadd.f32 %v361, %v436
    %v440 = vxor.u32 %v439, 2147483648
    %v441 = vmul.f32 %v440, 1.442695
    %v442 = vpow.pop %v441
    %v443 = vadd.f32 %v442, 1.0
    %v444 = vrcp.pop %v443
    %v445 = vmul.f32 1.0, %v444
    %v446 = vtanh.pop %v439
    %448 = vrot.lane.b32.xlu0 %v360, 32
    %v449 = vpop.permute.xlu0 %448
    %v451 = vmul.f32 %v445, %v449
    %453 = vrot.lane.b32.xlu0 %v446, 64
    %v454 = vpop.permute.xlu0 %453
    %v456 = vmul.f32 %v445, %v454
    %458 = vrot.lane.b32.xlu0 %v456, 32
    %v459 = vpop.permute.xlu0 %458
    %v461 = vadd.f32 %v451, %v459
    %v462 = vtanh.pop %v461
    %464 = vrot.lane.b32.xlu0 %v462, 64
    %v465 = vpop.permute.xlu0 %464
    %v467 = vmul.f32 %v445, %v465
    %469 = vrot.lane.b32.xlu0 %v467, 32
    %v470 = vpop.permute.xlu0 %469
    %472 = vst.msk [vmem:[#allocation4] sm:$0x3] %vm234, %v470
    %474 = vrot.lane.b32.xlu0 %v461, 96
    %v475 = vpop.permute.xlu0 %474
    %477 = vst.msk [vmem:[#allocation5] sm:$0x3] %vm234, %v475
    %478 = vst.msk [vmem:[#allocation2 + $0x2] sm:$0x3] %vm234, %v470
    %v479 = vld [vmem:[#allocation4] sm:$0x3]
    %v480 = vld [vmem:[#allocation5] sm:$0x3]
    %v481 = vld [vmem:[#allocation3 + $0x4] sm:$0x3]
    %v482 = vld [vmem:[#allocation11] sm:$0xff]
    %v483 = vld [vmem:[#allocation11 + $0x8] sm:$0xff]
    %v484 = vld [vmem:[#allocation11 + $0x10] sm:$0xff]
    %v485 = vld [vmem:[#allocation11 + $0x18] sm:$0xff]
    %v487 = vsel %vm245, %v479, 0
    %489 = vmatprep.subr.mxu0 0.0
    %490 = vmatpush1.msra.mxu0 %v482
    %491 = vmatprep.subr.mxu0 0.0
    %492 = vmatpush1.msra.mxu0 %v483
    %493 = vmatprep.subr.mxu0 0.0
    %494 = vmatpush1.msra.mxu0 %v484
    %495 = vmatprep.subr.mxu0 0.0
    %496 = vmatpush1.msra.mxu0 %v485
    %497 = vmatprep.subr.mxu0 0.0
    %498 = vmatpush1.msra.mxu0 0.0
    %499 = vmatprep.subr.mxu0 0.0
    %500 = vmatpush1.msra.mxu0 0.0
    %501 = vmatprep.subr.mxu0 0.0
    %502 = vmatpush1.msra.mxu0 0.0
    %503 = vmatprep.subr.mxu0 0.0
    %504 = vmatpush1.msra.mxu0 0.0
    %505 = vmatprep.subr.mxu0 0.0
    %506 = vmatpush1.msra.mxu0 0.0
    %507 = vmatprep.subr.mxu0 0.0
    %508 = vmatpush1.msra.mxu0 0.0
    %509 = vmatprep.subr.mxu0 0.0
    %510 = vmatpush1.msra.mxu0 0.0
    %511 = vmatprep.subr.mxu0 0.0
    %512 = vmatpush1.msra.mxu0 0.0
    %513 = vmatprep.subr.mxu0 0.0
    %514 = vmatpush1.msra.mxu0 0.0
    %515 = vmatprep.subr.mxu0 0.0
    %516 = vmatpush1.msra.mxu0 0.0
    %517 = vmatprep.subr.mxu0 0.0
    %518 = vmatpush1.msra.mxu0 0.0
    %519 = vmatprep.subr.mxu0 0.0
    %520 = vmatpush1.msra.mxu0 0.0
    %521 = vmatprep.subr.mxu0 0.0
    %522 = vmatpush1.msra.mxu0 0.0
    %523 = vmatprep.subr.mxu0 0.0
    %524 = vmatpush1.msra.mxu0 0.0
    %525 = vmatprep.subr.mxu0 0.0
    %526 = vmatpush1.msra.mxu0 0.0
    %527 = vmatprep.subr.mxu0 0.0
    %528 = vmatpush1.msra.mxu0 0.0
    %529 = vmatprep.subr.mxu0 0.0
    %530 = vmatpush1.msra.mxu0 0.0
    %531 = vmatprep.subr.mxu0 0.0
    %532 = vmatpush1.msra.mxu0 0.0
    %533 = vmatprep.subr.mxu0 0.0
    %534 = vmatpush1.msra.mxu0 0.0
    %535 = vmatprep.subr.mxu0 0.0
    %536 = vmatpush1.msra.mxu0 0.0
    %537 = vmatprep.subr.mxu0 0.0
    %538 = vmatpush1.msra.mxu0 0.0
    %539 = vmatprep.subr.mxu0 0.0
    %540 = vmatpush1.msra.mxu0 0.0
    %541 = vmatprep.subr.mxu0 0.0
    %542 = vmatpush1.msra.mxu0 0.0
    %543 = vmatprep.subr.mxu0 0.0
    %544 = vmatpush1.msra.mxu0 0.0
    %545 = vmatprep.subr.mxu0 0.0
    %546 = vmatpush1.msra.mxu0 0.0
    %547 = vmatprep.subr.mxu0 0.0
    %548 = vmatpush1.msra.mxu0 0.0
    %549 = vmatprep.subr.mxu0 0.0
    %550 = vmatpush1.msra.mxu0 0.0
    %551 = vmatprep.subr.mxu0 0.0
    %552 = vmatpush1.msra.mxu0 0.0
    %553 = vmatprep.mubr.f32.mxu0 0.0
    %554 = vmatmul.mubr.f32.gmra.mrb[0].mxu0 %v487
    %v555 = vpop.f32.mrb[0].mxu0
    %v556 = vadd.f32 0.0, %v555
    %v557 = vpop.f32.mrb[0].mxu0
    %558 = vdwg.mxu0
    %v559 = vadd.f32 %v481, %v556
    %v560 = vxor.u32 %v559, 2147483648
    %v561 = vmul.f32 %v560, 1.442695
    %v562 = vpow.pop %v561
    %v563 = vadd.f32 %v562, 1.0
    %v564 = vrcp.pop %v563
    %v565 = vmul.f32 1.0, %v564
    %v566 = vtanh.pop %v559
    %568 = vrot.lane.b32.xlu0 %v480, 32
    %v569 = vpop.permute.xlu0 %568
    %v571 = vmul.f32 %v565, %v569
    %573 = vrot.lane.b32.xlu0 %v566, 64
    %v574 = vpop.permute.xlu0 %573
    %v576 = vmul.f32 %v565, %v574
    %578 = vrot.lane.b32.xlu0 %v576, 32
    %v579 = vpop.permute.xlu0 %578
    %v581 = vadd.f32 %v571, %v579
    %v582 = vtanh.pop %v581
    %584 = vrot.lane.b32.xlu0 %v582, 64
    %v585 = vpop.permute.xlu0 %584
    %v587 = vmul.f32 %v565, %v585
    %589 = vrot.lane.b32.xlu0 %v587, 32
    %v590 = vpop.permute.xlu0 %589
    %592 = vst.msk [vmem:[#allocation4] sm:$0x3] %vm234, %v590
    %594 = vrot.lane.b32.xlu0 %v581, 96
    %v595 = vpop.permute.xlu0 %594
    %597 = vst.msk [vmem:[#allocation5] sm:$0x3] %vm234, %v595
    %598 = vst.msk [vmem:[#allocation2 + $0x4] sm:$0x3] %vm234, %v590
    %v599 = vld [vmem:[#allocation4] sm:$0x3]
    %v600 = vld [vmem:[#allocation5] sm:$0x3]
    %v601 = vld [vmem:[#allocation3 + $0x6] sm:$0x3]
    %v602 = vld [vmem:[#allocation11] sm:$0xff]
    %v603 = vld [vmem:[#allocation11 + $0x8] sm:$0xff]
    %v604 = vld [vmem:[#allocation11 + $0x10] sm:$0xff]
    %v605 = vld [vmem:[#allocation11 + $0x18] sm:$0xff]
    %v607 = vsel %vm245, %v599, 0
    %609 = vmatprep.subr.mxu0 0.0
    %610 = vmatpush1.msra.mxu0 %v602
    %611 = vmatprep.subr.mxu0 0.0
    %612 = vmatpush1.msra.mxu0 %v603
    %613 = vmatprep.subr.mxu0 0.0
    %614 = vmatpush1.msra.mxu0 %v604
    %615 = vmatprep.subr.mxu0 0.0
    %616 = vmatpush1.msra.mxu0 %v605
    %617 = vmatprep.subr.mxu0 0.0
    %618 = vmatpush1.msra.mxu0 0.0
    %619 = vmatprep.subr.mxu0 0.0
    %620 = vmatpush1.msra.mxu0 0.0
    %621 = vmatprep.subr.mxu0 0.0
    %622 = vmatpush1.msra.mxu0 0.0
    %623 = vmatprep.subr.mxu0 0.0
    %624 = vmatpush1.msra.mxu0 0.0
    %625 = vmatprep.subr.mxu0 0.0
    %626 = vmatpush1.msra.mxu0 0.0
    %627 = vmatprep.subr.mxu0 0.0
    %628 = vmatpush1.msra.mxu0 0.0
    %629 = vmatprep.subr.mxu0 0.0
    %630 = vmatpush1.msra.mxu0 0.0
    %631 = vmatprep.subr.mxu0 0.0
    %632 = vmatpush1.msra.mxu0 0.0
    %633 = vmatprep.subr.mxu0 0.0
    %634 = vmatpush1.msra.mxu0 0.0
    %635 = vmatprep.subr.mxu0 0.0
    %636 = vmatpush1.msra.mxu0 0.0
    %637 = vmatprep.subr.mxu0 0.0
    %638 = vmatpush1.msra.mxu0 0.0
    %639 = vmatprep.subr.mxu0 0.0
    %640 = vmatpush1.msra.mxu0 0.0
    %641 = vmatprep.subr.mxu0 0.0
    %642 = vmatpush1.msra.mxu0 0.0
    %643 = vmatprep.subr.mxu0 0.0
    %644 = vmatpush1.msra.mxu0 0.0
    %645 = vmatprep.subr.mxu0 0.0
    %646 = vmatpush1.msra.mxu0 0.0
    %647 = vmatprep.subr.mxu0 0.0
    %648 = vmatpush1.msra.mxu0 0.0
    %649 = vmatprep.subr.mxu0 0.0
    %650 = vmatpush1.msra.mxu0 0.0
    %651 = vmatprep.subr.mxu0 0.0
    %652 = vmatpush1.msra.mxu0 0.0
    %653 = vmatprep.subr.mxu0 0.0
    %654 = vmatpush1.msra.mxu0 0.0
    %655 = vmatprep.subr.mxu0 0.0
    %656 = vmatpush1.msra.mxu0 0.0
    %657 = vmatprep.subr.mxu0 0.0
    %658 = vmatpush1.msra.mxu0 0.0
    %659 = vmatprep.subr.mxu0 0.0
    %660 = vmatpush1.msra.mxu0 0.0
    %661 = vmatprep.subr.mxu0 0.0
    %662 = vmatpush1.msra.mxu0 0.0
    %663 = vmatprep.subr.mxu0 0.0
    %664 = vmatpush1.msra.mxu0 0.0
    %665 = vmatprep.subr.mxu0 0.0
    %666 = vmatpush1.msra.mxu0 0.0
    %667 = vmatprep.subr.mxu0 0.0
    %668 = vmatpush1.msra.mxu0 0.0
    %669 = vmatprep.subr.mxu0 0.0
    %670 = vmatpush1.msra.mxu0 0.0
    %671 = vmatprep.subr.mxu0 0.0
    %672 = vmatpush1.msra.mxu0 0.0
    %673 = vmatprep.mubr.f32.mxu0 0.0
    %674 = vmatmul.mubr.f32.gmra.mrb[0].mxu0 %v607
    %v675 = vpop.f32.mrb[0].mxu0
    %v676 = vadd.f32 0.0, %v675
    %v677 = vpop.f32.mrb[0].mxu0
    %678 = vdwg.mxu0
    %v679 = vadd.f32 %v601, %v676
    %v680 = vxor.u32 %v679, 2147483648
    %v681 = vmul.f32 %v680, 1.442695
    %v682 = vpow.pop %v681
    %v683 = vadd.f32 %v682, 1.0
    %v684 = vrcp.pop %v683
    %v685 = vmul.f32 1.0, %v684
    %v686 = vtanh.pop %v679
    %688 = vrot.lane.b32.xlu0 %v600, 32
    %v689 = vpop.permute.xlu0 %688
    %v691 = vmul.f32 %v685, %v689
    %693 = vrot.lane.b32.xlu0 %v686, 64
    %v694 = vpop.permute.xlu0 %693
    %v696 = vmul.f32 %v685, %v694
    %698 = vrot.lane.b32.xlu0 %v696, 32
    %v699 = vpop.permute.xlu0 %698
    %v701 = vadd.f32 %v691, %v699
    %v702 = vtanh.pop %v701
    %704 = vrot.lane.b32.xlu0 %v702, 64
    %v705 = vpop.permute.xlu0 %704
    %v707 = vmul.f32 %v685, %v705
    %709 = vrot.lane.b32.xlu0 %v707, 32
    %v710 = vpop.permute.xlu0 %709
    %712 = vst.msk [vmem:[#allocation4] sm:$0x3] %vm234, %v710
    %714 = vrot.lane.b32.xlu0 %v701, 96
    %v715 = vpop.permute.xlu0 %714
    %717 = vst.msk [vmem:[#allocation5] sm:$0x3] %vm234, %v715
    %718 = vst.msk [vmem:[#allocation2 + $0x6] sm:$0x3] %vm234, %v710
    %v719 = vld [vmem:[#allocation4] sm:$0x3]
    %v720 = vld [vmem:[#allocation5] sm:$0x3]
    %v721 = vld [vmem:[#allocation3 + $0x8] sm:$0x3]
    %v722 = vld [vmem:[#allocation11] sm:$0xff]
    %v723 = vld [vmem:[#allocation11 + $0x8] sm:$0xff]
    %v724 = vld [vmem:[#allocation11 + $0x10] sm:$0xff]
    %v725 = vld [vmem:[#allocation11 + $0x18] sm:$0xff]
    %v727 = vsel %vm245, %v719, 0
    %729 = vmatprep.subr.mxu0 0.0
    %730 = vmatpush1.msra.mxu0 %v722
    %731 = vmatprep.subr.mxu0 0.0
    %732 = vmatpush1.msra.mxu0 %v723
    %733 = vmatprep.subr.mxu0 0.0
    %734 = vmatpush1.msra.mxu0 %v724
    %735 = vmatprep.subr.mxu0 0.0
    %736 = vmatpush1.msra.mxu0 %v725
    %737 = vmatprep.subr.mxu0 0.0
    %738 = vmatpush1.msra.mxu0 0.0
    %739 = vmatprep.subr.mxu0 0.0
    %740 = vmatpush1.msra.mxu0 0.0
    %741 = vmatprep.subr.mxu0 0.0
    %742 = vmatpush1.msra.mxu0 0.0
    %743 = vmatprep.subr.mxu0 0.0
    %744 = vmatpush1.msra.mxu0 0.0
    %745 = vmatprep.subr.mxu0 0.0
    %746 = vmatpush1.msra.mxu0 0.0
    %747 = vmatprep.subr.mxu0 0.0
    %748 = vmatpush1.msra.mxu0 0.0
    %749 = vmatprep.subr.mxu0 0.0
    %750 = vmatpush1.msra.mxu0 0.0
    %751 = vmatprep.subr.mxu0 0.0
    %752 = vmatpush1.msra.mxu0 0.0
    %753 = vmatprep.subr.mxu0 0.0
    %754 = vmatpush1.msra.mxu0 0.0
    %755 = vmatprep.subr.mxu0 0.0
    %756 = vmatpush1.msra.mxu0 0.0
    %757 = vmatprep.subr.mxu0 0.0
    %758 = vmatpush1.msra.mxu0 0.0
    %759 = vmatprep.subr.mxu0 0.0
    %760 = vmatpush1.msra.mxu0 0.0
    %761 = vmatprep.subr.mxu0 0.0
    %762 = vmatpush1.msra.mxu0 0.0
    %763 = vmatprep.subr.mxu0 0.0
    %764 = vmatpush1.msra.mxu0 0.0
    %765 = vmatprep.subr.mxu0 0.0
    %766 = vmatpush1.msra.mxu0 0.0
    %767 = vmatprep.subr.mxu0 0.0
    %768 = vmatpush1.msra.mxu0 0.0
    %769 = vmatprep.subr.mxu0 0.0
    %770 = vmatpush1.msra.mxu0 0.0
    %771 = vmatprep.subr.mxu0 0.0
    %772 = vmatpush1.msra.mxu0 0.0
    %773 = vmatprep.subr.mxu0 0.0
    %774 = vmatpush1.msra.mxu0 0.0
    %775 = vmatprep.subr.mxu0 0.0
    %776 = vmatpush1.msra.mxu0 0.0
    %777 = vmatprep.subr.mxu0 0.0
    %778 = vmatpush1.msra.mxu0 0.0
    %779 = vmatprep.subr.mxu0 0.0
    %780 = vmatpush1.msra.mxu0 0.0
    %781 = vmatprep.subr.mxu0 0.0
    %782 = vmatpush1.msra.mxu0 0.0
    %783 = vmatprep.subr.mxu0 0.0
    %784 = vmatpush1.msra.mxu0 0.0
    %785 = vmatprep.subr.mxu0 0.0
    %786 = vmatpush1.msra.mxu0 0.0
    %787 = vmatprep.subr.mxu0 0.0
    %788 = vmatpush1.msra.mxu0 0.0
    %789 = vmatprep.subr.mxu0 0.0
    %790 = vmatpush1.msra.mxu0 0.0
    %791 = vmatprep.subr.mxu0 0.0
    %792 = vmatpush1.msra.mxu0 0.0
    %793 = vmatprep.mubr.f32.mxu0 0.0
    %794 = vmatmul.mubr.f32.gmra.mrb[0].mxu0 %v727
    %v795 = vpop.f32.mrb[0].mxu0
    %v796 = vadd.f32 0.0, %v795
    %v797 = vpop.f32.mrb[0].mxu0
    %798 = vdwg.mxu0
    %v799 = vadd.f32 %v721, %v796
    %v800 = vxor.u32 %v799, 2147483648
    %v801 = vmul.f32 %v800, 1.442695
    %v802 = vpow.pop %v801
    %v803 = vadd.f32 %v802, 1.0
    %v804 = vrcp.pop %v803
    %v805 = vmul.f32 1.0, %v804
    %v806 = vtanh.pop %v799
    %808 = vrot.lane.b32.xlu0 %v720, 32
    %v809 = vpop.permute.xlu0 %808
    %v811 = vmul.f32 %v805, %v809
    %813 = vrot.lane.b32.xlu0 %v806, 64
    %v814 = vpop.permute.xlu0 %813
    %v816 = vmul.f32 %v805, %v814
    %818 = vrot.lane.b32.xlu0 %v816, 32
    %v819 = vpop.permute.xlu0 %818
    %v821 = vadd.f32 %v811, %v819
    %v822 = vtanh.pop %v821
    %824 = vrot.lane.b32.xlu0 %v822, 64
    %v825 = vpop.permute.xlu0 %824
    %v827 = vmul.f32 %v805, %v825
    %829 = vrot.lane.b32.xlu0 %v827, 32
    %v830 = vpop.permute.xlu0 %829
    %832 = vst.msk [vmem:[#allocation4] sm:$0x3] %vm234, %v830
    %834 = vrot.lane.b32.xlu0 %v821, 96
    %v835 = vpop.permute.xlu0 %834
    %837 = vst.msk [vmem:[#allocation5] sm:$0x3] %vm234, %v835
    %838 = vst.msk [vmem:[#allocation2 + $0x8] sm:$0x3] %vm234, %v830
    %v839 = vld [vmem:[#allocation4] sm:$0x3]
    %v840 = vld [vmem:[#allocation5] sm:$0x3]
    %v841 = vld [vmem:[#allocation3 + $0xa] sm:$0x3]
    %v842 = vld [vmem:[#allocation11] sm:$0xff]
    %v843 = vld [vmem:[#allocation11 + $0x8] sm:$0xff]
    %v844 = vld [vmem:[#allocation11 + $0x10] sm:$0xff]
    %v845 = vld [vmem:[#allocation11 + $0x18] sm:$0xff]
    %v847 = vsel %vm245, %v839, 0
    %849 = vmatprep.subr.mxu0 0.0
    %850 = vmatpush1.msra.mxu0 %v842
    %851 = vmatprep.subr.mxu0 0.0
    %852 = vmatpush1.msra.mxu0 %v843
    %853 = vmatprep.subr.mxu0 0.0
    %854 = vmatpush1.msra.mxu0 %v844
    %855 = vmatprep.subr.mxu0 0.0
    %856 = vmatpush1.msra.mxu0 %v845
    %857 = vmatprep.subr.mxu0 0.0
    %858 = vmatpush1.msra.mxu0 0.0
    %859 = vmatprep.subr.mxu0 0.0
    %860 = vmatpush1.msra.mxu0 0.0
    %861 = vmatprep.subr.mxu0 0.0
    %862 = vmatpush1.msra.mxu0 0.0
    %863 = vmatprep.subr.mxu0 0.0
    %864 = vmatpush1.msra.mxu0 0.0
    %865 = vmatprep.subr.mxu0 0.0
    %866 = vmatpush1.msra.mxu0 0.0
    %867 = vmatprep.subr.mxu0 0.0
    %868 = vmatpush1.msra.mxu0 0.0
    %869 = vmatprep.subr.mxu0 0.0
    %870 = vmatpush1.msra.mxu0 0.0
    %871 = vmatprep.subr.mxu0 0.0
    %872 = vmatpush1.msra.mxu0 0.0
    %873 = vmatprep.subr.mxu0 0.0
    %874 = vmatpush1.msra.mxu0 0.0
    %875 = vmatprep.subr.mxu0 0.0
    %876 = vmatpush1.msra.mxu0 0.0
    %877 = vmatprep.subr.mxu0 0.0
    %878 = vmatpush1.msra.mxu0 0.0
    %879 = vmatprep.subr.mxu0 0.0
    %880 = vmatpush1.msra.mxu0 0.0
    %881 = vmatprep.subr.mxu0 0.0
    %882 = vmatpush1.msra.mxu0 0.0
    %883 = vmatprep.subr.mxu0 0.0
    %884 = vmatpush1.msra.mxu0 0.0
    %885 = vmatprep.subr.mxu0 0.0
    %886 = vmatpush1.msra.mxu0 0.0
    %887 = vmatprep.subr.mxu0 0.0
    %888 = vmatpush1.msra.mxu0 0.0
    %889 = vmatprep.subr.mxu0 0.0
    %890 = vmatpush1.msra.mxu0 0.0
    %891 = vmatprep.subr.mxu0 0.0
    %892 = vmatpush1.msra.mxu0 0.0
    %893 = vmatprep.subr.mxu0 0.0
    %894 = vmatpush1.msra.mxu0 0.0
    %895 = vmatprep.subr.mxu0 0.0
    %896 = vmatpush1.msra.mxu0 0.0
    %897 = vmatprep.subr.mxu0 0.0
    %898 = vmatpush1.msra.mxu0 0.0
    %899 = vmatprep.subr.mxu0 0.0
    %900 = vmatpush1.msra.mxu0 0.0
    %901 = vmatprep.subr.mxu0 0.0
    %902 = vmatpush1.msra.mxu0 0.0
    %903 = vmatprep.subr.mxu0 0.0
    %904 = vmatpush1.msra.mxu0 0.0
    %905 = vmatprep.subr.mxu0 0.0
    %906 = vmatpush1.msra.mxu0 0.0
    %907 = vmatprep.subr.mxu0 0.0
    %908 = vmatpush1.msra.mxu0 0.0
    %909 = vmatprep.subr.mxu0 0.0
    %910 = vmatpush1.msra.mxu0 0.0
    %911 = vmatprep.subr.mxu0 0.0
    %912 = vmatpush1.msra.mxu0 0.0
    %913 = vmatprep.mubr.f32.mxu0 0.0
    %914 = vmatmul.mubr.f32.gmra.mrb[0].mxu0 %v847
    %v915 = vpop.f32.mrb[0].mxu0
    %v916 = vadd.f32 0.0, %v915
    %v917 = vpop.f32.mrb[0].mxu0
    %918 = vdwg.mxu0
    %v919 = vadd.f32 %v841, %v916
    %v920 = vxor.u32 %v919, 2147483648
    %v921 = vmul.f32 %v920, 1.442695
    %v922 = vpow.pop %v921
    %v923 = vadd.f32 %v922, 1.0
    %v924 = vrcp.pop %v923
    %v925 = vmul.f32 1.0, %v924
    %v926 = vtanh.pop %v919
    %928 = vrot.lane.b32.xlu0 %v840, 32
    %v929 = vpop.permute.xlu0 %928
    %v931 = vmul.f32 %v925, %v929
    %933 = vrot.lane.b32.xlu0 %v926, 64
    %v934 = vpop.permute.xlu0 %933
    %v936 = vmul.f32 %v925, %v934
    %938 = vrot.lane.b32.xlu0 %v936, 32
    %v939 = vpop.permute.xlu0 %938
    %v941 = vadd.f32 %v931, %v939
    %v942 = vtanh.pop %v941
    %944 = vrot.lane.b32.xlu0 %v942, 64
    %v945 = vpop.permute.xlu0 %944
    %v947 = vmul.f32 %v925, %v945
    %949 = vrot.lane.b32.xlu0 %v947, 32
    %v950 = vpop.permute.xlu0 %949
    %952 = vst.msk [vmem:[#allocation4] sm:$0x3] %vm234, %v950
    %954 = vrot.lane.b32.xlu0 %v941, 96
    %v955 = vpop.permute.xlu0 %954
    %957 = vst.msk [vmem:[#allocation5] sm:$0x3] %vm234, %v955
    %958 = vst.msk [vmem:[#allocation2 + $0xa] sm:$0x3] %vm234, %v950
    %v959 = vld [vmem:[#allocation4] sm:$0x3]
    %v960 = vld [vmem:[#allocation5] sm:$0x3]
    %v961 = vld [vmem:[#allocation3 + $0xc] sm:$0x3]
    %v962 = vld [vmem:[#allocation11] sm:$0xff]
    %v963 = vld [vmem:[#allocation11 + $0x8] sm:$0xff]
    %v964 = vld [vmem:[#allocation11 + $0x10] sm:$0xff]
    %v965 = vld [vmem:[#allocation11 + $0x18] sm:$0xff]
    %v967 = vsel %vm245, %v959, 0
    %969 = vmatprep.subr.mxu0 0.0
    %970 = vmatpush1.msra.mxu0 %v962
    %971 = vmatprep.subr.mxu0 0.0
    %972 = vmatpush1.msra.mxu0 %v963
    %973 = vmatprep.subr.mxu0 0.0
    %974 = vmatpush1.msra.mxu0 %v964
    %975 = vmatprep.subr.mxu0 0.0
    %976 = vmatpush1.msra.mxu0 %v965
    %977 = vmatprep.subr.mxu0 0.0
    %978 = vmatpush1.msra.mxu0 0.0
    %979 = vmatprep.subr.mxu0 0.0
    %980 = vmatpush1.msra.mxu0 0.0
    %981 = vmatprep.subr.mxu0 0.0
    %982 = vmatpush1.msra.mxu0 0.0
    %983 = vmatprep.subr.mxu0 0.0
    %984 = vmatpush1.msra.mxu0 0.0
    %985 = vmatprep.subr.mxu0 0.0
    %986 = vmatpush1.msra.mxu0 0.0
    %987 = vmatprep.subr.mxu0 0.0
    %988 = vmatpush1.msra.mxu0 0.0
    %989 = vmatprep.subr.mxu0 0.0
    %990 = vmatpush1.msra.mxu0 0.0
    %991 = vmatprep.subr.mxu0 0.0
    %992 = vmatpush1.msra.mxu0 0.0
    %993 = vmatprep.subr.mxu0 0.0
    %994 = vmatpush1.msra.mxu0 0.0
    %995 = vmatprep.subr.mxu0 0.0
    %996 = vmatpush1.msra.mxu0 0.0
    %997 = vmatprep.subr.mxu0 0.0
    %998 = vmatpush1.msra.mxu0 0.0
    %999 = vmatprep.subr.mxu0 0.0
    %1000 = vmatpush1.msra.mxu0 0.0
    %1001 = vmatprep.subr.mxu0 0.0
    %1002 = vmatpush1.msra.mxu0 0.0
    %1003 = vmatprep.subr.mxu0 0.0
    %1004 = vmatpush1.msra.mxu0 0.0
    %1005 = vmatprep.subr.mxu0 0.0
    %1006 = vmatpush1.msra.mxu0 0.0
    %1007 = vmatprep.subr.mxu0 0.0
    %1008 = vmatpush1.msra.mxu0 0.0
    %1009 = vmatprep.subr.mxu0 0.0
    %1010 = vmatpush1.msra.mxu0 0.0
    %1011 = vmatprep.subr.mxu0 0.0
    %1012 = vmatpush1.msra.mxu0 0.0
    %1013 = vmatprep.subr.mxu0 0.0
    %1014 = vmatpush1.msra.mxu0 0.0
    %1015 = vmatprep.subr.mxu0 0.0
    %1016 = vmatpush1.msra.mxu0 0.0
    %1017 = vmatprep.subr.mxu0 0.0
    %1018 = vmatpush1.msra.mxu0 0.0
    %1019 = vmatprep.subr.mxu0 0.0
    %1020 = vmatpush1.msra.mxu0 0.0
    %1021 = vmatprep.subr.mxu0 0.0
    %1022 = vmatpush1.msra.mxu0 0.0
    %1023 = vmatprep.subr.mxu0 0.0
    %1024 = vmatpush1.msra.mxu0 0.0
    %1025 = vmatprep.subr.mxu0 0.0
    %1026 = vmatpush1.msra.mxu0 0.0
    %1027 = vmatprep.subr.mxu0 0.0
    %1028 = vmatpush1.msra.mxu0 0.0
    %1029 = vmatprep.subr.mxu0 0.0
    %1030 = vmatpush1.msra.mxu0 0.0
    %1031 = vmatprep.subr.mxu0 0.0
    %1032 = vmatpush1.msra.mxu0 0.0
    %1033 = vmatprep.mubr.f32.mxu0 0.0
    %1034 = vmatmul.mubr.f32.gmra.mrb[0].mxu0 %v967
    %v1035 = vpop.f32.mrb[0].mxu0
    %v1036 = vadd.f32 0.0, %v1035
    %v1037 = vpop.f32.mrb[0].mxu0
    %1038 = vdwg.mxu0
    %v1039 = vadd.f32 %v961, %v1036
    %v1040 = vxor.u32 %v1039, 2147483648
    %v1041 = vmul.f32 %v1040, 1.442695
    %v1042 = vpow.pop %v1041
    %v1043 = vadd.f32 %v1042, 1.0
    %v1044 = vrcp.pop %v1043
    %v1045 = vmul.f32 1.0, %v1044
    %v1046 = vtanh.pop %v1039
    %1048 = vrot.lane.b32.xlu0 %v960, 32
    %v1049 = vpop.permute.xlu0 %1048
    %v1051 = vmul.f32 %v1045, %v1049
    %1053 = vrot.lane.b32.xlu0 %v1046, 64
    %v1054 = vpop.permute.xlu0 %1053
    %v1056 = vmul.f32 %v1045, %v1054
    %1058 = vrot.lane.b32.xlu0 %v1056, 32
    %v1059 = vpop.permute.xlu0 %1058
    %v1061 = vadd.f32 %v1051, %v1059
    %v1062 = vtanh.pop %v1061
    %1064 = vrot.lane.b32.xlu0 %v1062, 64
    %v1065 = vpop.permute.xlu0 %1064
    %v1067 = vmul.f32 %v1045, %v1065
    %1069 = vrot.lane.b32.xlu0 %v1067, 32
    %v1070 = vpop.permute.xlu0 %1069
    %1072 = vst.msk [vmem:[#allocation4] sm:$0x3] %vm234, %v1070
    %1074 = vrot.lane.b32.xlu0 %v1061, 96
    %v1075 = vpop.permute.xlu0 %1074
    %1077 = vst.msk [vmem:[#allocation5] sm:$0x3] %vm234, %v1075
    %1078 = vst.msk [vmem:[#allocation2 + $0xc] sm:$0x3] %vm234, %v1070
    %v1079 = vld [vmem:[#allocation4] sm:$0x3]
    %v1080 = vld [vmem:[#allocation5] sm:$0x3]
    %v1081 = vld [vmem:[#allocation3 + $0xe] sm:$0x3]
    %v1082 = vld [vmem:[#allocation11] sm:$0xff]
    %v1083 = vld [vmem:[#allocation11 + $0x8] sm:$0xff]
    %v1084 = vld [vmem:[#allocation11 + $0x10] sm:$0xff]
    %v1085 = vld [vmem:[#allocation11 + $0x18] sm:$0xff]
    %v1087 = vsel %vm245, %v1079, 0
    %1089 = vmatprep.subr.mxu0 0.0
    %1090 = vmatpush1.msra.mxu0 %v1082
    %1091 = vmatprep.subr.mxu0 0.0
    %1092 = vmatpush1.msra.mxu0 %v1083
    %1093 = vmatprep.subr.mxu0 0.0
    %1094 = vmatpush1.msra.mxu0 %v1084
    %1095 = vmatprep.subr.mxu0 0.0
    %1096 = vmatpush1.msra.mxu0 %v1085
    %1097 = vmatprep.subr.mxu0 0.0
    %1098 = vmatpush1.msra.mxu0 0.0
    %1099 = vmatprep.subr.mxu0 0.0
    %1100 = vmatpush1.msra.mxu0 0.0
    %1101 = vmatprep.subr.mxu0 0.0
    %1102 = vmatpush1.msra.mxu0 0.0
    %1103 = vmatprep.subr.mxu0 0.0
    %1104 = vmatpush1.msra.mxu0 0.0
    %1105 = vmatprep.subr.mxu0 0.0
    %1106 = vmatpush1.msra.mxu0 0.0
    %1107 = vmatprep.subr.mxu0 0.0
    %1108 = vmatpush1.msra.mxu0 0.0
    %1109 = vmatprep.subr.mxu0 0.0
    %1110 = vmatpush1.msra.mxu0 0.0
    %1111 = vmatprep.subr.mxu0 0.0
    %1112 = vmatpush1.msra.mxu0 0.0
    %1113 = vmatprep.subr.mxu0 0.0
    %1114 = vmatpush1.msra.mxu0 0.0
    %1115 = vmatprep.subr.mxu0 0.0
    %1116 = vmatpush1.msra.mxu0 0.0
    %1117 = vmatprep.subr.mxu0 0.0
    %1118 = vmatpush1.msra.mxu0 0.0
    %1119 = vmatprep.subr.mxu0 0.0
    %1120 = vmatpush1.msra.mxu0 0.0
    %1121 = vmatprep.subr.mxu0 0.0
    %1122 = vmatpush1.msra.mxu0 0.0
    %1123 = vmatprep.subr.mxu0 0.0
    %1124 = vmatpush1.msra.mxu0 0.0
    %1125 = vmatprep.subr.mxu0 0.0
    %1126 = vmatpush1.msra.mxu0 0.0
    %1127 = vmatprep.subr.mxu0 0.0
    %1128 = vmatpush1.msra.mxu0 0.0
    %1129 = vmatprep.subr.mxu0 0.0
    %1130 = vmatpush1.msra.mxu0 0.0
    %1131 = vmatprep.subr.mxu0 0.0
    %1132 = vmatpush1.msra.mxu0 0.0
    %1133 = vmatprep.subr.mxu0 0.0
    %1134 = vmatpush1.msra.mxu0 0.0
    %1135 = vmatprep.subr.mxu0 0.0
    %1136 = vmatpush1.msra.mxu0 0.0
    %1137 = vmatprep.subr.mxu0 0.0
    %1138 = vmatpush1.msra.mxu0 0.0
    %1139 = vmatprep.subr.mxu0 0.0
    %1140 = vmatpush1.msra.mxu0 0.0
    %1141 = vmatprep.subr.mxu0 0.0
    %1142 = vmatpush1.msra.mxu0 0.0
    %1143 = vmatprep.subr.mxu0 0.0
    %1144 = vmatpush1.msra.mxu0 0.0
    %1145 = vmatprep.subr.mxu0 0.0
    %1146 = vmatpush1.msra.mxu0 0.0
    %1147 = vmatprep.subr.mxu0 0.0
    %1148 = vmatpush1.msra.mxu0 0.0
    %1149 = vmatprep.subr.mxu0 0.0
    %1150 = vmatpush1.msra.mxu0 0.0
    %1151 = vmatprep.subr.mxu0 0.0
    %1152 = vmatpush1.msra.mxu0 0.0
    %1153 = vmatprep.mubr.f32.mxu0 0.0
    %1154 = vmatmul.mubr.f32.gmra.mrb[0].mxu0 %v1087
    %v1155 = vpop.f32.mrb[0].mxu0
    %v1156 = vadd.f32 0.0, %v1155
    %v1157 = vpop.f32.mrb[0].mxu0
    %1158 = vdwg.mxu0
    %v1159 = vadd.f32 %v1081, %v1156
    %v1160 = vxor.u32 %v1159, 2147483648
    %v1161 = vmul.f32 %v1160, 1.442695
    %v1162 = vpow.pop %v1161
    %v1163 = vadd.f32 %v1162, 1.0
    %v1164 = vrcp.pop %v1163
    %v1165 = vmul.f32 1.0, %v1164
    %v1166 = vtanh.pop %v1159
    %1168 = vrot.lane.b32.xlu0 %v1080, 32
    %v1169 = vpop.permute.xlu0 %1168
    %v1171 = vmul.f32 %v1165, %v1169
    %1173 = vrot.lane.b32.xlu0 %v1166, 64
    %v1174 = vpop.permute.xlu0 %1173
    %v1176 = vmul.f32 %v1165, %v1174
    %1178 = vrot.lane.b32.xlu0 %v1176, 32
    %v1179 = vpop.permute.xlu0 %1178
    %v1181 = vadd.f32 %v1171, %v1179
    %v1182 = vtanh.pop %v1181
    %1184 = vrot.lane.b32.xlu0 %v1182, 64
    %v1185 = vpop.permute.xlu0 %1184
    %v1187 = vmul.f32 %v1165, %v1185
    %1189 = vrot.lane.b32.xlu0 %v1187, 32
    %v1190 = vpop.permute.xlu0 %1189
    %1192 = vst.msk [vmem:[#allocation4] sm:$0x3] %vm234, %v1190
    %1194 = vrot.lane.b32.xlu0 %v1181, 96
    %v1195 = vpop.permute.xlu0 %1194
    %1197 = vst.msk [vmem:[#allocation5] sm:$0x3] %vm234, %v1195
    %1198 = vst.msk [vmem:[#allocation2 + $0xe] sm:$0x3] %vm234, %v1190
    %v1199 = vld [vmem:[#allocation4] sm:$0x3]
    %1200 = vst.msk [vmem:[#allocation19] sm:$0x3] %vm234, %v1199
    %v1201 = vld [vmem:[#allocation5] sm:$0x3]
    %1202 = vst.msk [vmem:[#allocation21] sm:$0x3] %vm234, %v1201
    %v1203 = vld [vmem:[#allocation2] sm:$0xff]
    %v1204 = vld [vmem:[#allocation2 + $0x8] sm:$0xff]
    %v1205 = vld [vmem:[#allocation12] sm:$0xff]
    %v1206 = vld [vmem:[#allocation12 + $0x8] sm:$0xff]
    %v1207 = vld [vmem:[#allocation12 + $0x10] sm:$0xff]
    %v1208 = vld [vmem:[#allocation12 + $0x18] sm:$0xff]
    %v1209 = vld [vmem:[%s6] sm:$0x1]
    %v1211 = vlaneseq
    %v1212 = vshrl.u32 %v1211, 7
    %v1213 = vsub.s32 0, %v1212
    %v1214 = vrot.slane %v1209, %v1213
    %v1217 = vsel %vm245, %v1203, 0
    %v1220 = vsel %vm245, %v1204, 0
    %1222 = vmatprep.subr.mxu0 0.0
    %1223 = vmatpush1.msra.mxu0 %v1205
    %1224 = vmatprep.subr.mxu0 0.0
    %1225 = vmatpush1.msra.mxu0 %v1206
    %1226 = vmatprep.subr.mxu0 0.0
    %1227 = vmatpush1.msra.mxu0 %v1207
    %1228 = vmatprep.subr.mxu0 0.0
    %1229 = vmatpush1.msra.mxu0 %v1208
    %1230 = vmatprep.subr.mxu0 0.0
    %1231 = vmatpush1.msra.mxu0 0.0
    %1232 = vmatprep.subr.mxu0 0.0
    %1233 = vmatpush1.msra.mxu0 0.0
    %1234 = vmatprep.subr.mxu0 0.0
    %1235 = vmatpush1.msra.mxu0 0.0
    %1236 = vmatprep.subr.mxu0 0.0
    %1237 = vmatpush1.msra.mxu0 0.0
    %1238 = vmatprep.subr.mxu0 0.0
    %1239 = vmatpush1.msra.mxu0 0.0
    %1240 = vmatprep.subr.mxu0 0.0
    %1241 = vmatpush1.msra.mxu0 0.0
    %1242 = vmatprep.subr.mxu0 0.0
    %1243 = vmatpush1.msra.mxu0 0.0
    %1244 = vmatprep.subr.mxu0 0.0
    %1245 = vmatpush1.msra.mxu0 0.0
    %1246 = vmatprep.subr.mxu0 0.0
    %1247 = vmatpush1.msra.mxu0 0.0
    %1248 = vmatprep.subr.mxu0 0.0
    %1249 = vmatpush1.msra.mxu0 0.0
    %1250 = vmatprep.subr.mxu0 0.0
    %1251 = vmatpush1.msra.mxu0 0.0
    %1252 = vmatprep.subr.mxu0 0.0
    %1253 = vmatpush1.msra.mxu0 0.0
    %1254 = vmatprep.subr.mxu0 0.0
    %1255 = vmatpush1.msra.mxu0 0.0
    %1256 = vmatprep.subr.mxu0 0.0
    %1257 = vmatpush1.msra.mxu0 0.0
    %1258 = vmatprep.subr.mxu0 0.0
    %1259 = vmatpush1.msra.mxu0 0.0
    %1260 = vmatprep.subr.mxu0 0.0
    %1261 = vmatpush1.msra.mxu0 0.0
    %1262 = vmatprep.subr.mxu0 0.0
    %1263 = vmatpush1.msra.mxu0 0.0
    %1264 = vmatprep.subr.mxu0 0.0
    %1265 = vmatpush1.msra.mxu0 0.0
    %1266 = vmatprep.subr.mxu0 0.0
    %1267 = vmatpush1.msra.mxu0 0.0
    %1268 = vmatprep.subr.mxu0 0.0
    %1269 = vmatpush1.msra.mxu0 0.0
    %1270 = vmatprep.subr.mxu0 0.0
    %1271 = vmatpush1.msra.mxu0 0.0
    %1272 = vmatprep.subr.mxu0 0.0
    %1273 = vmatpush1.msra.mxu0 0.0
    %1274 = vmatprep.subr.mxu0 0.0
    %1275 = vmatpush1.msra.mxu0 0.0
    %1276 = vmatprep.subr.mxu0 0.0
    %1277 = vmatpush1.msra.mxu0 0.0
    %1278 = vmatprep.subr.mxu0 0.0
    %1279 = vmatpush1.msra.mxu0 0.0
    %1280 = vmatprep.subr.mxu0 0.0
    %1281 = vmatpush1.msra.mxu0 0.0
    %1282 = vmatprep.subr.mxu0 0.0
    %1283 = vmatpush1.msra.mxu0 0.0
    %1284 = vmatprep.subr.mxu0 0.0
    %1285 = vmatpush1.msra.mxu0 0.0
    %1286 = vmatprep.mubr.f32.mxu0 0.0
    %1287 = vmatmul.mubr.f32.gmra.mrb[0].mxu0 %v1217
    %v1288 = vpop.f32.mrb[0].mxu0
    %v1289 = vadd.f32 %v1214, %v1288
    %v1290 = vpop.f32.mrb[0].mxu0
    %1291 = vmatprep.mubr.f32.mxu0 0.0
    %1292 = vmatmul.mubr.f32.gmra.mrb[0].mxu0 %v1220
    %v1293 = vpop.f32.mrb[0].mxu0
    %v1294 = vadd.f32 %v1214, %v1293
    %v1295 = vpop.f32.mrb[0].mxu0
    %1296 = vdwg.mxu0
    %1297 = vst [vmem:[#allocation3] sm:$0xff] %v1289
    %1298 = vst [vmem:[#allocation3 + $0x8] sm:$0xff] %v1294
    %s1299 = scalar_lea.vmem [#allocation15], 2
    %v1300 = vld [vmem:[%s1299] sm:$0x3]
    %1301 = vst.msk [vmem:[#allocation4] sm:$0x3] %vm234, %v1300
    %s1302 = scalar_lea.vmem [#allocation17], 2
    %v1303 = vld [vmem:[%s1302] sm:$0x3]
    %1304 = vst.msk [vmem:[#allocation5] sm:$0x3] %vm234, %v1303
    %v1305 = vld [vmem:[#allocation4] sm:$0x3]
    %v1306 = vld [vmem:[#allocation5] sm:$0x3]
    %v1307 = vld [vmem:[#allocation3] sm:$0x3]
    %v1308 = vld [vmem:[#allocation14] sm:$0xff]
    %v1309 = vld [vmem:[#allocation14 + $0x8] sm:$0xff]
    %v1310 = vld [vmem:[#allocation14 + $0x10] sm:$0xff]
    %v1311 = vld [vmem:[#allocation14 + $0x18] sm:$0xff]
    %v1313 = vsel %vm245, %v1305, 0
    %1315 = vmatprep.subr.mxu0 0.0
    %1316 = vmatpush1.msra.mxu0 %v1308
    %1317 = vmatprep.subr.mxu0 0.0
    %1318 = vmatpush1.msra.mxu0 %v1309
    %1319 = vmatprep.subr.mxu0 0.0
    %1320 = vmatpush1.msra.mxu0 %v1310
    %1321 = vmatprep.subr.mxu0 0.0
    %1322 = vmatpush1.msra.mxu0 %v1311
    %1323 = vmatprep.subr.mxu0 0.0
    %1324 = vmatpush1.msra.mxu0 0.0
    %1325 = vmatprep.subr.mxu0 0.0
    %1326 = vmatpush1.msra.mxu0 0.0
    %1327 = vmatprep.subr.mxu0 0.0
    %1328 = vmatpush1.msra.mxu0 0.0
    %1329 = vmatprep.subr.mxu0 0.0
    %1330 = vmatpush1.msra.mxu0 0.0
    %1331 = vmatprep.subr.mxu0 0.0
    %1332 = vmatpush1.msra.mxu0 0.0
    %1333 = vmatprep.subr.mxu0 0.0
    %1334 = vmatpush1.msra.mxu0 0.0
    %1335 = vmatprep.subr.mxu0 0.0
    %1336 = vmatpush1.msra.mxu0 0.0
    %1337 = vmatprep.subr.mxu0 0.0
    %1338 = vmatpush1.msra.mxu0 0.0
    %1339 = vmatprep.subr.mxu0 0.0
    %1340 = vmatpush1.msra.mxu0 0.0
    %1341 = vmatprep.subr.mxu0 0.0
    %1342 = vmatpush1.msra.mxu0 0.0
    %1343 = vmatprep.subr.mxu0 0.0
    %1344 = vmatpush1.msra.mxu0 0.0
    %1345 = vmatprep.subr.mxu0 0.0
    %1346 = vmatpush1.msra.mxu0 0.0
    %1347 = vmatprep.subr.mxu0 0.0
    %1348 = vmatpush1.msra.mxu0 0.0
    %1349 = vmatprep.subr.mxu0 0.0
    %1350 = vmatpush1.msra.mxu0 0.0
    %1351 = vmatprep.subr.mxu0 0.0
    %1352 = vmatpush1.msra.mxu0 0.0
    %1353 = vmatprep.subr.mxu0 0.0
    %1354 = vmatpush1.msra.mxu0 0.0
    %1355 = vmatprep.subr.mxu0 0.0
    %1356 = vmatpush1.msra.mxu0 0.0
    %1357 = vmatprep.subr.mxu0 0.0
    %1358 = vmatpush1.msra.mxu0 0.0
    %1359 = vmatprep.subr.mxu0 0.0
    %1360 = vmatpush1.msra.mxu0 0.0
    %1361 = vmatprep.subr.mxu0 0.0
    %1362 = vmatpush1.msra.mxu0 0.0
    %1363 = vmatprep.subr.mxu0 0.0
    %1364 = vmatpush1.msra.mxu0 0.0
    %1365 = vmatprep.subr.mxu0 0.0
    %1366 = vmatpush1.msra.mxu0 0.0
    %1367 = vmatprep.subr.mxu0 0.0
    %1368 = vmatpush1.msra.mxu0 0.0
    %1369 = vmatprep.subr.mxu0 0.0
    %1370 = vmatpush1.msra.mxu0 0.0
    %1371 = vmatprep.subr.mxu0 0.0
    %1372 = vmatpush1.msra.mxu0 0.0
    %1373 = vmatprep.subr.mxu0 0.0
    %1374 = vmatpush1.msra.mxu0 0.0
    %1375 = vmatprep.subr.mxu0 0.0
    %1376 = vmatpush1.msra.mxu0 0.0
    %1377 = vmatprep.subr.mxu0 0.0
    %1378 = vmatpush1.msra.mxu0 0.0
    %1379 = vmatprep.mubr.f32.mxu0 0.0
    %1380 = vmatmul.mubr.f32.gmra.mrb[0].mxu0 %v1313
    %v1381 = vpop.f32.mrb[0].mxu0
    %v1382 = vadd.f32 0.0, %v1381
    %v1383 = vpop.f32.mrb[0].mxu0
    %1384 = vdwg.mxu0
    %v1385 = vadd.f32 %v1307, %v1382
    %v1386 = vxor.u32 %v1385, 2147483648
    %v1387 = vmul.f32 %v1386, 1.442695
    %v1388 = vpow.pop %v1387
    %v1389 = vadd.f32 %v1388, 1.0
    %v1390 = vrcp.pop %v1389
    %v1391 = vmul.f32 1.0, %v1390
    %v1392 = vtanh.pop %v1385
    %1394 = vrot.lane.b32.xlu0 %v1306, 32
    %v1395 = vpop.permute.xlu0 %1394
    %v1397 = vmul.f32 %v1391, %v1395
    %1399 = vrot.lane.b32.xlu0 %v1392, 64
    %v1400 = vpop.permute.xlu0 %1399
    %v1402 = vmul.f32 %v1391, %v1400
    %1404 = vrot.lane.b32.xlu0 %v1402, 32
    %v1405 = vpop.permute.xlu0 %1404
    %v1407 = vadd.f32 %v1397, %v1405
    %v1408 = vtanh.pop %v1407
    %1410 = vrot.lane.b32.xlu0 %v1408, 64
    %v1411 = vpop.permute.xlu0 %1410
    %v1413 = vmul.f32 %v1391, %v1411
    %1415 = vrot.lane.b32.xlu0 %v1413, 32
    %v1416 = vpop.permute.xlu0 %1415
    %1418 = vst.msk [vmem:[#allocation4] sm:$0x3] %vm234, %v1416
    %1420 = vrot.lane.b32.xlu0 %v1407, 96
    %v1421 = vpop.permute.xlu0 %1420
    %1423 = vst.msk [vmem:[#allocation5] sm:$0x3] %vm234, %v1421
    %1424 = vst.msk [vmem:[#allocation2] sm:$0x3] %vm234, %v1416
    %v1425 = vld [vmem:[#allocation4] sm:$0x3]
    %v1426 = vld [vmem:[#allocation5] sm:$0x3]
    %v1427 = vld [vmem:[#allocation3 + $0x2] sm:$0x3]
    %v1428 = vld [vmem:[#allocation14] sm:$0xff]
    %v1429 = vld [vmem:[#allocation14 + $0x8] sm:$0xff]
    %v1430 = vld [vmem:[#allocation14 + $0x10] sm:$0xff]
    %v1431 = vld [vmem:[#allocation14 + $0x18] sm:$0xff]
    %v1433 = vsel %vm245, %v1425, 0
    %1435 = vmatprep.subr.mxu0 0.0
    %1436 = vmatpush1.msra.mxu0 %v1428
    %1437 = vmatprep.subr.mxu0 0.0
    %1438 = vmatpush1.msra.mxu0 %v1429
    %1439 = vmatprep.subr.mxu0 0.0
    %1440 = vmatpush1.msra.mxu0 %v1430
    %1441 = vmatprep.subr.mxu0 0.0
    %1442 = vmatpush1.msra.mxu0 %v1431
    %1443 = vmatprep.subr.mxu0 0.0
    %1444 = vmatpush1.msra.mxu0 0.0
    %1445 = vmatprep.subr.mxu0 0.0
    %1446 = vmatpush1.msra.mxu0 0.0
    %1447 = vmatprep.subr.mxu0 0.0
    %1448 = vmatpush1.msra.mxu0 0.0
    %1449 = vmatprep.subr.mxu0 0.0
    %1450 = vmatpush1.msra.mxu0 0.0
    %1451 = vmatprep.subr.mxu0 0.0
    %1452 = vmatpush1.msra.mxu0 0.0
    %1453 = vmatprep.subr.mxu0 0.0
    %1454 = vmatpush1.msra.mxu0 0.0
    %1455 = vmatprep.subr.mxu0 0.0
    %1456 = vmatpush1.msra.mxu0 0.0
    %1457 = vmatprep.subr.mxu0 0.0
    %1458 = vmatpush1.msra.mxu0 0.0
    %1459 = vmatprep.subr.mxu0 0.0
    %1460 = vmatpush1.msra.mxu0 0.0
    %1461 = vmatprep.subr.mxu0 0.0
    %1462 = vmatpush1.msra.mxu0 0.0
    %1463 = vmatprep.subr.mxu0 0.0
    %1464 = vmatpush1.msra.mxu0 0.0
    %1465 = vmatprep.subr.mxu0 0.0
    %1466 = vmatpush1.msra.mxu0 0.0
    %1467 = vmatprep.subr.mxu0 0.0
    %1468 = vmatpush1.msra.mxu0 0.0
    %1469 = vmatprep.subr.mxu0 0.0
    %1470 = vmatpush1.msra.mxu0 0.0
    %1471 = vmatprep.subr.mxu0 0.0
    %1472 = vmatpush1.msra.mxu0 0.0
    %1473 = vmatprep.subr.mxu0 0.0
    %1474 = vmatpush1.msra.mxu0 0.0
    %1475 = vmatprep.subr.mxu0 0.0
    %1476 = vmatpush1.msra.mxu0 0.0
    %1477 = vmatprep.subr.mxu0 0.0
    %1478 = vmatpush1.msra.mxu0 0.0
    %1479 = vmatprep.subr.mxu0 0.0
    %1480 = vmatpush1.msra.mxu0 0.0
    %1481 = vmatprep.subr.mxu0 0.0
    %1482 = vmatpush1.msra.mxu0 0.0
    %1483 = vmatprep.subr.mxu0 0.0
    %1484 = vmatpush1.msra.mxu0 0.0
    %1485 = vmatprep.subr.mxu0 0.0
    %1486 = vmatpush1.msra.mxu0 0.0
    %1487 = vmatprep.subr.mxu0 0.0
    %1488 = vmatpush1.msra.mxu0 0.0
    %1489 = vmatprep.subr.mxu0 0.0
    %1490 = vmatpush1.msra.mxu0 0.0
    %1491 = vmatprep.subr.mxu0 0.0
    %1492 = vmatpush1.msra.mxu0 0.0
    %1493 = vmatprep.subr.mxu0 0.0
    %1494 = vmatpush1.msra.mxu0 0.0
    %1495 = vmatprep.subr.mxu0 0.0
    %1496 = vmatpush1.msra.mxu0 0.0
    %1497 = vmatprep.subr.mxu0 0.0
    %1498 = vmatpush1.msra.mxu0 0.0
    %1499 = vmatprep.mubr.f32.mxu0 0.0
    %1500 = vmatmul.mubr.f32.gmra.mrb[0].mxu0 %v1433
    %v1501 = vpop.f32.mrb[0].mxu0
    %v1502 = vadd.f32 0.0, %v1501
    %v1503 = vpop.f32.mrb[0].mxu0
    %1504 = vdwg.mxu0
    %v1505 = vadd.f32 %v1427, %v1502
    %v1506 = vxor.u32 %v1505, 2147483648
    %v1507 = vmul.f32 %v1506, 1.442695
    %v1508 = vpow.pop %v1507
    %v1509 = vadd.f32 %v1508, 1.0
    %v1510 = vrcp.pop %v1509
    %v1511 = vmul.f32 1.0, %v1510
    %v1512 = vtanh.pop %v1505
    %1514 = vrot.lane.b32.xlu0 %v1426, 32
    %v1515 = vpop.permute.xlu0 %1514
    %v1517 = vmul.f32 %v1511, %v1515
    %1519 = vrot.lane.b32.xlu0 %v1512, 64
    %v1520 = vpop.permute.xlu0 %1519
    %v1522 = vmul.f32 %v1511, %v1520
    %1524 = vrot.lane.b32.xlu0 %v1522, 32
    %v1525 = vpop.permute.xlu0 %1524
    %v1527 = vadd.f32 %v1517, %v1525
    %v1528 = vtanh.pop %v1527
    %1530 = vrot.lane.b32.xlu0 %v1528, 64
    %v1531 = vpop.permute.xlu0 %1530
    %v1533 = vmul.f32 %v1511, %v1531
    %1535 = vrot.lane.b32.xlu0 %v1533, 32
    %v1536 = vpop.permute.xlu0 %1535
    %1538 = vst.msk [vmem:[#allocation4] sm:$0x3] %vm234, %v1536
    %1540 = vrot.lane.b32.xlu0 %v1527, 96
    %v1541 = vpop.permute.xlu0 %1540
    %1543 = vst.msk [vmem:[#allocation5] sm:$0x3] %vm234, %v1541
    %1544 = vst.msk [vmem:[#allocation2 + $0x2] sm:$0x3] %vm234, %v1536
    %v1545 = vld [vmem:[#allocation4] sm:$0x3]
    %v1546 = vld [vmem:[#allocation5] sm:$0x3]
    %v1547 = vld [vmem:[#allocation3 + $0x4] sm:$0x3]
    %v1548 = vld [vmem:[#allocation14] sm:$0xff]
    %v1549 = vld [vmem:[#allocation14 + $0x8] sm:$0xff]
    %v1550 = vld [vmem:[#allocation14 + $0x10] sm:$0xff]
    %v1551 = vld [vmem:[#allocation14 + $0x18] sm:$0xff]
    %v1553 = vsel %vm245, %v1545, 0
    %1555 = vmatprep.subr.mxu0 0.0
    %1556 = vmatpush1.msra.mxu0 %v1548
    %1557 = vmatprep.subr.mxu0 0.0
    %1558 = vmatpush1.msra.mxu0 %v1549
    %1559 = vmatprep.subr.mxu0 0.0
    %1560 = vmatpush1.msra.mxu0 %v1550
    %1561 = vmatprep.subr.mxu0 0.0
    %1562 = vmatpush1.msra.mxu0 %v1551
    %1563 = vmatprep.subr.mxu0 0.0
    %1564 = vmatpush1.msra.mxu0 0.0
    %1565 = vmatprep.subr.mxu0 0.0
    %1566 = vmatpush1.msra.mxu0 0.0
    %1567 = vmatprep.subr.mxu0 0.0
    %1568 = vmatpush1.msra.mxu0 0.0
    %1569 = vmatprep.subr.mxu0 0.0
    %1570 = vmatpush1.msra.mxu0 0.0
    %1571 = vmatprep.subr.mxu0 0.0
    %1572 = vmatpush1.msra.mxu0 0.0
    %1573 = vmatprep.subr.mxu0 0.0
    %1574 = vmatpush1.msra.mxu0 0.0
    %1575 = vmatprep.subr.mxu0 0.0
    %1576 = vmatpush1.msra.mxu0 0.0
    %1577 = vmatprep.subr.mxu0 0.0
    %1578 = vmatpush1.msra.mxu0 0.0
    %1579 = vmatprep.subr.mxu0 0.0
    %1580 = vmatpush1.msra.mxu0 0.0
    %1581 = vmatprep.subr.mxu0 0.0
    %1582 = vmatpush1.msra.mxu0 0.0
    %1583 = vmatprep.subr.mxu0 0.0
    %1584 = vmatpush1.msra.mxu0 0.0
    %1585 = vmatprep.subr.mxu0 0.0
    %1586 = vmatpush1.msra.mxu0 0.0
    %1587 = vmatprep.subr.mxu0 0.0
    %1588 = vmatpush1.msra.mxu0 0.0
    %1589 = vmatprep.subr.mxu0 0.0
    %1590 = vmatpush1.msra.mxu0 0.0
    %1591 = vmatprep.subr.mxu0 0.0
    %1592 = vmatpush1.msra.mxu0 0.0
    %1593 = vmatprep.subr.mxu0 0.0
    %1594 = vmatpush1.msra.mxu0 0.0
    %1595 = vmatprep.subr.mxu0 0.0
    %1596 = vmatpush1.msra.mxu0 0.0
    %1597 = vmatprep.subr.mxu0 0.0
    %1598 = vmatpush1.msra.mxu0 0.0
    %1599 = vmatprep.subr.mxu0 0.0
    %1600 = vmatpush1.msra.mxu0 0.0
    %1601 = vmatprep.subr.mxu0 0.0
    %1602 = vmatpush1.msra.mxu0 0.0
    %1603 = vmatprep.subr.mxu0 0.0
    %1604 = vmatpush1.msra.mxu0 0.0
    %1605 = vmatprep.subr.mxu0 0.0
    %1606 = vmatpush1.msra.mxu0 0.0
    %1607 = vmatprep.subr.mxu0 0.0
    %1608 = vmatpush1.msra.mxu0 0.0
    %1609 = vmatprep.subr.mxu0 0.0
    %1610 = vmatpush1.msra.mxu0 0.0
    %1611 = vmatprep.subr.mxu0 0.0
    %1612 = vmatpush1.msra.mxu0 0.0
    %1613 = vmatprep.subr.mxu0 0.0
    %1614 = vmatpush1.msra.mxu0 0.0
    %1615 = vmatprep.subr.mxu0 0.0
    %1616 = vmatpush1.msra.mxu0 0.0
    %1617 = vmatprep.subr.mxu0 0.0
    %1618 = vmatpush1.msra.mxu0 0.0
    %1619 = vmatprep.mubr.f32.mxu0 0.0
    %1620 = vmatmul.mubr.f32.gmra.mrb[0].mxu0 %v1553
    %v1621 = vpop.f32.mrb[0].mxu0
    %v1622 = vadd.f32 0.0, %v1621
    %v1623 = vpop.f32.mrb[0].mxu0
    %1624 = vdwg.mxu0
    %v1625 = vadd.f32 %v1547, %v1622
    %v1626 = vxor.u32 %v1625, 2147483648
    %v1627 = vmul.f32 %v1626, 1.442695
    %v1628 = vpow.pop %v1627
    %v1629 = vadd.f32 %v1628, 1.0
    %v1630 = vrcp.pop %v1629
    %v1631 = vmul.f32 1.0, %v1630
    %v1632 = vtanh.pop %v1625
    %1634 = vrot.lane.b32.xlu0 %v1546, 32
    %v1635 = vpop.permute.xlu0 %1634
    %v1637 = vmul.f32 %v1631, %v1635
    %1639 = vrot.lane.b32.xlu0 %v1632, 64
    %v1640 = vpop.permute.xlu0 %1639
    %v1642 = vmul.f32 %v1631, %v1640
    %1644 = vrot.lane.b32.xlu0 %v1642, 32
    %v1645 = vpop.permute.xlu0 %1644
    %v1647 = vadd.f32 %v1637, %v1645
    %v1648 = vtanh.pop %v1647
    %1650 = vrot.lane.b32.xlu0 %v1648, 64
    %v1651 = vpop.permute.xlu0 %1650
    %v1653 = vmul.f32 %v1631, %v1651
    %1655 = vrot.lane.b32.xlu0 %v1653, 32
    %v1656 = vpop.permute.xlu0 %1655
    %1658 = vst.msk [vmem:[#allocation4] sm:$0x3] %vm234, %v1656
    %1660 = vrot.lane.b32.xlu0 %v1647, 96
    %v1661 = vpop.permute.xlu0 %1660
    %1663 = vst.msk [vmem:[#allocation5] sm:$0x3] %vm234, %v1661
    %1664 = vst.msk [vmem:[#allocation2 + $0x4] sm:$0x3] %vm234, %v1656
    %v1665 = vld [vmem:[#allocation4] sm:$0x3]
    %v1666 = vld [vmem:[#allocation5] sm:$0x3]
    %v1667 = vld [vmem:[#allocation3 + $0x6] sm:$0x3]
    %v1668 = vld [vmem:[#allocation14] sm:$0xff]
    %v1669 = vld [vmem:[#allocation14 + $0x8] sm:$0xff]
    %v1670 = vld [vmem:[#allocation14 + $0x10] sm:$0xff]
    %v1671 = vld [vmem:[#allocation14 + $0x18] sm:$0xff]
    %v1673 = vsel %vm245, %v1665, 0
    %1675 = vmatprep.subr.mxu0 0.0
    %1676 = vmatpush1.msra.mxu0 %v1668
    %1677 = vmatprep.subr.mxu0 0.0
    %1678 = vmatpush1.msra.mxu0 %v1669
    %1679 = vmatprep.subr.mxu0 0.0
    %1680 = vmatpush1.msra.mxu0 %v1670
    %1681 = vmatprep.subr.mxu0 0.0
    %1682 = vmatpush1.msra.mxu0 %v1671
    %1683 = vmatprep.subr.mxu0 0.0
    %1684 = vmatpush1.msra.mxu0 0.0
    %1685 = vmatprep.subr.mxu0 0.0
    %1686 = vmatpush1.msra.mxu0 0.0
    %1687 = vmatprep.subr.mxu0 0.0
    %1688 = vmatpush1.msra.mxu0 0.0
    %1689 = vmatprep.subr.mxu0 0.0
    %1690 = vmatpush1.msra.mxu0 0.0
    %1691 = vmatprep.subr.mxu0 0.0
    %1692 = vmatpush1.msra.mxu0 0.0
    %1693 = vmatprep.subr.mxu0 0.0
    %1694 = vmatpush1.msra.mxu0 0.0
    %1695 = vmatprep.subr.mxu0 0.0
    %1696 = vmatpush1.msra.mxu0 0.0
    %1697 = vmatprep.subr.mxu0 0.0
    %1698 = vmatpush1.msra.mxu0 0.0
    %1699 = vmatprep.subr.mxu0 0.0
    %1700 = vmatpush1.msra.mxu0 0.0
    %1701 = vmatprep.subr.mxu0 0.0
    %1702 = vmatpush1.msra.mxu0 0.0
    %1703 = vmatprep.subr.mxu0 0.0
    %1704 = vmatpush1.msra.mxu0 0.0
    %1705 = vmatprep.subr.mxu0 0.0
    %1706 = vmatpush1.msra.mxu0 0.0
    %1707 = vmatprep.subr.mxu0 0.0
    %1708 = vmatpush1.msra.mxu0 0.0
    %1709 = vmatprep.subr.mxu0 0.0
    %1710 = vmatpush1.msra.mxu0 0.0
    %1711 = vmatprep.subr.mxu0 0.0
    %1712 = vmatpush1.msra.mxu0 0.0
    %1713 = vmatprep.subr.mxu0 0.0
    %1714 = vmatpush1.msra.mxu0 0.0
    %1715 = vmatprep.subr.mxu0 0.0
    %1716 = vmatpush1.msra.mxu0 0.0
    %1717 = vmatprep.subr.mxu0 0.0
    %1718 = vmatpush1.msra.mxu0 0.0
    %1719 = vmatprep.subr.mxu0 0.0
    %1720 = vmatpush1.msra.mxu0 0.0
    %1721 = vmatprep.subr.mxu0 0.0
    %1722 = vmatpush1.msra.mxu0 0.0
    %1723 = vmatprep.subr.mxu0 0.0
    %1724 = vmatpush1.msra.mxu0 0.0
    %1725 = vmatprep.subr.mxu0 0.0
    %1726 = vmatpush1.msra.mxu0 0.0
    %1727 = vmatprep.subr.mxu0 0.0
    %1728 = vmatpush1.msra.mxu0 0.0
    %1729 = vmatprep.subr.mxu0 0.0
    %1730 = vmatpush1.msra.mxu0 0.0
    %1731 = vmatprep.subr.mxu0 0.0
    %1732 = vmatpush1.msra.mxu0 0.0
    %1733 = vmatprep.subr.mxu0 0.0
    %1734 = vmatpush1.msra.mxu0 0.0
    %1735 = vmatprep.subr.mxu0 0.0
    %1736 = vmatpush1.msra.mxu0 0.0
    %1737 = vmatprep.subr.mxu0 0.0
    %1738 = vmatpush1.msra.mxu0 0.0
    %1739 = vmatprep.mubr.f32.mxu0 0.0
    %1740 = vmatmul.mubr.f32.gmra.mrb[0].mxu0 %v1673
    %v1741 = vpop.f32.mrb[0].mxu0
    %v1742 = vadd.f32 0.0, %v1741
    %v1743 = vpop.f32.mrb[0].mxu0
    %1744 = vdwg.mxu0
    %v1745 = vadd.f32 %v1667, %v1742
    %v1746 = vxor.u32 %v1745, 2147483648
    %v1747 = vmul.f32 %v1746, 1.442695
    %v1748 = vpow.pop %v1747
    %v1749 = vadd.f32 %v1748, 1.0
    %v1750 = vrcp.pop %v1749
    %v1751 = vmul.f32 1.0, %v1750
    %v1752 = vtanh.pop %v1745
    %1754 = vrot.lane.b32.xlu0 %v1666, 32
    %v1755 = vpop.permute.xlu0 %1754
    %v1757 = vmul.f32 %v1751, %v1755
    %1759 = vrot.lane.b32.xlu0 %v1752, 64
    %v1760 = vpop.permute.xlu0 %1759
    %v1762 = vmul.f32 %v1751, %v1760
    %1764 = vrot.lane.b32.xlu0 %v1762, 32
    %v1765 = vpop.permute.xlu0 %1764
    %v1767 = vadd.f32 %v1757, %v1765
    %v1768 = vtanh.pop %v1767
    %1770 = vrot.lane.b32.xlu0 %v1768, 64
    %v1771 = vpop.permute.xlu0 %1770
    %v1773 = vmul.f32 %v1751, %v1771
    %1775 = vrot.lane.b32.xlu0 %v1773, 32
    %v1776 = vpop.permute.xlu0 %1775
    %1778 = vst.msk [vmem:[#allocation4] sm:$0x3] %vm234, %v1776
    %1780 = vrot.lane.b32.xlu0 %v1767, 96
    %v1781 = vpop.permute.xlu0 %1780
    %1783 = vst.msk [vmem:[#allocation5] sm:$0x3] %vm234, %v1781
    %1784 = vst.msk [vmem:[#allocation2 + $0x6] sm:$0x3] %vm234, %v1776
    %v1785 = vld [vmem:[#allocation4] sm:$0x3]
    %v1786 = vld [vmem:[#allocation5] sm:$0x3]
    %v1787 = vld [vmem:[#allocation3 + $0x8] sm:$0x3]
    %v1788 = vld [vmem:[#allocation14] sm:$0xff]
    %v1789 = vld [vmem:[#allocation14 + $0x8] sm:$0xff]
    %v1790 = vld [vmem:[#allocation14 + $0x10] sm:$0xff]
    %v1791 = vld [vmem:[#allocation14 + $0x18] sm:$0xff]
    %v1793 = vsel %vm245, %v1785, 0
    %1795 = vmatprep.subr.mxu0 0.0
    %1796 = vmatpush1.msra.mxu0 %v1788
    %1797 = vmatprep.subr.mxu0 0.0
    %1798 = vmatpush1.msra.mxu0 %v1789
    %1799 = vmatprep.subr.mxu0 0.0
    %1800 = vmatpush1.msra.mxu0 %v1790
    %1801 = vmatprep.subr.mxu0 0.0
    %1802 = vmatpush1.msra.mxu0 %v1791
    %1803 = vmatprep.subr.mxu0 0.0
    %1804 = vmatpush1.msra.mxu0 0.0
    %1805 = vmatprep.subr.mxu0 0.0
    %1806 = vmatpush1.msra.mxu0 0.0
    %1807 = vmatprep.subr.mxu0 0.0
    %1808 = vmatpush1.msra.mxu0 0.0
    %1809 = vmatprep.subr.mxu0 0.0
    %1810 = vmatpush1.msra.mxu0 0.0
    %1811 = vmatprep.subr.mxu0 0.0
    %1812 = vmatpush1.msra.mxu0 0.0
    %1813 = vmatprep.subr.mxu0 0.0
    %1814 = vmatpush1.msra.mxu0 0.0
    %1815 = vmatprep.subr.mxu0 0.0
    %1816 = vmatpush1.msra.mxu0 0.0
    %1817 = vmatprep.subr.mxu0 0.0
    %1818 = vmatpush1.msra.mxu0 0.0
    %1819 = vmatprep.subr.mxu0 0.0
    %1820 = vmatpush1.msra.mxu0 0.0
    %1821 = vmatprep.subr.mxu0 0.0
    %1822 = vmatpush1.msra.mxu0 0.0
    %1823 = vmatprep.subr.mxu0 0.0
    %1824 = vmatpush1.msra.mxu0 0.0
    %1825 = vmatprep.subr.mxu0 0.0
    %1826 = vmatpush1.msra.mxu0 0.0
    %1827 = vmatprep.subr.mxu0 0.0
    %1828 = vmatpush1.msra.mxu0 0.0
    %1829 = vmatprep.subr.mxu0 0.0
    %1830 = vmatpush1.msra.mxu0 0.0
    %1831 = vmatprep.subr.mxu0 0.0
    %1832 = vmatpush1.msra.mxu0 0.0
    %1833 = vmatprep.subr.mxu0 0.0
    %1834 = vmatpush1.msra.mxu0 0.0
    %1835 = vmatprep.subr.mxu0 0.0
    %1836 = vmatpush1.msra.mxu0 0.0
    %1837 = vmatprep.subr.mxu0 0.0
    %1838 = vmatpush1.msra.mxu0 0.0
    %1839 = vmatprep.subr.mxu0 0.0
    %1840 = vmatpush1.msra.mxu0 0.0
    %1841 = vmatprep.subr.mxu0 0.0
    %1842 = vmatpush1.msra.mxu0 0.0
    %1843 = vmatprep.subr.mxu0 0.0
    %1844 = vmatpush1.msra.mxu0 0.0
    %1845 = vmatprep.subr.mxu0 0.0
    %1846 = vmatpush1.msra.mxu0 0.0
    %1847 = vmatprep.subr.mxu0 0.0
    %1848 = vmatpush1.msra.mxu0 0.0
    %1849 = vmatprep.subr.mxu0 0.0
    %1850 = vmatpush1.msra.mxu0 0.0
    %1851 = vmatprep.subr.mxu0 0.0
    %1852 = vmatpush1.msra.mxu0 0.0
    %1853 = vmatprep.subr.mxu0 0.0
    %1854 = vmatpush1.msra.mxu0 0.0
    %1855 = vmatprep.subr.mxu0 0.0
    %1856 = vmatpush1.msra.mxu0 0.0
    %1857 = vmatprep.subr.mxu0 0.0
    %1858 = vmatpush1.msra.mxu0 0.0
    %1859 = vmatprep.mubr.f32.mxu0 0.0
    %1860 = vmatmul.mubr.f32.gmra.mrb[0].mxu0 %v1793
    %v1861 = vpop.f32.mrb[0].mxu0
    %v1862 = vadd.f32 0.0, %v1861
    %v1863 = vpop.f32.mrb[0].mxu0
    %1864 = vdwg.mxu0
    %v1865 = vadd.f32 %v1787, %v1862
    %v1866 = vxor.u32 %v1865, 2147483648
    %v1867 = vmul.f32 %v1866, 1.442695
    %v1868 = vpow.pop %v1867
    %v1869 = vadd.f32 %v1868, 1.0
    %v1870 = vrcp.pop %v1869
    %v1871 = vmul.f32 1.0, %v1870
    %v1872 = vtanh.pop %v1865
    %1874 = vrot.lane.b32.xlu0 %v1786, 32
    %v1875 = vpop.permute.xlu0 %1874
    %v1877 = vmul.f32 %v1871, %v1875
    %1879 = vrot.lane.b32.xlu0 %v1872, 64
    %v1880 = vpop.permute.xlu0 %1879
    %v1882 = vmul.f32 %v1871, %v1880
    %1884 = vrot.lane.b32.xlu0 %v1882, 32
    %v1885 = vpop.permute.xlu0 %1884
    %v1887 = vadd.f32 %v1877, %v1885
    %v1888 = vtanh.pop %v1887
    %1890 = vrot.lane.b32.xlu0 %v1888, 64
    %v1891 = vpop.permute.xlu0 %1890
    %v1893 = vmul.f32 %v1871, %v1891
    %1895 = vrot.lane.b32.xlu0 %v1893, 32
    %v1896 = vpop.permute.xlu0 %1895
    %1898 = vst.msk [vmem:[#allocation4] sm:$0x3] %vm234, %v1896
    %1900 = vrot.lane.b32.xlu0 %v1887, 96
    %v1901 = vpop.permute.xlu0 %1900
    %1903 = vst.msk [vmem:[#allocation5] sm:$0x3] %vm234, %v1901
    %1904 = vst.msk [vmem:[#allocation2 + $0x8] sm:$0x3] %vm234, %v1896
    %v1905 = vld [vmem:[#allocation4] sm:$0x3]
    %v1906 = vld [vmem:[#allocation5] sm:$0x3]
    %v1907 = vld [vmem:[#allocation3 + $0xa] sm:$0x3]
    %v1908 = vld [vmem:[#allocation14] sm:$0xff]
    %v1909 = vld [vmem:[#allocation14 + $0x8] sm:$0xff]
    %v1910 = vld [vmem:[#allocation14 + $0x10] sm:$0xff]
    %v1911 = vld [vmem:[#allocation14 + $0x18] sm:$0xff]
    %v1913 = vsel %vm245, %v1905, 0
    %1915 = vmatprep.subr.mxu0 0.0
    %1916 = vmatpush1.msra.mxu0 %v1908
    %1917 = vmatprep.subr.mxu0 0.0
    %1918 = vmatpush1.msra.mxu0 %v1909
    %1919 = vmatprep.subr.mxu0 0.0
    %1920 = vmatpush1.msra.mxu0 %v1910
    %1921 = vmatprep.subr.mxu0 0.0
    %1922 = vmatpush1.msra.mxu0 %v1911
    %1923 = vmatprep.subr.mxu0 0.0
    %1924 = vmatpush1.msra.mxu0 0.0
    %1925 = vmatprep.subr.mxu0 0.0
    %1926 = vmatpush1.msra.mxu0 0.0
    %1927 = vmatprep.subr.mxu0 0.0
    %1928 = vmatpush1.msra.mxu0 0.0
    %1929 = vmatprep.subr.mxu0 0.0
    %1930 = vmatpush1.msra.mxu0 0.0
    %1931 = vmatprep.subr.mxu0 0.0
    %1932 = vmatpush1.msra.mxu0 0.0
    %1933 = vmatprep.subr.mxu0 0.0
    %1934 = vmatpush1.msra.mxu0 0.0
    %1935 = vmatprep.subr.mxu0 0.0
    %1936 = vmatpush1.msra.mxu0 0.0
    %1937 = vmatprep.subr.mxu0 0.0
    %1938 = vmatpush1.msra.mxu0 0.0
    %1939 = vmatprep.subr.mxu0 0.0
    %1940 = vmatpush1.msra.mxu0 0.0
    %1941 = vmatprep.subr.mxu0 0.0
    %1942 = vmatpush1.msra.mxu0 0.0
    %1943 = vmatprep.subr.mxu0 0.0
    %1944 = vmatpush1.msra.mxu0 0.0
    %1945 = vmatprep.subr.mxu0 0.0
    %1946 = vmatpush1.msra.mxu0 0.0
    %1947 = vmatprep.subr.mxu0 0.0
    %1948 = vmatpush1.msra.mxu0 0.0
    %1949 = vmatprep.subr.mxu0 0.0
    %1950 = vmatpush1.msra.mxu0 0.0
    %1951 = vmatprep.subr.mxu0 0.0
    %1952 = vmatpush1.msra.mxu0 0.0
    %1953 = vmatprep.subr.mxu0 0.0
    %1954 = vmatpush1.msra.mxu0 0.0
    %1955 = vmatprep.subr.mxu0 0.0
    %1956 = vmatpush1.msra.mxu0 0.0
    %1957 = vmatprep.subr.mxu0 0.0
    %1958 = vmatpush1.msra.mxu0 0.0
    %1959 = vmatprep.subr.mxu0 0.0
    %1960 = vmatpush1.msra.mxu0 0.0
    %1961 = vmatprep.subr.mxu0 0.0
    %1962 = vmatpush1.msra.mxu0 0.0
    %1963 = vmatprep.subr.mxu0 0.0
    %1964 = vmatpush1.msra.mxu0 0.0
    %1965 = vmatprep.subr.mxu0 0.0
    %1966 = vmatpush1.msra.mxu0 0.0
    %1967 = vmatprep.subr.mxu0 0.0
    %1968 = vmatpush1.msra.mxu0 0.0
    %1969 = vmatprep.subr.mxu0 0.0
    %1970 = vmatpush1.msra.mxu0 0.0
    %1971 = vmatprep.subr.mxu0 0.0
    %1972 = vmatpush1.msra.mxu0 0.0
    %1973 = vmatprep.subr.mxu0 0.0
    %1974 = vmatpush1.msra.mxu0 0.0
    %1975 = vmatprep.subr.mxu0 0.0
    %1976 = vmatpush1.msra.mxu0 0.0
    %1977 = vmatprep.subr.mxu0 0.0
    %1978 = vmatpush1.msra.mxu0 0.0
    %1979 = vmatprep.mubr.f32.mxu0 0.0
    %1980 = vmatmul.mubr.f32.gmra.mrb[0].mxu0 %v1913
    %v1981 = vpop.f32.mrb[0].mxu0
    %v1982 = vadd.f32 0.0, %v1981
    %v1983 = vpop.f32.mrb[0].mxu0
    %1984 = vdwg.mxu0
    %v1985 = vadd.f32 %v1907, %v1982
    %v1986 = vxor.u32 %v1985, 2147483648
    %v1987 = vmul.f32 %v1986, 1.442695
    %v1988 = vpow.pop %v1987
    %v1989 = vadd.f32 %v1988, 1.0
    %v1990 = vrcp.pop %v1989
    %v1991 = vmul.f32 1.0, %v1990
    %v1992 = vtanh.pop %v1985
    %1994 = vrot.lane.b32.xlu0 %v1906, 32
    %v1995 = vpop.permute.xlu0 %1994
    %v1997 = vmul.f32 %v1991, %v1995
    %1999 = vrot.lane.b32.xlu0 %v1992, 64
    %v2000 = vpop.permute.xlu0 %1999
    %v2002 = vmul.f32 %v1991, %v2000
    %2004 = vrot.lane.b32.xlu0 %v2002, 32
    %v2005 = vpop.permute.xlu0 %2004
    %v2007 = vadd.f32 %v1997, %v2005
    %v2008 = vtanh.pop %v2007
    %2010 = vrot.lane.b32.xlu0 %v2008, 64
    %v2011 = vpop.permute.xlu0 %2010
    %v2013 = vmul.f32 %v1991, %v2011
    %2015 = vrot.lane.b32.xlu0 %v2013, 32
    %v2016 = vpop.permute.xlu0 %2015
    %2018 = vst.msk [vmem:[#allocation4] sm:$0x3] %vm234, %v2016
    %2020 = vrot.lane.b32.xlu0 %v2007, 96
    %v2021 = vpop.permute.xlu0 %2020
    %2023 = vst.msk [vmem:[#allocation5] sm:$0x3] %vm234, %v2021
    %2024 = vst.msk [vmem:[#allocation2 + $0xa] sm:$0x3] %vm234, %v2016
    %v2025 = vld [vmem:[#allocation4] sm:$0x3]
    %v2026 = vld [vmem:[#allocation5] sm:$0x3]
    %v2027 = vld [vmem:[#allocation3 + $0xc] sm:$0x3]
    %v2028 = vld [vmem:[#allocation14] sm:$0xff]
    %v2029 = vld [vmem:[#allocation14 + $0x8] sm:$0xff]
    %v2030 = vld [vmem:[#allocation14 + $0x10] sm:$0xff]
    %v2031 = vld [vmem:[#allocation14 + $0x18] sm:$0xff]
    %v2033 = vsel %vm245, %v2025, 0
    %2035 = vmatprep.subr.mxu0 0.0
    %2036 = vmatpush1.msra.mxu0 %v2028
    %2037 = vmatprep.subr.mxu0 0.0
    %2038 = vmatpush1.msra.mxu0 %v2029
    %2039 = vmatprep.subr.mxu0 0.0
    %2040 = vmatpush1.msra.mxu0 %v2030
    %2041 = vmatprep.subr.mxu0 0.0
    %2042 = vmatpush1.msra.mxu0 %v2031
    %2043 = vmatprep.subr.mxu0 0.0
    %2044 = vmatpush1.msra.mxu0 0.0
    %2045 = vmatprep.subr.mxu0 0.0
    %2046 = vmatpush1.msra.mxu0 0.0
    %2047 = vmatprep.subr.mxu0 0.0
    %2048 = vmatpush1.msra.mxu0 0.0
    %2049 = vmatprep.subr.mxu0 0.0
    %2050 = vmatpush1.msra.mxu0 0.0
    %2051 = vmatprep.subr.mxu0 0.0
    %2052 = vmatpush1.msra.mxu0 0.0
    %2053 = vmatprep.subr.mxu0 0.0
    %2054 = vmatpush1.msra.mxu0 0.0
    %2055 = vmatprep.subr.mxu0 0.0
    %2056 = vmatpush1.msra.mxu0 0.0
    %2057 = vmatprep.subr.mxu0 0.0
    %2058 = vmatpush1.msra.mxu0 0.0
    %2059 = vmatprep.subr.mxu0 0.0
    %2060 = vmatpush1.msra.mxu0 0.0
    %2061 = vmatprep.subr.mxu0 0.0
    %2062 = vmatpush1.msra.mxu0 0.0
    %2063 = vmatprep.subr.mxu0 0.0
    %2064 = vmatpush1.msra.mxu0 0.0
    %2065 = vmatprep.subr.mxu0 0.0
    %2066 = vmatpush1.msra.mxu0 0.0
    %2067 = vmatprep.subr.mxu0 0.0
    %2068 = vmatpush1.msra.mxu0 0.0
    %2069 = vmatprep.subr.mxu0 0.0
    %2070 = vmatpush1.msra.mxu0 0.0
    %2071 = vmatprep.subr.mxu0 0.0
    %2072 = vmatpush1.msra.mxu0 0.0
    %2073 = vmatprep.subr.mxu0 0.0
    %2074 = vmatpush1.msra.mxu0 0.0
    %2075 = vmatprep.subr.mxu0 0.0
    %2076 = vmatpush1.msra.mxu0 0.0
    %2077 = vmatprep.subr.mxu0 0.0
    %2078 = vmatpush1.msra.mxu0 0.0
    %2079 = vmatprep.subr.mxu0 0.0
    %2080 = vmatpush1.msra.mxu0 0.0
    %2081 = vmatprep.subr.mxu0 0.0
    %2082 = vmatpush1.msra.mxu0 0.0
    %2083 = vmatprep.subr.mxu0 0.0
    %2084 = vmatpush1.msra.mxu0 0.0
    %2085 = vmatprep.subr.mxu0 0.0
    %2086 = vmatpush1.msra.mxu0 0.0
    %2087 = vmatprep.subr.mxu0 0.0
    %2088 = vmatpush1.msra.mxu0 0.0
    %2089 = vmatprep.subr.mxu0 0.0
    %2090 = vmatpush1.msra.mxu0 0.0
    %2091 = vmatprep.subr.mxu0 0.0
    %2092 = vmatpush1.msra.mxu0 0.0
    %2093 = vmatprep.subr.mxu0 0.0
    %2094 = vmatpush1.msra.mxu0 0.0
    %2095 = vmatprep.subr.mxu0 0.0
    %2096 = vmatpush1.msra.mxu0 0.0
    %2097 = vmatprep.subr.mxu0 0.0
    %2098 = vmatpush1.msra.mxu0 0.0
    %2099 = vmatprep.mubr.f32.mxu0 0.0
    %2100 = vmatmul.mubr.f32.gmra.mrb[0].mxu0 %v2033
    %v2101 = vpop.f32.mrb[0].mxu0
    %v2102 = vadd.f32 0.0, %v2101
    %v2103 = vpop.f32.mrb[0].mxu0
    %2104 = vdwg.mxu0
    %v2105 = vadd.f32 %v2027, %v2102
    %v2106 = vxor.u32 %v2105, 2147483648
    %v2107 = vmul.f32 %v2106, 1.442695
    %v2108 = vpow.pop %v2107
    %v2109 = vadd.f32 %v2108, 1.0
    %v2110 = vrcp.pop %v2109
    %v2111 = vmul.f32 1.0, %v2110
    %v2112 = vtanh.pop %v2105
    %2114 = vrot.lane.b32.xlu0 %v2026, 32
    %v2115 = vpop.permute.xlu0 %2114
    %v2117 = vmul.f32 %v2111, %v2115
    %2119 = vrot.lane.b32.xlu0 %v2112, 64
    %v2120 = vpop.permute.xlu0 %2119
    %v2122 = vmul.f32 %v2111, %v2120
    %2124 = vrot.lane.b32.xlu0 %v2122, 32
    %v2125 = vpop.permute.xlu0 %2124
    %v2127 = vadd.f32 %v2117, %v2125
    %v2128 = vtanh.pop %v2127
    %2130 = vrot.lane.b32.xlu0 %v2128, 64
    %v2131 = vpop.permute.xlu0 %2130
    %v2133 = vmul.f32 %v2111, %v2131
    %2135 = vrot.lane.b32.xlu0 %v2133, 32
    %v2136 = vpop.permute.xlu0 %2135
    %2138 = vst.msk [vmem:[#allocation4] sm:$0x3] %vm234, %v2136
    %2140 = vrot.lane.b32.xlu0 %v2127, 96
    %v2141 = vpop.permute.xlu0 %2140
    %2143 = vst.msk [vmem:[#allocation5] sm:$0x3] %vm234, %v2141
    %2144 = vst.msk [vmem:[#allocation2 + $0xc] sm:$0x3] %vm234, %v2136
    %v2145 = vld [vmem:[#allocation4] sm:$0x3]
    %v2146 = vld [vmem:[#allocation5] sm:$0x3]
    %v2147 = vld [vmem:[#allocation3 + $0xe] sm:$0x3]
    %v2148 = vld [vmem:[#allocation14] sm:$0xff]
    %v2149 = vld [vmem:[#allocation14 + $0x8] sm:$0xff]
    %v2150 = vld [vmem:[#allocation14 + $0x10] sm:$0xff]
    %v2151 = vld [vmem:[#allocation14 + $0x18] sm:$0xff]
    %v2153 = vsel %vm245, %v2145, 0
    %2155 = vmatprep.subr.mxu0 0.0
    %2156 = vmatpush1.msra.mxu0 %v2148
    %2157 = vmatprep.subr.mxu0 0.0
    %2158 = vmatpush1.msra.mxu0 %v2149
    %2159 = vmatprep.subr.mxu0 0.0
    %2160 = vmatpush1.msra.mxu0 %v2150
    %2161 = vmatprep.subr.mxu0 0.0
    %2162 = vmatpush1.msra.mxu0 %v2151
    %2163 = vmatprep.subr.mxu0 0.0
    %2164 = vmatpush1.msra.mxu0 0.0
    %2165 = vmatprep.subr.mxu0 0.0
    %2166 = vmatpush1.msra.mxu0 0.0
    %2167 = vmatprep.subr.mxu0 0.0
    %2168 = vmatpush1.msra.mxu0 0.0
    %2169 = vmatprep.subr.mxu0 0.0
    %2170 = vmatpush1.msra.mxu0 0.0
    %2171 = vmatprep.subr.mxu0 0.0
    %2172 = vmatpush1.msra.mxu0 0.0
    %2173 = vmatprep.subr.mxu0 0.0
    %2174 = vmatpush1.msra.mxu0 0.0
    %2175 = vmatprep.subr.mxu0 0.0
    %2176 = vmatpush1.msra.mxu0 0.0
    %2177 = vmatprep.subr.mxu0 0.0
    %2178 = vmatpush1.msra.mxu0 0.0
    %2179 = vmatprep.subr.mxu0 0.0
    %2180 = vmatpush1.msra.mxu0 0.0
    %2181 = vmatprep.subr.mxu0 0.0
    %2182 = vmatpush1.msra.mxu0 0.0
    %2183 = vmatprep.subr.mxu0 0.0
    %2184 = vmatpush1.msra.mxu0 0.0
    %2185 = vmatprep.subr.mxu0 0.0
    %2186 = vmatpush1.msra.mxu0 0.0
    %2187 = vmatprep.subr.mxu0 0.0
    %2188 = vmatpush1.msra.mxu0 0.0
    %2189 = vmatprep.subr.mxu0 0.0
    %2190 = vmatpush1.msra.mxu0 0.0
    %2191 = vmatprep.subr.mxu0 0.0
    %2192 = vmatpush1.msra.mxu0 0.0
    %2193 = vmatprep.subr.mxu0 0.0
    %2194 = vmatpush1.msra.mxu0 0.0
    %2195 = vmatprep.subr.mxu0 0.0
    %2196 = vmatpush1.msra.mxu0 0.0
    %2197 = vmatprep.subr.mxu0 0.0
    %2198 = vmatpush1.msra.mxu0 0.0
    %2199 = vmatprep.subr.mxu0 0.0
    %2200 = vmatpush1.msra.mxu0 0.0
    %2201 = vmatprep.subr.mxu0 0.0
    %2202 = vmatpush1.msra.mxu0 0.0
    %2203 = vmatprep.subr.mxu0 0.0
    %2204 = vmatpush1.msra.mxu0 0.0
    %2205 = vmatprep.subr.mxu0 0.0
    %2206 = vmatpush1.msra.mxu0 0.0
    %2207 = vmatprep.subr.mxu0 0.0
    %2208 = vmatpush1.msra.mxu0 0.0
    %2209 = vmatprep.subr.mxu0 0.0
    %2210 = vmatpush1.msra.mxu0 0.0
    %2211 = vmatprep.subr.mxu0 0.0
    %2212 = vmatpush1.msra.mxu0 0.0
    %2213 = vmatprep.subr.mxu0 0.0
    %2214 = vmatpush1.msra.mxu0 0.0
    %2215 = vmatprep.subr.mxu0 0.0
    %2216 = vmatpush1.msra.mxu0 0.0
    %2217 = vmatprep.subr.mxu0 0.0
    %2218 = vmatpush1.msra.mxu0 0.0
    %2219 = vmatprep.mubr.f32.mxu0 0.0
    %2220 = vmatmul.mubr.f32.gmra.mrb[0].mxu0 %v2153
    %v2221 = vpop.f32.mrb[0].mxu0
    %v2222 = vadd.f32 0.0, %v2221
    %v2223 = vpop.f32.mrb[0].mxu0
    %2224 = vdwg.mxu0
    %v2225 = vadd.f32 %v2147, %v2222
    %v2226 = vxor.u32 %v2225, 2147483648
    %v2227 = vmul.f32 %v2226, 1.442695
    %v2228 = vpow.pop %v2227
    %v2229 = vadd.f32 %v2228, 1.0
    %v2230 = vrcp.pop %v2229
    %v2231 = vmul.f32 1.0, %v2230
    %v2232 = vtanh.pop %v2225
    %2234 = vrot.lane.b32.xlu0 %v2146, 32
    %v2235 = vpop.permute.xlu0 %2234
    %v2237 = vmul.f32 %v2231, %v2235
    %2239 = vrot.lane.b32.xlu0 %v2232, 64
    %v2240 = vpop.permute.xlu0 %2239
    %v2242 = vmul.f32 %v2231, %v2240
    %2244 = vrot.lane.b32.xlu0 %v2242, 32
    %v2245 = vpop.permute.xlu0 %2244
    %v2247 = vadd.f32 %v2237, %v2245
    %v2248 = vtanh.pop %v2247
    %2250 = vrot.lane.b32.xlu0 %v2248, 64
    %v2251 = vpop.permute.xlu0 %2250
    %v2253 = vmul.f32 %v2231, %v2251
    %2255 = vrot.lane.b32.xlu0 %v2253, 32
    %v2256 = vpop.permute.xlu0 %2255
    %2258 = vst.msk [vmem:[#allocation4] sm:$0x3] %vm234, %v2256
    %2260 = vrot.lane.b32.xlu0 %v2247, 96
    %v2261 = vpop.permute.xlu0 %2260
    %2263 = vst.msk [vmem:[#allocation5] sm:$0x3] %vm234, %v2261
    %2264 = vst.msk [vmem:[#allocation2 + $0xe] sm:$0x3] %vm234, %v2256
    %v2265 = vld [vmem:[#allocation4] sm:$0x3]
    %s2266 = scalar_lea.vmem [#allocation19], 2
    %2267 = vst.msk [vmem:[%s2266] sm:$0x3] %vm234, %v2265
    %v2268 = vld [vmem:[#allocation5] sm:$0x3]
    %s2269 = scalar_lea.vmem [#allocation21], 2
    %2270 = vst.msk [vmem:[%s2269] sm:$0x3] %vm234, %v2268
    %v2271 = vld [vmem:[#allocation2] sm:$0xff]
    %v2272 = vld [vmem:[#allocation2 + $0x8] sm:$0xff]
    %v2273 = vld [vmem:[%s9] sm:$0xff]
    %v2274 = vld [vmem:[%s9 + $0x8] sm:$0xff]
    %v2275 = vld [vmem:[%s9 + $0x10] sm:$0xff]
    %v2276 = vld [vmem:[%s9 + $0x18] sm:$0xff]
    %v2277 = vld [vmem:[%s10] sm:$0x1]
    %v2279 = vlaneseq
    %v2280 = vshrl.u32 %v2279, 7
    %v2281 = vsub.s32 0, %v2280
    %v2282 = vrot.slane %v2277, %v2281
    %v2285 = vsel %vm245, %v2271, 0
    %v2288 = vsel %vm245, %v2272, 0
    %2290 = vmatprep.subr.mxu0 0.0
    %2291 = vmatpush1.msra.mxu0 %v2273
    %2292 = vmatprep.subr.mxu0 0.0
    %2293 = vmatpush1.msra.mxu0 %v2274
    %2294 = vmatprep.subr.mxu0 0.0
    %2295 = vmatpush1.msra.mxu0 %v2275
    %2296 = vmatprep.subr.mxu0 0.0
    %2297 = vmatpush1.msra.mxu0 %v2276
    %2298 = vmatprep.subr.mxu0 0.0
    %2299 = vmatpush1.msra.mxu0 0.0
    %2300 = vmatprep.subr.mxu0 0.0
    %2301 = vmatpush1.msra.mxu0 0.0
    %2302 = vmatprep.subr.mxu0 0.0
    %2303 = vmatpush1.msra.mxu0 0.0
    %2304 = vmatprep.subr.mxu0 0.0
    %2305 = vmatpush1.msra.mxu0 0.0
    %2306 = vmatprep.subr.mxu0 0.0
    %2307 = vmatpush1.msra.mxu0 0.0
    %2308 = vmatprep.subr.mxu0 0.0
    %2309 = vmatpush1.msra.mxu0 0.0
    %2310 = vmatprep.subr.mxu0 0.0
    %2311 = vmatpush1.msra.mxu0 0.0
    %2312 = vmatprep.subr.mxu0 0.0
    %2313 = vmatpush1.msra.mxu0 0.0
    %2314 = vmatprep.subr.mxu0 0.0
    %2315 = vmatpush1.msra.mxu0 0.0
    %2316 = vmatprep.subr.mxu0 0.0
    %2317 = vmatpush1.msra.mxu0 0.0
    %2318 = vmatprep.subr.mxu0 0.0
    %2319 = vmatpush1.msra.mxu0 0.0
    %2320 = vmatprep.subr.mxu0 0.0
    %2321 = vmatpush1.msra.mxu0 0.0
    %2322 = vmatprep.subr.mxu0 0.0
    %2323 = vmatpush1.msra.mxu0 0.0
    %2324 = vmatprep.subr.mxu0 0.0
    %2325 = vmatpush1.msra.mxu0 0.0
    %2326 = vmatprep.subr.mxu0 0.0
    %2327 = vmatpush1.msra.mxu0 0.0
    %2328 = vmatprep.subr.mxu0 0.0
    %2329 = vmatpush1.msra.mxu0 0.0
    %2330 = vmatprep.subr.mxu0 0.0
    %2331 = vmatpush1.msra.mxu0 0.0
    %2332 = vmatprep.subr.mxu0 0.0
    %2333 = vmatpush1.msra.mxu0 0.0
    %2334 = vmatprep.subr.mxu0 0.0
    %2335 = vmatpush1.msra.mxu0 0.0
    %2336 = vmatprep.subr.mxu0 0.0
    %2337 = vmatpush1.msra.mxu0 0.0
    %2338 = vmatprep.subr.mxu0 0.0
    %2339 = vmatpush1.msra.mxu0 0.0
    %2340 = vmatprep.subr.mxu0 0.0
    %2341 = vmatpush1.msra.mxu0 0.0
    %2342 = vmatprep.subr.mxu0 0.0
    %2343 = vmatpush1.msra.mxu0 0.0
    %2344 = vmatprep.subr.mxu0 0.0
    %2345 = vmatpush1.msra.mxu0 0.0
    %2346 = vmatprep.subr.mxu0 0.0
    %2347 = vmatpush1.msra.mxu0 0.0
    %2348 = vmatprep.subr.mxu0 0.0
    %2349 = vmatpush1.msra.mxu0 0.0
    %2350 = vmatprep.subr.mxu0 0.0
    %2351 = vmatpush1.msra.mxu0 0.0
    %2352 = vmatprep.subr.mxu0 0.0
    %2353 = vmatpush1.msra.mxu0 0.0
    %2354 = vmatprep.mubr.f32.mxu0 0.0
    %2355 = vmatmul.mubr.f32.gmra.mrb[0].mxu0 %v2285
    %v2356 = vpop.f32.mrb[0].mxu0
    %v2357 = vadd.f32 %v2282, %v2356
    %v2358 = vpop.f32.mrb[0].mxu0
    %2359 = vmatprep.mubr.f32.mxu0 0.0
    %2360 = vmatmul.mubr.f32.gmra.mrb[0].mxu0 %v2288
    %v2361 = vpop.f32.mrb[0].mxu0
    %v2362 = vadd.f32 %v2282, %v2361
    %v2363 = vpop.f32.mrb[0].mxu0
    %2364 = vdwg.mxu0
    %2365 = vst [vmem:[#allocation18] sm:$0xff] %v2357
    %2366 = vst [vmem:[#allocation18 + $0x8] sm:$0xff] %v2362
    // Predicated region
    $region74: #{tpu_custom_call.1} parent=1 // pred_check
      _
    $region75: #{tpu_custom_call.1} parent=1 // pred_check_branch
      %2368 = sbr.rel (0) target = $region77
    $region76: #{tpu_custom_call.1} parent=1 // pred_region
      %s2370 = ssub.s32 256, 256
      %2371 = vsyncadd [#allocation8], %s2370
      %s2372 = sshll.u32 [#allocation18], 4
      %s2373 = int_to_ptr.vmem [resolvable:$true] %s2372
      %2378 = dma.vmem_to_hbm [thread:$0]  %s2373, 256, %s11, [#allocation8], 128, 128, 8
    $region77: #{tpu_custom_call.1} parent=1 // pred_fallthru
      _
    // Predicated region
    $region78: #{tpu_custom_call.1} parent=1 // pred_check
      _
    $region79: #{tpu_custom_call.1} parent=1 // pred_check_branch
      %2380 = sbr.rel (0) target = $region81
    $region80: #{tpu_custom_call.1} parent=1 // pred_region
      %s2382 = ssub.s32 64, 64
      %2383 = vsyncadd [#allocation20], %s2382
      %s2384 = sshll.u32 [#allocation19], 4
      %s2385 = int_to_ptr.vmem [resolvable:$true] %s2384
      %2390 = dma.vmem_to_hbm [thread:$0]  %s2385, 64, %s12, [#allocation20], 32, 32, 2
    $region81: #{tpu_custom_call.1} parent=1 // pred_fallthru
      _
    // Predicated region
    $region82: #{tpu_custom_call.1} parent=1 // pred_check
      _
    $region83: #{tpu_custom_call.1} parent=1 // pred_check_branch
      %2392 = sbr.rel (0) target = $region85
    $region84: #{tpu_custom_call.1} parent=1 // pred_region
      %s2394 = ssub.s32 64, 64
      %2395 = vsyncadd [#allocation20], %s2394
      %s2396 = sshll.u32 [#allocation21], 4
      %s2397 = int_to_ptr.vmem [resolvable:$true] %s2396
      %2402 = dma.vmem_to_hbm [thread:$0]  %s2397, 64, %s13, [#allocation20], 32, 32, 2
    $region85: #{tpu_custom_call.1} parent=1 // pred_fallthru
      _
    // Predicated region
    $region86: #{tpu_custom_call.1} parent=1 // pred_check
      _
    $region87: #{tpu_custom_call.1} parent=1 // pred_check_branch
      %2404 = sbr.rel (0) target = $region89
    $region88: #{tpu_custom_call.1} parent=1 // pred_region
      %2405 = dma.done [#allocation8], 256
    $region89: #{tpu_custom_call.1} parent=1 // pred_fallthru
      _
    // Predicated region
    $region90: #{tpu_custom_call.1} parent=1 // pred_check
      _
    $region91: #{tpu_custom_call.1} parent=1 // pred_check_branch
      %2407 = sbr.rel (0) target = $region93
    $region92: #{tpu_custom_call.1} parent=1 // pred_region
      %2408 = dma.done [#allocation20], 64
    $region93: #{tpu_custom_call.1} parent=1 // pred_fallthru
      _
    // Predicated region
    $region94: #{tpu_custom_call.1} parent=1 // pred_check
      _
    $region95: #{tpu_custom_call.1} parent=1 // pred_check_branch
      %2410 = sbr.rel (0) target = $region97
    $region96: #{tpu_custom_call.1} parent=1 // pred_region
      %2411 = dma.done [#allocation20], 64
    $region97: #{tpu_custom_call.1} parent=1 // pred_fallthru
      _
    %2412 = vsyncpa [#allocation7], 1
    %2413 = vsyncpa [#allocation10], 1
    %2414 = vsyncpa [#allocation13], 1
    %2415 = vsyncpa [#allocation16], 1
    %2416 = vsyncpa [#allocation8], 1
    %2417 = vsyncpa [#allocation20], 1

</llo_original>
